<compile_context>
chip_gen: v6e
topology: v6e:2x2x1
jax: 0.10.0
libtpu: 0.0.40
codegen_flags: <defaults>
</compile_context>

<pallas_src>
import math

import jax
import jax.numpy as jnp
from jax.experimental import pallas as pl
from jax.experimental.pallas import tpu as pltpu  # noqa: F401  (TPU backend)

# ----------------------------- configuration --------------------------------
B, S, H = 2, 8, 32          # batch, sequence, hidden_size
N = B * S                   # flattened tokens
NUM_HEADS = 2
HEAD_DIM = H // NUM_HEADS
INTER = 64                  # intermediate (MLP) size
BOTTLENECK = 8              # adapter bottleneck_dim
NUM_LAYERS = 2
LN_EPS = 1e-12              # HF ViT layer_norm_eps default
NEG_INF = -1e30             # additive mask for cross-batch attention

# Parameter order for the kernel call (all stacked with leading layer dim L).
PARAM_ORDER = [
    "ln1g", "ln1b",
    "wqkv", "bqkv", "wo", "bo",
    "a1wd", "a1bd", "a1wu", "a1bu",
    "ln2g", "ln2b",
    "wi", "bi", "wout", "bout",
    "a2wd", "a2bd", "a2wu", "a2bu",
]


def _gelu(x):
    return jax.nn.gelu(x, approximate=True)


def _layernorm(x, g, b):
    mu = jnp.mean(x, axis=-1, keepdims=True)
    var = jnp.mean((x - mu) ** 2, axis=-1, keepdims=True)
    return (x - mu) * jax.lax.rsqrt(var + LN_EPS) * g + b


# ------------------------------- the kernel ---------------------------------
def _encoder_kernel(x_ref, bias_ref, hmask_ref,
                    ln1g, ln1b,
                    wqkv, bqkv, wo, bo,
                    a1wd, a1bd, a1wu, a1bu,
                    ln2g, ln2b,
                    wi, bi, wout, bout,
                    a2wd, a2bd, a2wu, a2bu,
                    out_ref):
    """Single invocation (no grid): statically-unrolled loop over layers.

    x_ref:     (N, H)  flattened hidden states
    bias_ref:  (N, N)  0 within a batch element, NEG_INF across batch elements
    hmask_ref: (NUM_HEADS, 1, H) one-hot lane masks selecting each head's dims
    weights:   stacked with a leading NUM_LAYERS dim, resident in VMEM
    """
    h = x_ref[...]                       # (N, H) float32
    attn_bias = bias_ref[...]            # (N, N) float32

    def linear(x2d, w, b):
        return jnp.dot(x2d, w, preferred_element_type=jnp.float32) + b

    for l in range(NUM_LAYERS):          # static unroll (NUM_LAYERS == 2)
        # ---------------- self-attention on layernorm_before(h) -------------
        ln1 = _layernorm(h, ln1g[l], ln1b[l])
        qkv = linear(ln1, wqkv[l], bqkv[l])          # (N, 3H); q pre-scaled
        q = qkv[:, :H]
        k = qkv[:, H:2 * H]
        v = qkv[:, 2 * H:]

        ctx = jnp.zeros((N, H), jnp.float32)
        for hh in range(NUM_HEADS):                  # static unroll over heads
            m = hmask_ref[hh]                        # (1, H) head lane mask
            # scores[q,k] = sum_{d in head hh} q[q,d] * k[k,d]; blocked across
            # batch elements via the additive bias (everything stays 2-D).
            scores = jax.lax.dot_general(
                q * m, k, (((1,), (1,)), ((), ())),
                preferred_element_type=jnp.float32) + attn_bias
            scores = scores - jnp.max(scores, axis=-1, keepdims=True)
            e = jnp.exp(scores)
            probs = e * pl.reciprocal(
                jnp.sum(e, axis=-1, keepdims=True), approx=True)
            # Masked V keeps only this head's output dims; summing over heads
            # reconstructs the full (N, H) context (== concat of head outputs).
            ctx = ctx + jnp.dot(probs, v * m,
                                preferred_element_type=jnp.float32)

        attn = linear(ctx, wo[l], bo[l])             # ViTSelfOutput.dense

        # ---------------- adapter 1 (after attention) + residual ------------
        a1 = linear(_gelu(linear(attn, a1wd[l], a1bd[l])),
                    a1wu[l], a1bu[l]) + attn
        h = a1 + h

        # ---------------- MLP (intermediate + output) -----------------------
        ln2 = _layernorm(h, ln2g[l], ln2b[l])
        inter = _gelu(linear(ln2, wi[l], bi[l]))     # (N, INTER)
        mlp = linear(inter, wout[l], bout[l])        # (N, H)

        # ---------------- adapter 2 (ViTWithAdapterOutput) + residual -------
        a2 = linear(_gelu(linear(mlp, a2wd[l], a2bd[l])),
                    a2wu[l], a2bu[l]) + mlp
        h = a2 + h

    out_ref[...] = h


# ------------------------------- wrapper -------------------------------------
def _prep_kernel_params(p):
    """Fuse QKV and fold the attention scale into the Q weights/bias."""
    scale = 1.0 / math.sqrt(HEAD_DIM)
    kp = dict(p)
    kp["wqkv"] = jnp.concatenate([p["wq"] * scale, p["wk"], p["wv"]], axis=-1)
    kp["bqkv"] = jnp.concatenate([p["bq"] * scale, p["bk"], p["bv"]], axis=-1)
    return kp


def _make_attn_bias():
    tok_batch = jnp.arange(N) // S
    same = tok_batch[:, None] == tok_batch[None, :]
    return jnp.where(same, 0.0, NEG_INF).astype(jnp.float32)      # (N, N)


def _make_head_mask():
    lane_head = jnp.arange(H) // HEAD_DIM
    masks = (lane_head[None, :] == jnp.arange(NUM_HEADS)[:, None])
    return masks.astype(jnp.float32).reshape(NUM_HEADS, 1, H)


def vit_adapter_encoder(x, params):
    kp = _prep_kernel_params(params)
    args = [x.reshape(N, H), _make_attn_bias(), _make_head_mask()]
    args += [kp[name] for name in PARAM_ORDER]

    # No grid: every input is a whole-array VMEM block (total ~70 KB, fits all
    # TPU generations with huge headroom); the layer loop runs inside the
    # kernel, so there are no per-layer grid steps or double-buffered DMAs.
    fn = pl.pallas_call(
        _encoder_kernel,
        out_shape=jax.ShapeDtypeStruct((N, H), jnp.float32),
    )
    return fn(*args).reshape(B, S, H)


# --------------------------- parameter creation ------------------------------
def make_params(key):
    keys = iter(jax.random.split(key, 64))

    def nrm(shape, std):
        return jax.random.normal(next(keys), shape, jnp.float32) * std

    L = NUM_LAYERS
    return {
        # layernorm_before
        "ln1g": jnp.ones((L, 1, H), jnp.float32),
        "ln1b": jnp.zeros((L, 1, H), jnp.float32),
        # attention q/k/v/output dense (stored as (in, out); y = x @ W + b)
        "wq": nrm((L, H, H), 0.02), "bq": jnp.zeros((L, 1, H), jnp.float32),
        "wk": nrm((L, H, H), 0.02), "bk": jnp.zeros((L, 1, H), jnp.float32),
        "wv": nrm((L, H, H), 0.02), "bv": jnp.zeros((L, 1, H), jnp.float32),
        "wo": nrm((L, H, H), 0.02), "bo": jnp.zeros((L, 1, H), jnp.float32),
        # adapter 1 (all params ~ N(0, 1e-5), per Adapter._init_params)
        "a1wd": nrm((L, H, BOTTLENECK), 1e-5),
        "a1bd": nrm((L, 1, BOTTLENECK), 1e-5),
        "a1wu": nrm((L, BOTTLENECK, H), 1e-5),
        "a1bu": nrm((L, 1, H), 1e-5),
        # layernorm_after
        "ln2g": jnp.ones((L, 1, H), jnp.float32),
        "ln2b": jnp.zeros((L, 1, H), jnp.float32),
        # intermediate + output dense
        "wi": nrm((L, H, INTER), 0.02), "bi": jnp.zeros((L, 1, INTER), jnp.float32),
        "wout": nrm((L, INTER, H), 0.02), "bout": jnp.zeros((L, 1, H), jnp.float32),
        # adapter 2
        "a2wd": nrm((L, H, BOTTLENECK), 1e-5),
        "a2bd": nrm((L, 1, BOTTLENECK), 1e-5),
        "a2wu": nrm((L, BOTTLENECK, H), 1e-5),
        "a2bu": nrm((L, 1, H), 1e-5),
    }


# ---------------------------- pure-JAX reference -----------------------------
def ref_forward(x, p):
    def ln(v, g, b):
        mu = v.mean(-1, keepdims=True)
        var = ((v - mu) ** 2).mean(-1, keepdims=True)
        return (v - mu) / jnp.sqrt(var + LN_EPS) * g + b

    h = x
    for l in range(NUM_LAYERS):
        x1 = ln(h, p["ln1g"][l], p["ln1b"][l])
        q = (x1 @ p["wq"][l] + p["bq"][l]).reshape(B, S, NUM_HEADS, HEAD_DIM)
        k = (x1 @ p["wk"][l] + p["bk"][l]).reshape(B, S, NUM_HEADS, HEAD_DIM)
        v = (x1 @ p["wv"][l] + p["bv"][l]).reshape(B, S, NUM_HEADS, HEAD_DIM)
        scores = jnp.einsum("bqnd,bknd->bnqk", q, k) / math.sqrt(HEAD_DIM)
        probs = jax.nn.softmax(scores, axis=-1)
        ctx = jnp.einsum("bnqk,bknd->bqnd", probs, v).reshape(B, S, H)
        attn = ctx @ p["wo"][l] + p["bo"][l]

        a1 = (_gelu(attn @ p["a1wd"][l] + p["a1bd"][l]) @ p["a1wu"][l]
              + p["a1bu"][l]) + attn
        h = a1 + h

        x2 = ln(h, p["ln2g"][l], p["ln2b"][l])
        inter = _gelu(x2 @ p["wi"][l] + p["bi"][l])
        mlp = inter @ p["wout"][l] + p["bout"][l]
        a2 = (_gelu(mlp @ p["a2wd"][l] + p["a2bd"][l]) @ p["a2wu"][l]
              + p["a2bu"][l]) + mlp
        h = a2 + h
    return h


# ----------------------------------- main ------------------------------------
if __name__ == "__main__":
    key = jax.random.PRNGKey(0)
    k_x, k_p = jax.random.split(key)
    x = jax.random.normal(k_x, (B, S, H), jnp.float32)
    params = make_params(k_p)

    out = vit_adapter_encoder(x, params)
    out = jax.block_until_ready(out)

    ref = ref_forward(x, params)
    assert out.shape == (B, S, H)
    assert jnp.allclose(out, ref, atol=1e-3, rtol=1e-3), (
        float(jnp.max(jnp.abs(out - ref))))

    print("KERNEL_OK")
</pallas_src>

<mosaic_0001>
module attributes {stable_mosaic.version = 11 : i64} {
  func.func @_encoder_kernel(%arg0: memref<16x32xf32, #tpu.memory_space<vmem>>, %arg1: memref<16x16xf32, #tpu.memory_space<vmem>>, %arg2: memref<2x1x32xf32, #tpu.memory_space<vmem>>, %arg3: memref<2x1x32xf32, #tpu.memory_space<vmem>>, %arg4: memref<2x1x32xf32, #tpu.memory_space<vmem>>, %arg5: memref<2x32x96xf32, #tpu.memory_space<vmem>>, %arg6: memref<2x1x96xf32, #tpu.memory_space<vmem>>, %arg7: memref<2x32x32xf32, #tpu.memory_space<vmem>>, %arg8: memref<2x1x32xf32, #tpu.memory_space<vmem>>, %arg9: memref<2x32x8xf32, #tpu.memory_space<vmem>>, %arg10: memref<2x1x8xf32, #tpu.memory_space<vmem>>, %arg11: memref<2x8x32xf32, #tpu.memory_space<vmem>>, %arg12: memref<2x1x32xf32, #tpu.memory_space<vmem>>, %arg13: memref<2x1x32xf32, #tpu.memory_space<vmem>>, %arg14: memref<2x1x32xf32, #tpu.memory_space<vmem>>, %arg15: memref<2x32x64xf32, #tpu.memory_space<vmem>>, %arg16: memref<2x1x64xf32, #tpu.memory_space<vmem>>, %arg17: memref<2x64x32xf32, #tpu.memory_space<vmem>>, %arg18: memref<2x1x32xf32, #tpu.memory_space<vmem>>, %arg19: memref<2x32x8xf32, #tpu.memory_space<vmem>>, %arg20: memref<2x1x8xf32, #tpu.memory_space<vmem>>, %arg21: memref<2x8x32xf32, #tpu.memory_space<vmem>>, %arg22: memref<2x1x32xf32, #tpu.memory_space<vmem>>, %arg23: memref<16x32xf32, #tpu.memory_space<vmem>>) attributes {dimension_semantics = [], scalar_prefetch = 0 : i64, scratch_operands = 0 : i64, tpu.core_type = #tpu.core_type<tc>} {
    %c0 = arith.constant 0 : index
    %c0_0 = arith.constant 0 : index
    %0 = vector.load %arg0[%c0, %c0_0] : memref<16x32xf32, #tpu.memory_space<vmem>>, vector<16x32xf32>
    %c0_1 = arith.constant 0 : index
    %c0_2 = arith.constant 0 : index
    %1 = vector.load %arg1[%c0_1, %c0_2] : memref<16x16xf32, #tpu.memory_space<vmem>>, vector<16x16xf32>
    %c0_3 = arith.constant 0 : index
    %c0_4 = arith.constant 0 : index
    %c0_5 = arith.constant 0 : index
    %2 = vector.load %arg3[%c0_3, %c0_4, %c0_5] : memref<2x1x32xf32, #tpu.memory_space<vmem>>, vector<1x1x32xf32>
    %3 = vector.shape_cast %2 : vector<1x1x32xf32> to vector<1x32xf32>
    %c0_6 = arith.constant 0 : index
    %c0_7 = arith.constant 0 : index
    %c0_8 = arith.constant 0 : index
    %4 = vector.load %arg4[%c0_6, %c0_7, %c0_8] : memref<2x1x32xf32, #tpu.memory_space<vmem>>, vector<1x1x32xf32>
    %5 = vector.shape_cast %4 : vector<1x1x32xf32> to vector<1x32xf32>
    %cst = arith.constant dense<0.000000e+00> : vector<16xf32>
    %6 = vector.multi_reduction <add>, %0, %cst [1] : vector<16x32xf32> to vector<16xf32>
    %7 = vector.shape_cast %6 : vector<16xf32> to vector<16x1xf32>
    %cst_9 = arith.constant 3.200000e+01 : f32
    %8 = vector.broadcast %cst_9 : f32 to vector<16x1xf32>
    %9 = arith.divf %7, %8 : vector<16x1xf32>
    %10 = vector.broadcast %9 : vector<16x1xf32> to vector<16x32xf32>
    %11 = arith.subf %0, %10 : vector<16x32xf32>
    %12 = arith.mulf %11, %11 : vector<16x32xf32>
    %cst_10 = arith.constant dense<0.000000e+00> : vector<16xf32>
    %13 = vector.multi_reduction <add>, %12, %cst_10 [1] : vector<16x32xf32> to vector<16xf32>
    %14 = vector.shape_cast %13 : vector<16xf32> to vector<16x1xf32>
    %cst_11 = arith.constant 3.200000e+01 : f32
    %15 = vector.broadcast %cst_11 : f32 to vector<16x1xf32>
    %16 = arith.divf %14, %15 : vector<16x1xf32>
    %17 = vector.broadcast %9 : vector<16x1xf32> to vector<16x32xf32>
    %18 = arith.subf %0, %17 : vector<16x32xf32>
    %cst_12 = arith.constant 9.99999996E-13 : f32
    %19 = vector.broadcast %cst_12 : f32 to vector<16x1xf32>
    %20 = arith.addf %16, %19 : vector<16x1xf32>
    %21 = math.rsqrt %20 : vector<16x1xf32>
    %22 = vector.broadcast %21 : vector<16x1xf32> to vector<16x32xf32>
    %23 = arith.mulf %18, %22 : vector<16x32xf32>
    %24 = vector.broadcast %3 : vector<1x32xf32> to vector<16x32xf32>
    %25 = arith.mulf %23, %24 : vector<16x32xf32>
    %26 = vector.broadcast %5 : vector<1x32xf32> to vector<16x32xf32>
    %27 = arith.addf %25, %26 : vector<16x32xf32>
    %c0_13 = arith.constant 0 : index
    %c0_14 = arith.constant 0 : index
    %c0_15 = arith.constant 0 : index
    %28 = vector.load %arg5[%c0_13, %c0_14, %c0_15] : memref<2x32x96xf32, #tpu.memory_space<vmem>>, vector<1x32x96xf32>
    %29 = vector.shape_cast %28 : vector<1x32x96xf32> to vector<32x96xf32>
    %c0_16 = arith.constant 0 : index
    %c0_17 = arith.constant 0 : index
    %c0_18 = arith.constant 0 : index
    %30 = vector.load %arg6[%c0_16, %c0_17, %c0_18] : memref<2x1x96xf32, #tpu.memory_space<vmem>>, vector<1x1x96xf32>
    %31 = vector.shape_cast %30 : vector<1x1x96xf32> to vector<1x96xf32>
    %cst_19 = arith.constant dense<0.000000e+00> : vector<16x96xf32>
    %32 = tpu.matmul %27, %29, %cst_19 {dimension_numbers = #tpu.dot_dimension_numbers<[1], [0], [0], [1], [0, 0, 1, 1], [], []>} : vector<16x32xf32>, vector<32x96xf32>, vector<16x96xf32> -> vector<16x96xf32>
    %33 = vector.broadcast %31 : vector<1x96xf32> to vector<16x96xf32>
    %34 = arith.addf %32, %33 : vector<16x96xf32>
    %35 = vector.extract_strided_slice %34 {offsets = [0, 0], sizes = [16, 32], strides = [1, 1]} : vector<16x96xf32> to vector<16x32xf32>
    %36 = vector.extract_strided_slice %34 {offsets = [0, 32], sizes = [16, 32], strides = [1, 1]} : vector<16x96xf32> to vector<16x32xf32>
    %37 = vector.extract_strided_slice %34 {offsets = [0, 64], sizes = [16, 32], strides = [1, 1]} : vector<16x96xf32> to vector<16x32xf32>
    %cst_20 = arith.constant 0.000000e+00 : f32
    %38 = vector.broadcast %cst_20 : f32 to vector<16x32xf32>
    %c0_21 = arith.constant 0 : index
    %c0_22 = arith.constant 0 : index
    %c0_23 = arith.constant 0 : index
    %39 = vector.load %arg2[%c0_21, %c0_22, %c0_23] : memref<2x1x32xf32, #tpu.memory_space<vmem>>, vector<1x1x32xf32>
    %40 = vector.shape_cast %39 : vector<1x1x32xf32> to vector<1x32xf32>
    %41 = vector.broadcast %40 : vector<1x32xf32> to vector<16x32xf32>
    %42 = arith.mulf %35, %41 : vector<16x32xf32>
    %cst_24 = arith.constant dense<0.000000e+00> : vector<16x16xf32>
    %43 = tpu.matmul %42, %36, %cst_24 {dimension_numbers = #tpu.dot_dimension_numbers<[1], [1], [0], [0], [0, 0, 1, 0], [], []>} : vector<16x32xf32>, vector<16x32xf32>, vector<16x16xf32> -> vector<16x16xf32>
    %44 = arith.addf %43, %1 : vector<16x16xf32>
    %cst_25 = arith.constant dense<0xFF800000> : vector<16xf32>
    %45 = vector.multi_reduction <maximumf>, %44, %cst_25 [1] : vector<16x16xf32> to vector<16xf32>
    %46 = vector.shape_cast %45 : vector<16xf32> to vector<16x1xf32>
    %47 = vector.broadcast %46 : vector<16x1xf32> to vector<16x16xf32>
    %48 = arith.subf %44, %47 : vector<16x16xf32>
    %49 = math.exp %48 : vector<16x16xf32>
    %cst_26 = arith.constant dense<0.000000e+00> : vector<16xf32>
    %50 = vector.multi_reduction <add>, %49, %cst_26 [1] : vector<16x16xf32> to vector<16xf32>
    %51 = vector.shape_cast %50 : vector<16xf32> to vector<16x1xf32>
    %52 = tpu.reciprocal %51 {approx = true} : vector<16x1xf32> -> vector<16x1xf32>
    %53 = vector.broadcast %52 : vector<16x1xf32> to vector<16x16xf32>
    %54 = arith.mulf %49, %53 : vector<16x16xf32>
    %55 = vector.broadcast %40 : vector<1x32xf32> to vector<16x32xf32>
    %56 = arith.mulf %37, %55 : vector<16x32xf32>
    %cst_27 = arith.constant dense<0.000000e+00> : vector<16x32xf32>
    %57 = tpu.matmul %54, %56, %cst_27 {dimension_numbers = #tpu.dot_dimension_numbers<[1], [0], [0], [1], [0, 0, 1, 1], [], []>} : vector<16x16xf32>, vector<16x32xf32>, vector<16x32xf32> -> vector<16x32xf32>
    %58 = arith.addf %38, %57 : vector<16x32xf32>
    %c1 = arith.constant 1 : index
    %c0_28 = arith.constant 0 : index
    %c0_29 = arith.constant 0 : index
    %59 = vector.load %arg2[%c1, %c0_28, %c0_29] : memref<2x1x32xf32, #tpu.memory_space<vmem>>, vector<1x1x32xf32>
    %60 = vector.shape_cast %59 : vector<1x1x32xf32> to vector<1x32xf32>
    %61 = vector.broadcast %60 : vector<1x32xf32> to vector<16x32xf32>
    %62 = arith.mulf %35, %61 : vector<16x32xf32>
    %cst_30 = arith.constant dense<0.000000e+00> : vector<16x16xf32>
    %63 = tpu.matmul %62, %36, %cst_30 {dimension_numbers = #tpu.dot_dimension_numbers<[1], [1], [0], [0], [0, 0, 1, 0], [], []>} : vector<16x32xf32>, vector<16x32xf32>, vector<16x16xf32> -> vector<16x16xf32>
    %64 = arith.addf %63, %1 : vector<16x16xf32>
    %cst_31 = arith.constant dense<0xFF800000> : vector<16xf32>
    %65 = vector.multi_reduction <maximumf>, %64, %cst_31 [1] : vector<16x16xf32> to vector<16xf32>
    %66 = vector.shape_cast %65 : vector<16xf32> to vector<16x1xf32>
    %67 = vector.broadcast %66 : vector<16x1xf32> to vector<16x16xf32>
    %68 = arith.subf %64, %67 : vector<16x16xf32>
    %69 = math.exp %68 : vector<16x16xf32>
    %cst_32 = arith.constant dense<0.000000e+00> : vector<16xf32>
    %70 = vector.multi_reduction <add>, %69, %cst_32 [1] : vector<16x16xf32> to vector<16xf32>
    %71 = vector.shape_cast %70 : vector<16xf32> to vector<16x1xf32>
    %72 = tpu.reciprocal %71 {approx = true} : vector<16x1xf32> -> vector<16x1xf32>
    %73 = vector.broadcast %72 : vector<16x1xf32> to vector<16x16xf32>
    %74 = arith.mulf %69, %73 : vector<16x16xf32>
    %75 = vector.broadcast %60 : vector<1x32xf32> to vector<16x32xf32>
    %76 = arith.mulf %37, %75 : vector<16x32xf32>
    %cst_33 = arith.constant dense<0.000000e+00> : vector<16x32xf32>
    %77 = tpu.matmul %74, %76, %cst_33 {dimension_numbers = #tpu.dot_dimension_numbers<[1], [0], [0], [1], [0, 0, 1, 1], [], []>} : vector<16x16xf32>, vector<16x32xf32>, vector<16x32xf32> -> vector<16x32xf32>
    %78 = arith.addf %58, %77 : vector<16x32xf32>
    %c0_34 = arith.constant 0 : index
    %c0_35 = arith.constant 0 : index
    %c0_36 = arith.constant 0 : index
    %79 = vector.load %arg7[%c0_34, %c0_35, %c0_36] : memref<2x32x32xf32, #tpu.memory_space<vmem>>, vector<1x32x32xf32>
    %80 = vector.shape_cast %79 : vector<1x32x32xf32> to vector<32x32xf32>
    %c0_37 = arith.constant 0 : index
    %c0_38 = arith.constant 0 : index
    %c0_39 = arith.constant 0 : index
    %81 = vector.load %arg8[%c0_37, %c0_38, %c0_39] : memref<2x1x32xf32, #tpu.memory_space<vmem>>, vector<1x1x32xf32>
    %82 = vector.shape_cast %81 : vector<1x1x32xf32> to vector<1x32xf32>
    %cst_40 = arith.constant dense<0.000000e+00> : vector<16x32xf32>
    %83 = tpu.matmul %78, %80, %cst_40 {dimension_numbers = #tpu.dot_dimension_numbers<[1], [0], [0], [1], [0, 0, 1, 1], [], []>} : vector<16x32xf32>, vector<32x32xf32>, vector<16x32xf32> -> vector<16x32xf32>
    %84 = vector.broadcast %82 : vector<1x32xf32> to vector<16x32xf32>
    %85 = arith.addf %83, %84 : vector<16x32xf32>
    %c0_41 = arith.constant 0 : index
    %c0_42 = arith.constant 0 : index
    %c0_43 = arith.constant 0 : index
    %86 = vector.load %arg9[%c0_41, %c0_42, %c0_43] : memref<2x32x8xf32, #tpu.memory_space<vmem>>, vector<1x32x8xf32>
    %87 = vector.shape_cast %86 : vector<1x32x8xf32> to vector<32x8xf32>
    %c0_44 = arith.constant 0 : index
    %c0_45 = arith.constant 0 : index
    %c0_46 = arith.constant 0 : index
    %88 = vector.load %arg10[%c0_44, %c0_45, %c0_46] : memref<2x1x8xf32, #tpu.memory_space<vmem>>, vector<1x1x8xf32>
    %89 = vector.shape_cast %88 : vector<1x1x8xf32> to vector<1x8xf32>
    %cst_47 = arith.constant dense<0.000000e+00> : vector<16x8xf32>
    %90 = tpu.matmul %85, %87, %cst_47 {dimension_numbers = #tpu.dot_dimension_numbers<[1], [0], [0], [1], [0, 0, 1, 1], [], []>} : vector<16x32xf32>, vector<32x8xf32>, vector<16x8xf32> -> vector<16x8xf32>
    %91 = vector.broadcast %89 : vector<1x8xf32> to vector<16x8xf32>
    %92 = arith.addf %90, %91 : vector<16x8xf32>
    %93 = arith.mulf %92, %92 : vector<16x8xf32>
    %94 = arith.mulf %92, %93 : vector<16x8xf32>
    %cst_48 = arith.constant 4.471500e-02 : f32
    %95 = vector.broadcast %cst_48 : f32 to vector<16x8xf32>
    %96 = arith.mulf %95, %94 : vector<16x8xf32>
    %97 = arith.addf %92, %96 : vector<16x8xf32>
    %cst_49 = arith.constant 0.797884583 : f32
    %98 = vector.broadcast %cst_49 : f32 to vector<16x8xf32>
    %99 = arith.mulf %98, %97 : vector<16x8xf32>
    %100 = math.tanh %99 : vector<16x8xf32>
    %cst_50 = arith.constant 1.000000e+00 : f32
    %101 = vector.broadcast %cst_50 : f32 to vector<16x8xf32>
    %102 = arith.addf %101, %100 : vector<16x8xf32>
    %cst_51 = arith.constant 5.000000e-01 : f32
    %103 = vector.broadcast %cst_51 : f32 to vector<16x8xf32>
    %104 = arith.mulf %103, %102 : vector<16x8xf32>
    %105 = arith.mulf %92, %104 : vector<16x8xf32>
    %c0_52 = arith.constant 0 : index
    %c0_53 = arith.constant 0 : index
    %c0_54 = arith.constant 0 : index
    %106 = vector.load %arg11[%c0_52, %c0_53, %c0_54] : memref<2x8x32xf32, #tpu.memory_space<vmem>>, vector<1x8x32xf32>
    %107 = vector.shape_cast %106 : vector<1x8x32xf32> to vector<8x32xf32>
    %c0_55 = arith.constant 0 : index
    %c0_56 = arith.constant 0 : index
    %c0_57 = arith.constant 0 : index
    %108 = vector.load %arg12[%c0_55, %c0_56, %c0_57] : memref<2x1x32xf32, #tpu.memory_space<vmem>>, vector<1x1x32xf32>
    %109 = vector.shape_cast %108 : vector<1x1x32xf32> to vector<1x32xf32>
    %cst_58 = arith.constant dense<0.000000e+00> : vector<16x32xf32>
    %110 = tpu.matmul %105, %107, %cst_58 {dimension_numbers = #tpu.dot_dimension_numbers<[1], [0], [0], [1], [0, 0, 1, 1], [], []>} : vector<16x8xf32>, vector<8x32xf32>, vector<16x32xf32> -> vector<16x32xf32>
    %111 = vector.broadcast %109 : vector<1x32xf32> to vector<16x32xf32>
    %112 = arith.addf %110, %111 : vector<16x32xf32>
    %113 = arith.addf %112, %85 : vector<16x32xf32>
    %114 = arith.addf %113, %0 : vector<16x32xf32>
    %c0_59 = arith.constant 0 : index
    %c0_60 = arith.constant 0 : index
    %c0_61 = arith.constant 0 : index
    %115 = vector.load %arg13[%c0_59, %c0_60, %c0_61] : memref<2x1x32xf32, #tpu.memory_space<vmem>>, vector<1x1x32xf32>
    %116 = vector.shape_cast %115 : vector<1x1x32xf32> to vector<1x32xf32>
    %c0_62 = arith.constant 0 : index
    %c0_63 = arith.constant 0 : index
    %c0_64 = arith.constant 0 : index
    %117 = vector.load %arg14[%c0_62, %c0_63, %c0_64] : memref<2x1x32xf32, #tpu.memory_space<vmem>>, vector<1x1x32xf32>
    %118 = vector.shape_cast %117 : vector<1x1x32xf32> to vector<1x32xf32>
    %cst_65 = arith.constant dense<0.000000e+00> : vector<16xf32>
    %119 = vector.multi_reduction <add>, %114, %cst_65 [1] : vector<16x32xf32> to vector<16xf32>
    %120 = vector.shape_cast %119 : vector<16xf32> to vector<16x1xf32>
    %cst_66 = arith.constant 3.200000e+01 : f32
    %121 = vector.broadcast %cst_66 : f32 to vector<16x1xf32>
    %122 = arith.divf %120, %121 : vector<16x1xf32>
    %123 = vector.broadcast %122 : vector<16x1xf32> to vector<16x32xf32>
    %124 = arith.subf %114, %123 : vector<16x32xf32>
    %125 = arith.mulf %124, %124 : vector<16x32xf32>
    %cst_67 = arith.constant dense<0.000000e+00> : vector<16xf32>
    %126 = vector.multi_reduction <add>, %125, %cst_67 [1] : vector<16x32xf32> to vector<16xf32>
    %127 = vector.shape_cast %126 : vector<16xf32> to vector<16x1xf32>
    %cst_68 = arith.constant 3.200000e+01 : f32
    %128 = vector.broadcast %cst_68 : f32 to vector<16x1xf32>
    %129 = arith.divf %127, %128 : vector<16x1xf32>
    %130 = vector.broadcast %122 : vector<16x1xf32> to vector<16x32xf32>
    %131 = arith.subf %114, %130 : vector<16x32xf32>
    %cst_69 = arith.constant 9.99999996E-13 : f32
    %132 = vector.broadcast %cst_69 : f32 to vector<16x1xf32>
    %133 = arith.addf %129, %132 : vector<16x1xf32>
    %134 = math.rsqrt %133 : vector<16x1xf32>
    %135 = vector.broadcast %134 : vector<16x1xf32> to vector<16x32xf32>
    %136 = arith.mulf %131, %135 : vector<16x32xf32>
    %137 = vector.broadcast %116 : vector<1x32xf32> to vector<16x32xf32>
    %138 = arith.mulf %136, %137 : vector<16x32xf32>
    %139 = vector.broadcast %118 : vector<1x32xf32> to vector<16x32xf32>
    %140 = arith.addf %138, %139 : vector<16x32xf32>
    %c0_70 = arith.constant 0 : index
    %c0_71 = arith.constant 0 : index
    %c0_72 = arith.constant 0 : index
    %141 = vector.load %arg15[%c0_70, %c0_71, %c0_72] : memref<2x32x64xf32, #tpu.memory_space<vmem>>, vector<1x32x64xf32>
    %142 = vector.shape_cast %141 : vector<1x32x64xf32> to vector<32x64xf32>
    %c0_73 = arith.constant 0 : index
    %c0_74 = arith.constant 0 : index
    %c0_75 = arith.constant 0 : index
    %143 = vector.load %arg16[%c0_73, %c0_74, %c0_75] : memref<2x1x64xf32, #tpu.memory_space<vmem>>, vector<1x1x64xf32>
    %144 = vector.shape_cast %143 : vector<1x1x64xf32> to vector<1x64xf32>
    %cst_76 = arith.constant dense<0.000000e+00> : vector<16x64xf32>
    %145 = tpu.matmul %140, %142, %cst_76 {dimension_numbers = #tpu.dot_dimension_numbers<[1], [0], [0], [1], [0, 0, 1, 1], [], []>} : vector<16x32xf32>, vector<32x64xf32>, vector<16x64xf32> -> vector<16x64xf32>
    %146 = vector.broadcast %144 : vector<1x64xf32> to vector<16x64xf32>
    %147 = arith.addf %145, %146 : vector<16x64xf32>
    %148 = arith.mulf %147, %147 : vector<16x64xf32>
    %149 = arith.mulf %147, %148 : vector<16x64xf32>
    %cst_77 = arith.constant 4.471500e-02 : f32
    %150 = vector.broadcast %cst_77 : f32 to vector<16x64xf32>
    %151 = arith.mulf %150, %149 : vector<16x64xf32>
    %152 = arith.addf %147, %151 : vector<16x64xf32>
    %cst_78 = arith.constant 0.797884583 : f32
    %153 = vector.broadcast %cst_78 : f32 to vector<16x64xf32>
    %154 = arith.mulf %153, %152 : vector<16x64xf32>
    %155 = math.tanh %154 : vector<16x64xf32>
    %cst_79 = arith.constant 1.000000e+00 : f32
    %156 = vector.broadcast %cst_79 : f32 to vector<16x64xf32>
    %157 = arith.addf %156, %155 : vector<16x64xf32>
    %cst_80 = arith.constant 5.000000e-01 : f32
    %158 = vector.broadcast %cst_80 : f32 to vector<16x64xf32>
    %159 = arith.mulf %158, %157 : vector<16x64xf32>
    %160 = arith.mulf %147, %159 : vector<16x64xf32>
    %c0_81 = arith.constant 0 : index
    %c0_82 = arith.constant 0 : index
    %c0_83 = arith.constant 0 : index
    %161 = vector.load %arg17[%c0_81, %c0_82, %c0_83] : memref<2x64x32xf32, #tpu.memory_space<vmem>>, vector<1x64x32xf32>
    %162 = vector.shape_cast %161 : vector<1x64x32xf32> to vector<64x32xf32>
    %c0_84 = arith.constant 0 : index
    %c0_85 = arith.constant 0 : index
    %c0_86 = arith.constant 0 : index
    %163 = vector.load %arg18[%c0_84, %c0_85, %c0_86] : memref<2x1x32xf32, #tpu.memory_space<vmem>>, vector<1x1x32xf32>
    %164 = vector.shape_cast %163 : vector<1x1x32xf32> to vector<1x32xf32>
    %cst_87 = arith.constant dense<0.000000e+00> : vector<16x32xf32>
    %165 = tpu.matmul %160, %162, %cst_87 {dimension_numbers = #tpu.dot_dimension_numbers<[1], [0], [0], [1], [0, 0, 1, 1], [], []>} : vector<16x64xf32>, vector<64x32xf32>, vector<16x32xf32> -> vector<16x32xf32>
    %166 = vector.broadcast %164 : vector<1x32xf32> to vector<16x32xf32>
    %167 = arith.addf %165, %166 : vector<16x32xf32>
    %c0_88 = arith.constant 0 : index
    %c0_89 = arith.constant 0 : index
    %c0_90 = arith.constant 0 : index
    %168 = vector.load %arg19[%c0_88, %c0_89, %c0_90] : memref<2x32x8xf32, #tpu.memory_space<vmem>>, vector<1x32x8xf32>
    %169 = vector.shape_cast %168 : vector<1x32x8xf32> to vector<32x8xf32>
    %c0_91 = arith.constant 0 : index
    %c0_92 = arith.constant 0 : index
    %c0_93 = arith.constant 0 : index
    %170 = vector.load %arg20[%c0_91, %c0_92, %c0_93] : memref<2x1x8xf32, #tpu.memory_space<vmem>>, vector<1x1x8xf32>
    %171 = vector.shape_cast %170 : vector<1x1x8xf32> to vector<1x8xf32>
    %cst_94 = arith.constant dense<0.000000e+00> : vector<16x8xf32>
    %172 = tpu.matmul %167, %169, %cst_94 {dimension_numbers = #tpu.dot_dimension_numbers<[1], [0], [0], [1], [0, 0, 1, 1], [], []>} : vector<16x32xf32>, vector<32x8xf32>, vector<16x8xf32> -> vector<16x8xf32>
    %173 = vector.broadcast %171 : vector<1x8xf32> to vector<16x8xf32>
    %174 = arith.addf %172, %173 : vector<16x8xf32>
    %175 = arith.mulf %174, %174 : vector<16x8xf32>
    %176 = arith.mulf %174, %175 : vector<16x8xf32>
    %cst_95 = arith.constant 4.471500e-02 : f32
    %177 = vector.broadcast %cst_95 : f32 to vector<16x8xf32>
    %178 = arith.mulf %177, %176 : vector<16x8xf32>
    %179 = arith.addf %174, %178 : vector<16x8xf32>
    %cst_96 = arith.constant 0.797884583 : f32
    %180 = vector.broadcast %cst_96 : f32 to vector<16x8xf32>
    %181 = arith.mulf %180, %179 : vector<16x8xf32>
    %182 = math.tanh %181 : vector<16x8xf32>
    %cst_97 = arith.constant 1.000000e+00 : f32
    %183 = vector.broadcast %cst_97 : f32 to vector<16x8xf32>
    %184 = arith.addf %183, %182 : vector<16x8xf32>
    %cst_98 = arith.constant 5.000000e-01 : f32
    %185 = vector.broadcast %cst_98 : f32 to vector<16x8xf32>
    %186 = arith.mulf %185, %184 : vector<16x8xf32>
    %187 = arith.mulf %174, %186 : vector<16x8xf32>
    %c0_99 = arith.constant 0 : index
    %c0_100 = arith.constant 0 : index
    %c0_101 = arith.constant 0 : index
    %188 = vector.load %arg21[%c0_99, %c0_100, %c0_101] : memref<2x8x32xf32, #tpu.memory_space<vmem>>, vector<1x8x32xf32>
    %189 = vector.shape_cast %188 : vector<1x8x32xf32> to vector<8x32xf32>
    %c0_102 = arith.constant 0 : index
    %c0_103 = arith.constant 0 : index
    %c0_104 = arith.constant 0 : index
    %190 = vector.load %arg22[%c0_102, %c0_103, %c0_104] : memref<2x1x32xf32, #tpu.memory_space<vmem>>, vector<1x1x32xf32>
    %191 = vector.shape_cast %190 : vector<1x1x32xf32> to vector<1x32xf32>
    %cst_105 = arith.constant dense<0.000000e+00> : vector<16x32xf32>
    %192 = tpu.matmul %187, %189, %cst_105 {dimension_numbers = #tpu.dot_dimension_numbers<[1], [0], [0], [1], [0, 0, 1, 1], [], []>} : vector<16x8xf32>, vector<8x32xf32>, vector<16x32xf32> -> vector<16x32xf32>
    %193 = vector.broadcast %191 : vector<1x32xf32> to vector<16x32xf32>
    %194 = arith.addf %192, %193 : vector<16x32xf32>
    %195 = arith.addf %194, %167 : vector<16x32xf32>
    %196 = arith.addf %195, %114 : vector<16x32xf32>
    %c1_106 = arith.constant 1 : index
    %c0_107 = arith.constant 0 : index
    %c0_108 = arith.constant 0 : index
    %197 = vector.load %arg3[%c1_106, %c0_107, %c0_108] : memref<2x1x32xf32, #tpu.memory_space<vmem>>, vector<1x1x32xf32>
    %198 = vector.shape_cast %197 : vector<1x1x32xf32> to vector<1x32xf32>
    %c1_109 = arith.constant 1 : index
    %c0_110 = arith.constant 0 : index
    %c0_111 = arith.constant 0 : index
    %199 = vector.load %arg4[%c1_109, %c0_110, %c0_111] : memref<2x1x32xf32, #tpu.memory_space<vmem>>, vector<1x1x32xf32>
    %200 = vector.shape_cast %199 : vector<1x1x32xf32> to vector<1x32xf32>
    %cst_112 = arith.constant dense<0.000000e+00> : vector<16xf32>
    %201 = vector.multi_reduction <add>, %196, %cst_112 [1] : vector<16x32xf32> to vector<16xf32>
    %202 = vector.shape_cast %201 : vector<16xf32> to vector<16x1xf32>
    %cst_113 = arith.constant 3.200000e+01 : f32
    %203 = vector.broadcast %cst_113 : f32 to vector<16x1xf32>
    %204 = arith.divf %202, %203 : vector<16x1xf32>
    %205 = vector.broadcast %204 : vector<16x1xf32> to vector<16x32xf32>
    %206 = arith.subf %196, %205 : vector<16x32xf32>
    %207 = arith.mulf %206, %206 : vector<16x32xf32>
    %cst_114 = arith.constant dense<0.000000e+00> : vector<16xf32>
    %208 = vector.multi_reduction <add>, %207, %cst_114 [1] : vector<16x32xf32> to vector<16xf32>
    %209 = vector.shape_cast %208 : vector<16xf32> to vector<16x1xf32>
    %cst_115 = arith.constant 3.200000e+01 : f32
    %210 = vector.broadcast %cst_115 : f32 to vector<16x1xf32>
    %211 = arith.divf %209, %210 : vector<16x1xf32>
    %212 = vector.broadcast %204 : vector<16x1xf32> to vector<16x32xf32>
    %213 = arith.subf %196, %212 : vector<16x32xf32>
    %cst_116 = arith.constant 9.99999996E-13 : f32
    %214 = vector.broadcast %cst_116 : f32 to vector<16x1xf32>
    %215 = arith.addf %211, %214 : vector<16x1xf32>
    %216 = math.rsqrt %215 : vector<16x1xf32>
    %217 = vector.broadcast %216 : vector<16x1xf32> to vector<16x32xf32>
    %218 = arith.mulf %213, %217 : vector<16x32xf32>
    %219 = vector.broadcast %198 : vector<1x32xf32> to vector<16x32xf32>
    %220 = arith.mulf %218, %219 : vector<16x32xf32>
    %221 = vector.broadcast %200 : vector<1x32xf32> to vector<16x32xf32>
    %222 = arith.addf %220, %221 : vector<16x32xf32>
    %c1_117 = arith.constant 1 : index
    %c0_118 = arith.constant 0 : index
    %c0_119 = arith.constant 0 : index
    %223 = vector.load %arg5[%c1_117, %c0_118, %c0_119] : memref<2x32x96xf32, #tpu.memory_space<vmem>>, vector<1x32x96xf32>
    %224 = vector.shape_cast %223 : vector<1x32x96xf32> to vector<32x96xf32>
    %c1_120 = arith.constant 1 : index
    %c0_121 = arith.constant 0 : index
    %c0_122 = arith.constant 0 : index
    %225 = vector.load %arg6[%c1_120, %c0_121, %c0_122] : memref<2x1x96xf32, #tpu.memory_space<vmem>>, vector<1x1x96xf32>
    %226 = vector.shape_cast %225 : vector<1x1x96xf32> to vector<1x96xf32>
    %cst_123 = arith.constant dense<0.000000e+00> : vector<16x96xf32>
    %227 = tpu.matmul %222, %224, %cst_123 {dimension_numbers = #tpu.dot_dimension_numbers<[1], [0], [0], [1], [0, 0, 1, 1], [], []>} : vector<16x32xf32>, vector<32x96xf32>, vector<16x96xf32> -> vector<16x96xf32>
    %228 = vector.broadcast %226 : vector<1x96xf32> to vector<16x96xf32>
    %229 = arith.addf %227, %228 : vector<16x96xf32>
    %230 = vector.extract_strided_slice %229 {offsets = [0, 0], sizes = [16, 32], strides = [1, 1]} : vector<16x96xf32> to vector<16x32xf32>
    %231 = vector.extract_strided_slice %229 {offsets = [0, 32], sizes = [16, 32], strides = [1, 1]} : vector<16x96xf32> to vector<16x32xf32>
    %232 = vector.extract_strided_slice %229 {offsets = [0, 64], sizes = [16, 32], strides = [1, 1]} : vector<16x96xf32> to vector<16x32xf32>
    %cst_124 = arith.constant 0.000000e+00 : f32
    %233 = vector.broadcast %cst_124 : f32 to vector<16x32xf32>
    %c0_125 = arith.constant 0 : index
    %c0_126 = arith.constant 0 : index
    %c0_127 = arith.constant 0 : index
    %234 = vector.load %arg2[%c0_125, %c0_126, %c0_127] : memref<2x1x32xf32, #tpu.memory_space<vmem>>, vector<1x1x32xf32>
    %235 = vector.shape_cast %234 : vector<1x1x32xf32> to vector<1x32xf32>
    %236 = vector.broadcast %235 : vector<1x32xf32> to vector<16x32xf32>
    %237 = arith.mulf %230, %236 : vector<16x32xf32>
    %cst_128 = arith.constant dense<0.000000e+00> : vector<16x16xf32>
    %238 = tpu.matmul %237, %231, %cst_128 {dimension_numbers = #tpu.dot_dimension_numbers<[1], [1], [0], [0], [0, 0, 1, 0], [], []>} : vector<16x32xf32>, vector<16x32xf32>, vector<16x16xf32> -> vector<16x16xf32>
    %239 = arith.addf %238, %1 : vector<16x16xf32>
    %cst_129 = arith.constant dense<0xFF800000> : vector<16xf32>
    %240 = vector.multi_reduction <maximumf>, %239, %cst_129 [1] : vector<16x16xf32> to vector<16xf32>
    %241 = vector.shape_cast %240 : vector<16xf32> to vector<16x1xf32>
    %242 = vector.broadcast %241 : vector<16x1xf32> to vector<16x16xf32>
    %243 = arith.subf %239, %242 : vector<16x16xf32>
    %244 = math.exp %243 : vector<16x16xf32>
    %cst_130 = arith.constant dense<0.000000e+00> : vector<16xf32>
    %245 = vector.multi_reduction <add>, %244, %cst_130 [1] : vector<16x16xf32> to vector<16xf32>
    %246 = vector.shape_cast %245 : vector<16xf32> to vector<16x1xf32>
    %247 = tpu.reciprocal %246 {approx = true} : vector<16x1xf32> -> vector<16x1xf32>
    %248 = vector.broadcast %247 : vector<16x1xf32> to vector<16x16xf32>
    %249 = arith.mulf %244, %248 : vector<16x16xf32>
    %250 = vector.broadcast %235 : vector<1x32xf32> to vector<16x32xf32>
    %251 = arith.mulf %232, %250 : vector<16x32xf32>
    %cst_131 = arith.constant dense<0.000000e+00> : vector<16x32xf32>
    %252 = tpu.matmul %249, %251, %cst_131 {dimension_numbers = #tpu.dot_dimension_numbers<[1], [0], [0], [1], [0, 0, 1, 1], [], []>} : vector<16x16xf32>, vector<16x32xf32>, vector<16x32xf32> -> vector<16x32xf32>
    %253 = arith.addf %233, %252 : vector<16x32xf32>
    %c1_132 = arith.constant 1 : index
    %c0_133 = arith.constant 0 : index
    %c0_134 = arith.constant 0 : index
    %254 = vector.load %arg2[%c1_132, %c0_133, %c0_134] : memref<2x1x32xf32, #tpu.memory_space<vmem>>, vector<1x1x32xf32>
    %255 = vector.shape_cast %254 : vector<1x1x32xf32> to vector<1x32xf32>
    %256 = vector.broadcast %255 : vector<1x32xf32> to vector<16x32xf32>
    %257 = arith.mulf %230, %256 : vector<16x32xf32>
    %cst_135 = arith.constant dense<0.000000e+00> : vector<16x16xf32>
    %258 = tpu.matmul %257, %231, %cst_135 {dimension_numbers = #tpu.dot_dimension_numbers<[1], [1], [0], [0], [0, 0, 1, 0], [], []>} : vector<16x32xf32>, vector<16x32xf32>, vector<16x16xf32> -> vector<16x16xf32>
    %259 = arith.addf %258, %1 : vector<16x16xf32>
    %cst_136 = arith.constant dense<0xFF800000> : vector<16xf32>
    %260 = vector.multi_reduction <maximumf>, %259, %cst_136 [1] : vector<16x16xf32> to vector<16xf32>
    %261 = vector.shape_cast %260 : vector<16xf32> to vector<16x1xf32>
    %262 = vector.broadcast %261 : vector<16x1xf32> to vector<16x16xf32>
    %263 = arith.subf %259, %262 : vector<16x16xf32>
    %264 = math.exp %263 : vector<16x16xf32>
    %cst_137 = arith.constant dense<0.000000e+00> : vector<16xf32>
    %265 = vector.multi_reduction <add>, %264, %cst_137 [1] : vector<16x16xf32> to vector<16xf32>
    %266 = vector.shape_cast %265 : vector<16xf32> to vector<16x1xf32>
    %267 = tpu.reciprocal %266 {approx = true} : vector<16x1xf32> -> vector<16x1xf32>
    %268 = vector.broadcast %267 : vector<16x1xf32> to vector<16x16xf32>
    %269 = arith.mulf %264, %268 : vector<16x16xf32>
    %270 = vector.broadcast %255 : vector<1x32xf32> to vector<16x32xf32>
    %271 = arith.mulf %232, %270 : vector<16x32xf32>
    %cst_138 = arith.constant dense<0.000000e+00> : vector<16x32xf32>
    %272 = tpu.matmul %269, %271, %cst_138 {dimension_numbers = #tpu.dot_dimension_numbers<[1], [0], [0], [1], [0, 0, 1, 1], [], []>} : vector<16x16xf32>, vector<16x32xf32>, vector<16x32xf32> -> vector<16x32xf32>
    %273 = arith.addf %253, %272 : vector<16x32xf32>
    %c1_139 = arith.constant 1 : index
    %c0_140 = arith.constant 0 : index
    %c0_141 = arith.constant 0 : index
    %274 = vector.load %arg7[%c1_139, %c0_140, %c0_141] : memref<2x32x32xf32, #tpu.memory_space<vmem>>, vector<1x32x32xf32>
    %275 = vector.shape_cast %274 : vector<1x32x32xf32> to vector<32x32xf32>
    %c1_142 = arith.constant 1 : index
    %c0_143 = arith.constant 0 : index
    %c0_144 = arith.constant 0 : index
    %276 = vector.load %arg8[%c1_142, %c0_143, %c0_144] : memref<2x1x32xf32, #tpu.memory_space<vmem>>, vector<1x1x32xf32>
    %277 = vector.shape_cast %276 : vector<1x1x32xf32> to vector<1x32xf32>
    %cst_145 = arith.constant dense<0.000000e+00> : vector<16x32xf32>
    %278 = tpu.matmul %273, %275, %cst_145 {dimension_numbers = #tpu.dot_dimension_numbers<[1], [0], [0], [1], [0, 0, 1, 1], [], []>} : vector<16x32xf32>, vector<32x32xf32>, vector<16x32xf32> -> vector<16x32xf32>
    %279 = vector.broadcast %277 : vector<1x32xf32> to vector<16x32xf32>
    %280 = arith.addf %278, %279 : vector<16x32xf32>
    %c1_146 = arith.constant 1 : index
    %c0_147 = arith.constant 0 : index
    %c0_148 = arith.constant 0 : index
    %281 = vector.load %arg9[%c1_146, %c0_147, %c0_148] : memref<2x32x8xf32, #tpu.memory_space<vmem>>, vector<1x32x8xf32>
    %282 = vector.shape_cast %281 : vector<1x32x8xf32> to vector<32x8xf32>
    %c1_149 = arith.constant 1 : index
    %c0_150 = arith.constant 0 : index
    %c0_151 = arith.constant 0 : index
    %283 = vector.load %arg10[%c1_149, %c0_150, %c0_151] : memref<2x1x8xf32, #tpu.memory_space<vmem>>, vector<1x1x8xf32>
    %284 = vector.shape_cast %283 : vector<1x1x8xf32> to vector<1x8xf32>
    %cst_152 = arith.constant dense<0.000000e+00> : vector<16x8xf32>
    %285 = tpu.matmul %280, %282, %cst_152 {dimension_numbers = #tpu.dot_dimension_numbers<[1], [0], [0], [1], [0, 0, 1, 1], [], []>} : vector<16x32xf32>, vector<32x8xf32>, vector<16x8xf32> -> vector<16x8xf32>
    %286 = vector.broadcast %284 : vector<1x8xf32> to vector<16x8xf32>
    %287 = arith.addf %285, %286 : vector<16x8xf32>
    %288 = arith.mulf %287, %287 : vector<16x8xf32>
    %289 = arith.mulf %287, %288 : vector<16x8xf32>
    %cst_153 = arith.constant 4.471500e-02 : f32
    %290 = vector.broadcast %cst_153 : f32 to vector<16x8xf32>
    %291 = arith.mulf %290, %289 : vector<16x8xf32>
    %292 = arith.addf %287, %291 : vector<16x8xf32>
    %cst_154 = arith.constant 0.797884583 : f32
    %293 = vector.broadcast %cst_154 : f32 to vector<16x8xf32>
    %294 = arith.mulf %293, %292 : vector<16x8xf32>
    %295 = math.tanh %294 : vector<16x8xf32>
    %cst_155 = arith.constant 1.000000e+00 : f32
    %296 = vector.broadcast %cst_155 : f32 to vector<16x8xf32>
    %297 = arith.addf %296, %295 : vector<16x8xf32>
    %cst_156 = arith.constant 5.000000e-01 : f32
    %298 = vector.broadcast %cst_156 : f32 to vector<16x8xf32>
    %299 = arith.mulf %298, %297 : vector<16x8xf32>
    %300 = arith.mulf %287, %299 : vector<16x8xf32>
    %c1_157 = arith.constant 1 : index
    %c0_158 = arith.constant 0 : index
    %c0_159 = arith.constant 0 : index
    %301 = vector.load %arg11[%c1_157, %c0_158, %c0_159] : memref<2x8x32xf32, #tpu.memory_space<vmem>>, vector<1x8x32xf32>
    %302 = vector.shape_cast %301 : vector<1x8x32xf32> to vector<8x32xf32>
    %c1_160 = arith.constant 1 : index
    %c0_161 = arith.constant 0 : index
    %c0_162 = arith.constant 0 : index
    %303 = vector.load %arg12[%c1_160, %c0_161, %c0_162] : memref<2x1x32xf32, #tpu.memory_space<vmem>>, vector<1x1x32xf32>
    %304 = vector.shape_cast %303 : vector<1x1x32xf32> to vector<1x32xf32>
    %cst_163 = arith.constant dense<0.000000e+00> : vector<16x32xf32>
    %305 = tpu.matmul %300, %302, %cst_163 {dimension_numbers = #tpu.dot_dimension_numbers<[1], [0], [0], [1], [0, 0, 1, 1], [], []>} : vector<16x8xf32>, vector<8x32xf32>, vector<16x32xf32> -> vector<16x32xf32>
    %306 = vector.broadcast %304 : vector<1x32xf32> to vector<16x32xf32>
    %307 = arith.addf %305, %306 : vector<16x32xf32>
    %308 = arith.addf %307, %280 : vector<16x32xf32>
    %309 = arith.addf %308, %196 : vector<16x32xf32>
    %c1_164 = arith.constant 1 : index
    %c0_165 = arith.constant 0 : index
    %c0_166 = arith.constant 0 : index
    %310 = vector.load %arg13[%c1_164, %c0_165, %c0_166] : memref<2x1x32xf32, #tpu.memory_space<vmem>>, vector<1x1x32xf32>
    %311 = vector.shape_cast %310 : vector<1x1x32xf32> to vector<1x32xf32>
    %c1_167 = arith.constant 1 : index
    %c0_168 = arith.constant 0 : index
    %c0_169 = arith.constant 0 : index
    %312 = vector.load %arg14[%c1_167, %c0_168, %c0_169] : memref<2x1x32xf32, #tpu.memory_space<vmem>>, vector<1x1x32xf32>
    %313 = vector.shape_cast %312 : vector<1x1x32xf32> to vector<1x32xf32>
    %cst_170 = arith.constant dense<0.000000e+00> : vector<16xf32>
    %314 = vector.multi_reduction <add>, %309, %cst_170 [1] : vector<16x32xf32> to vector<16xf32>
    %315 = vector.shape_cast %314 : vector<16xf32> to vector<16x1xf32>
    %cst_171 = arith.constant 3.200000e+01 : f32
    %316 = vector.broadcast %cst_171 : f32 to vector<16x1xf32>
    %317 = arith.divf %315, %316 : vector<16x1xf32>
    %318 = vector.broadcast %317 : vector<16x1xf32> to vector<16x32xf32>
    %319 = arith.subf %309, %318 : vector<16x32xf32>
    %320 = arith.mulf %319, %319 : vector<16x32xf32>
    %cst_172 = arith.constant dense<0.000000e+00> : vector<16xf32>
    %321 = vector.multi_reduction <add>, %320, %cst_172 [1] : vector<16x32xf32> to vector<16xf32>
    %322 = vector.shape_cast %321 : vector<16xf32> to vector<16x1xf32>
    %cst_173 = arith.constant 3.200000e+01 : f32
    %323 = vector.broadcast %cst_173 : f32 to vector<16x1xf32>
    %324 = arith.divf %322, %323 : vector<16x1xf32>
    %325 = vector.broadcast %317 : vector<16x1xf32> to vector<16x32xf32>
    %326 = arith.subf %309, %325 : vector<16x32xf32>
    %cst_174 = arith.constant 9.99999996E-13 : f32
    %327 = vector.broadcast %cst_174 : f32 to vector<16x1xf32>
    %328 = arith.addf %324, %327 : vector<16x1xf32>
    %329 = math.rsqrt %328 : vector<16x1xf32>
    %330 = vector.broadcast %329 : vector<16x1xf32> to vector<16x32xf32>
    %331 = arith.mulf %326, %330 : vector<16x32xf32>
    %332 = vector.broadcast %311 : vector<1x32xf32> to vector<16x32xf32>
    %333 = arith.mulf %331, %332 : vector<16x32xf32>
    %334 = vector.broadcast %313 : vector<1x32xf32> to vector<16x32xf32>
    %335 = arith.addf %333, %334 : vector<16x32xf32>
    %c1_175 = arith.constant 1 : index
    %c0_176 = arith.constant 0 : index
    %c0_177 = arith.constant 0 : index
    %336 = vector.load %arg15[%c1_175, %c0_176, %c0_177] : memref<2x32x64xf32, #tpu.memory_space<vmem>>, vector<1x32x64xf32>
    %337 = vector.shape_cast %336 : vector<1x32x64xf32> to vector<32x64xf32>
    %c1_178 = arith.constant 1 : index
    %c0_179 = arith.constant 0 : index
    %c0_180 = arith.constant 0 : index
    %338 = vector.load %arg16[%c1_178, %c0_179, %c0_180] : memref<2x1x64xf32, #tpu.memory_space<vmem>>, vector<1x1x64xf32>
    %339 = vector.shape_cast %338 : vector<1x1x64xf32> to vector<1x64xf32>
    %cst_181 = arith.constant dense<0.000000e+00> : vector<16x64xf32>
    %340 = tpu.matmul %335, %337, %cst_181 {dimension_numbers = #tpu.dot_dimension_numbers<[1], [0], [0], [1], [0, 0, 1, 1], [], []>} : vector<16x32xf32>, vector<32x64xf32>, vector<16x64xf32> -> vector<16x64xf32>
    %341 = vector.broadcast %339 : vector<1x64xf32> to vector<16x64xf32>
    %342 = arith.addf %340, %341 : vector<16x64xf32>
    %343 = arith.mulf %342, %342 : vector<16x64xf32>
    %344 = arith.mulf %342, %343 : vector<16x64xf32>
    %cst_182 = arith.constant 4.471500e-02 : f32
    %345 = vector.broadcast %cst_182 : f32 to vector<16x64xf32>
    %346 = arith.mulf %345, %344 : vector<16x64xf32>
    %347 = arith.addf %342, %346 : vector<16x64xf32>
    %cst_183 = arith.constant 0.797884583 : f32
    %348 = vector.broadcast %cst_183 : f32 to vector<16x64xf32>
    %349 = arith.mulf %348, %347 : vector<16x64xf32>
    %350 = math.tanh %349 : vector<16x64xf32>
    %cst_184 = arith.constant 1.000000e+00 : f32
    %351 = vector.broadcast %cst_184 : f32 to vector<16x64xf32>
    %352 = arith.addf %351, %350 : vector<16x64xf32>
    %cst_185 = arith.constant 5.000000e-01 : f32
    %353 = vector.broadcast %cst_185 : f32 to vector<16x64xf32>
    %354 = arith.mulf %353, %352 : vector<16x64xf32>
    %355 = arith.mulf %342, %354 : vector<16x64xf32>
    %c1_186 = arith.constant 1 : index
    %c0_187 = arith.constant 0 : index
    %c0_188 = arith.constant 0 : index
    %356 = vector.load %arg17[%c1_186, %c0_187, %c0_188] : memref<2x64x32xf32, #tpu.memory_space<vmem>>, vector<1x64x32xf32>
    %357 = vector.shape_cast %356 : vector<1x64x32xf32> to vector<64x32xf32>
    %c1_189 = arith.constant 1 : index
    %c0_190 = arith.constant 0 : index
    %c0_191 = arith.constant 0 : index
    %358 = vector.load %arg18[%c1_189, %c0_190, %c0_191] : memref<2x1x32xf32, #tpu.memory_space<vmem>>, vector<1x1x32xf32>
    %359 = vector.shape_cast %358 : vector<1x1x32xf32> to vector<1x32xf32>
    %cst_192 = arith.constant dense<0.000000e+00> : vector<16x32xf32>
    %360 = tpu.matmul %355, %357, %cst_192 {dimension_numbers = #tpu.dot_dimension_numbers<[1], [0], [0], [1], [0, 0, 1, 1], [], []>} : vector<16x64xf32>, vector<64x32xf32>, vector<16x32xf32> -> vector<16x32xf32>
    %361 = vector.broadcast %359 : vector<1x32xf32> to vector<16x32xf32>
    %362 = arith.addf %360, %361 : vector<16x32xf32>
    %c1_193 = arith.constant 1 : index
    %c0_194 = arith.constant 0 : index
    %c0_195 = arith.constant 0 : index
    %363 = vector.load %arg19[%c1_193, %c0_194, %c0_195] : memref<2x32x8xf32, #tpu.memory_space<vmem>>, vector<1x32x8xf32>
    %364 = vector.shape_cast %363 : vector<1x32x8xf32> to vector<32x8xf32>
    %c1_196 = arith.constant 1 : index
    %c0_197 = arith.constant 0 : index
    %c0_198 = arith.constant 0 : index
    %365 = vector.load %arg20[%c1_196, %c0_197, %c0_198] : memref<2x1x8xf32, #tpu.memory_space<vmem>>, vector<1x1x8xf32>
    %366 = vector.shape_cast %365 : vector<1x1x8xf32> to vector<1x8xf32>
    %cst_199 = arith.constant dense<0.000000e+00> : vector<16x8xf32>
    %367 = tpu.matmul %362, %364, %cst_199 {dimension_numbers = #tpu.dot_dimension_numbers<[1], [0], [0], [1], [0, 0, 1, 1], [], []>} : vector<16x32xf32>, vector<32x8xf32>, vector<16x8xf32> -> vector<16x8xf32>
    %368 = vector.broadcast %366 : vector<1x8xf32> to vector<16x8xf32>
    %369 = arith.addf %367, %368 : vector<16x8xf32>
    %370 = arith.mulf %369, %369 : vector<16x8xf32>
    %371 = arith.mulf %369, %370 : vector<16x8xf32>
    %cst_200 = arith.constant 4.471500e-02 : f32
    %372 = vector.broadcast %cst_200 : f32 to vector<16x8xf32>
    %373 = arith.mulf %372, %371 : vector<16x8xf32>
    %374 = arith.addf %369, %373 : vector<16x8xf32>
    %cst_201 = arith.constant 0.797884583 : f32
    %375 = vector.broadcast %cst_201 : f32 to vector<16x8xf32>
    %376 = arith.mulf %375, %374 : vector<16x8xf32>
    %377 = math.tanh %376 : vector<16x8xf32>
    %cst_202 = arith.constant 1.000000e+00 : f32
    %378 = vector.broadcast %cst_202 : f32 to vector<16x8xf32>
    %379 = arith.addf %378, %377 : vector<16x8xf32>
    %cst_203 = arith.constant 5.000000e-01 : f32
    %380 = vector.broadcast %cst_203 : f32 to vector<16x8xf32>
    %381 = arith.mulf %380, %379 : vector<16x8xf32>
    %382 = arith.mulf %369, %381 : vector<16x8xf32>
    %c1_204 = arith.constant 1 : index
    %c0_205 = arith.constant 0 : index
    %c0_206 = arith.constant 0 : index
    %383 = vector.load %arg21[%c1_204, %c0_205, %c0_206] : memref<2x8x32xf32, #tpu.memory_space<vmem>>, vector<1x8x32xf32>
    %384 = vector.shape_cast %383 : vector<1x8x32xf32> to vector<8x32xf32>
    %c1_207 = arith.constant 1 : index
    %c0_208 = arith.constant 0 : index
    %c0_209 = arith.constant 0 : index
    %385 = vector.load %arg22[%c1_207, %c0_208, %c0_209] : memref<2x1x32xf32, #tpu.memory_space<vmem>>, vector<1x1x32xf32>
    %386 = vector.shape_cast %385 : vector<1x1x32xf32> to vector<1x32xf32>
    %cst_210 = arith.constant dense<0.000000e+00> : vector<16x32xf32>
    %387 = tpu.matmul %382, %384, %cst_210 {dimension_numbers = #tpu.dot_dimension_numbers<[1], [0], [0], [1], [0, 0, 1, 1], [], []>} : vector<16x8xf32>, vector<8x32xf32>, vector<16x32xf32> -> vector<16x32xf32>
    %388 = vector.broadcast %386 : vector<1x32xf32> to vector<16x32xf32>
    %389 = arith.addf %387, %388 : vector<16x32xf32>
    %390 = arith.addf %389, %362 : vector<16x32xf32>
    %391 = arith.addf %390, %309 : vector<16x32xf32>
    %c0_211 = arith.constant 0 : index
    %c0_212 = arith.constant 0 : index
    %392 = vector.load %arg23[%c0_211, %c0_212] : memref<16x32xf32, #tpu.memory_space<vmem>>, vector<16x32xf32>
    tpu.vector_store %arg23[%c0_211, %c0_212], %391 {strides = array<i32>} : memref<16x32xf32, #tpu.memory_space<vmem>>, vector<16x32xf32>,
    return
  }
}

</mosaic_0001>

<llo_original>
// kernel: tpu_custom_call.1
$region0: #{tpu_custom_call.1}
  #allocation0 [shape = 'u32[]', space=smem, size = 0x4, offset = 0x4, fixed_abs, tag = 'smem constant byte address 0x4 - core index']
  #allocation1 [shape = 'u32[144,128]{1,0:T(1,128)}', space=vmem, size = 0x12000, scoped, tag = 'internal scratch']
  %s0 = inlined_call_operand.vmem [shape: f32[16,32], index: 0, kind: input, shape index: {}]
  %s1 = inlined_call_operand.vmem [shape: f32[16,16], index: 1, kind: input, shape index: {}]
  %s2 = inlined_call_operand.vmem [shape: f32[2,1,32], index: 2, kind: input, shape index: {}]
  %s3 = inlined_call_operand.vmem [shape: f32[2,1,32], index: 3, kind: input, shape index: {}]
  %s4 = inlined_call_operand.vmem [shape: f32[2,1,32], index: 4, kind: input, shape index: {}]
  %s5 = inlined_call_operand.vmem [shape: f32[2,32,96], index: 5, kind: input, shape index: {}]
  %s6 = inlined_call_operand.vmem [shape: f32[2,1,96], index: 6, kind: input, shape index: {}]
  %s7 = inlined_call_operand.vmem [shape: f32[2,32,32], index: 7, kind: input, shape index: {}]
  %s8 = inlined_call_operand.vmem [shape: f32[2,1,32], index: 8, kind: input, shape index: {}]
  %s9 = inlined_call_operand.vmem [shape: f32[2,32,8], index: 9, kind: input, shape index: {}]
  %s10 = inlined_call_operand.vmem [shape: f32[2,1,8], index: 10, kind: input, shape index: {}]
  %s11 = inlined_call_operand.vmem [shape: f32[2,8,32], index: 11, kind: input, shape index: {}]
  %s12 = inlined_call_operand.vmem [shape: f32[2,1,32], index: 12, kind: input, shape index: {}]
  %s13 = inlined_call_operand.vmem [shape: f32[2,1,32], index: 13, kind: input, shape index: {}]
  %s14 = inlined_call_operand.vmem [shape: f32[2,1,32], index: 14, kind: input, shape index: {}]
  %s15 = inlined_call_operand.vmem [shape: f32[2,32,64], index: 15, kind: input, shape index: {}]
  %s16 = inlined_call_operand.vmem [shape: f32[2,1,64], index: 16, kind: input, shape index: {}]
  %s17 = inlined_call_operand.vmem [shape: f32[2,64,32], index: 17, kind: input, shape index: {}]
  %s18 = inlined_call_operand.vmem [shape: f32[2,1,32], index: 18, kind: input, shape index: {}]
  %s19 = inlined_call_operand.vmem [shape: f32[2,32,8], index: 19, kind: input, shape index: {}]
  %s20 = inlined_call_operand.vmem [shape: f32[2,1,8], index: 20, kind: input, shape index: {}]
  %s21 = inlined_call_operand.vmem [shape: f32[2,8,32], index: 21, kind: input, shape index: {}]
  %s22 = inlined_call_operand.vmem [shape: f32[2,1,32], index: 22, kind: input, shape index: {}]
  %s23 = inlined_call_operand.hbm [shape: f32[16,32], index: 23, kind: output, shape index: {}]
  %s24 = sld [smem:[#allocation0]]
  $region102: #{tpu_custom_call.1} parent=0
    _
  %s26 = ssub.s32 1, %s24
  %s27 = scalar_select 0, %s26, %s24
  $region1: #{tpu_custom_call.1} parent=0
    #allocation2 [shape = 'u8[8192]{0}', space=vmem, size = 0x2000, scoped, tag = 'output window, operand 0, single buffered']
    #allocation3 [shape = 's32[1]{0}', space=sflag, size = 0x4, scoped, tag = 'scoped memory for tpu_custom_call.1']
    %28 = vsyncpa [#allocation3], 0
    // Predicated region
    $region2: #{tpu_custom_call.1} parent=1 // pred_check
      _
    $region3: #{tpu_custom_call.1} parent=1 // pred_check_branch
      %30 = sbr.rel (0) target = $region5
    $region4: #{tpu_custom_call.1} parent=1 // pred_region
      _
    $region5: #{tpu_custom_call.1} parent=1 // pred_fallthru
      _
    // Predicated region
    $region6: #{tpu_custom_call.1} parent=1 // pred_check
      _
    $region7: #{tpu_custom_call.1} parent=1 // pred_check_branch
      %32 = sbr.rel (0) target = $region9
    $region8: #{tpu_custom_call.1} parent=1 // pred_region
      _
    $region9: #{tpu_custom_call.1} parent=1 // pred_fallthru
      _
    // Predicated region
    $region10: #{tpu_custom_call.1} parent=1 // pred_check
      _
    $region11: #{tpu_custom_call.1} parent=1 // pred_check_branch
      %34 = sbr.rel (0) target = $region13
    $region12: #{tpu_custom_call.1} parent=1 // pred_region
      _
    $region13: #{tpu_custom_call.1} parent=1 // pred_fallthru
      _
    // Predicated region
    $region14: #{tpu_custom_call.1} parent=1 // pred_check
      _
    $region15: #{tpu_custom_call.1} parent=1 // pred_check_branch
      %36 = sbr.rel (0) target = $region17
    $region16: #{tpu_custom_call.1} parent=1 // pred_region
      _
    $region17: #{tpu_custom_call.1} parent=1 // pred_fallthru
      _
    // Predicated region
    $region18: #{tpu_custom_call.1} parent=1 // pred_check
      _
    $region19: #{tpu_custom_call.1} parent=1 // pred_check_branch
      %38 = sbr.rel (0) target = $region21
    $region20: #{tpu_custom_call.1} parent=1 // pred_region
      _
    $region21: #{tpu_custom_call.1} parent=1 // pred_fallthru
      _
    // Predicated region
    $region22: #{tpu_custom_call.1} parent=1 // pred_check
      _
    $region23: #{tpu_custom_call.1} parent=1 // pred_check_branch
      %40 = sbr.rel (0) target = $region25
    $region24: #{tpu_custom_call.1} parent=1 // pred_region
      _
    $region25: #{tpu_custom_call.1} parent=1 // pred_fallthru
      _
    // Predicated region
    $region26: #{tpu_custom_call.1} parent=1 // pred_check
      _
    $region27: #{tpu_custom_call.1} parent=1 // pred_check_branch
      %42 = sbr.rel (0) target = $region29
    $region28: #{tpu_custom_call.1} parent=1 // pred_region
      _
    $region29: #{tpu_custom_call.1} parent=1 // pred_fallthru
      _
    // Predicated region
    $region30: #{tpu_custom_call.1} parent=1 // pred_check
      _
    $region31: #{tpu_custom_call.1} parent=1 // pred_check_branch
      %44 = sbr.rel (0) target = $region33
    $region32: #{tpu_custom_call.1} parent=1 // pred_region
      _
    $region33: #{tpu_custom_call.1} parent=1 // pred_fallthru
      _
    // Predicated region
    $region34: #{tpu_custom_call.1} parent=1 // pred_check
      _
    $region35: #{tpu_custom_call.1} parent=1 // pred_check_branch
      %46 = sbr.rel (0) target = $region37
    $region36: #{tpu_custom_call.1} parent=1 // pred_region
      _
    $region37: #{tpu_custom_call.1} parent=1 // pred_fallthru
      _
    // Predicated region
    $region38: #{tpu_custom_call.1} parent=1 // pred_check
      _
    $region39: #{tpu_custom_call.1} parent=1 // pred_check_branch
      %48 = sbr.rel (0) target = $region41
    $region40: #{tpu_custom_call.1} parent=1 // pred_region
      _
    $region41: #{tpu_custom_call.1} parent=1 // pred_fallthru
      _
    // Predicated region
    $region42: #{tpu_custom_call.1} parent=1 // pred_check
      _
    $region43: #{tpu_custom_call.1} parent=1 // pred_check_branch
      %50 = sbr.rel (0) target = $region45
    $region44: #{tpu_custom_call.1} parent=1 // pred_region
      _
    $region45: #{tpu_custom_call.1} parent=1 // pred_fallthru
      _
    // Predicated region
    $region46: #{tpu_custom_call.1} parent=1 // pred_check
      _
    $region47: #{tpu_custom_call.1} parent=1 // pred_check_branch
      %52 = sbr.rel (0) target = $region49
    $region48: #{tpu_custom_call.1} parent=1 // pred_region
      _
    $region49: #{tpu_custom_call.1} parent=1 // pred_fallthru
      _
    // Predicated region
    $region50: #{tpu_custom_call.1} parent=1 // pred_check
      _
    $region51: #{tpu_custom_call.1} parent=1 // pred_check_branch
      %54 = sbr.rel (0) target = $region53
    $region52: #{tpu_custom_call.1} parent=1 // pred_region
      _
    $region53: #{tpu_custom_call.1} parent=1 // pred_fallthru
      _
    // Predicated region
    $region54: #{tpu_custom_call.1} parent=1 // pred_check
      _
    $region55: #{tpu_custom_call.1} parent=1 // pred_check_branch
      %56 = sbr.rel (0) target = $region57
    $region56: #{tpu_custom_call.1} parent=1 // pred_region
      _
    $region57: #{tpu_custom_call.1} parent=1 // pred_fallthru
      _
    // Predicated region
    $region58: #{tpu_custom_call.1} parent=1 // pred_check
      _
    $region59: #{tpu_custom_call.1} parent=1 // pred_check_branch
      %58 = sbr.rel (0) target = $region61
    $region60: #{tpu_custom_call.1} parent=1 // pred_region
      _
    $region61: #{tpu_custom_call.1} parent=1 // pred_fallthru
      _
    // Predicated region
    $region62: #{tpu_custom_call.1} parent=1 // pred_check
      _
    $region63: #{tpu_custom_call.1} parent=1 // pred_check_branch
      %60 = sbr.rel (0) target = $region65
    $region64: #{tpu_custom_call.1} parent=1 // pred_region
      _
    $region65: #{tpu_custom_call.1} parent=1 // pred_fallthru
      _
    // Predicated region
    $region66: #{tpu_custom_call.1} parent=1 // pred_check
      _
    $region67: #{tpu_custom_call.1} parent=1 // pred_check_branch
      %62 = sbr.rel (0) target = $region69
    $region68: #{tpu_custom_call.1} parent=1 // pred_region
      _
    $region69: #{tpu_custom_call.1} parent=1 // pred_fallthru
      _
    // Predicated region
    $region70: #{tpu_custom_call.1} parent=1 // pred_check
      _
    $region71: #{tpu_custom_call.1} parent=1 // pred_check_branch
      %64 = sbr.rel (0) target = $region73
    $region72: #{tpu_custom_call.1} parent=1 // pred_region
      _
    $region73: #{tpu_custom_call.1} parent=1 // pred_fallthru
      _
    // Predicated region
    $region74: #{tpu_custom_call.1} parent=1 // pred_check
      _
    $region75: #{tpu_custom_call.1} parent=1 // pred_check_branch
      %66 = sbr.rel (0) target = $region77
    $region76: #{tpu_custom_call.1} parent=1 // pred_region
      _
    $region77: #{tpu_custom_call.1} parent=1 // pred_fallthru
      _
    // Predicated region
    $region78: #{tpu_custom_call.1} parent=1 // pred_check
      _
    $region79: #{tpu_custom_call.1} parent=1 // pred_check_branch
      %68 = sbr.rel (0) target = $region81
    $region80: #{tpu_custom_call.1} parent=1 // pred_region
      _
    $region81: #{tpu_custom_call.1} parent=1 // pred_fallthru
      _
    // Predicated region
    $region82: #{tpu_custom_call.1} parent=1 // pred_check
      _
    $region83: #{tpu_custom_call.1} parent=1 // pred_check_branch
      %70 = sbr.rel (0) target = $region85
    $region84: #{tpu_custom_call.1} parent=1 // pred_region
      _
    $region85: #{tpu_custom_call.1} parent=1 // pred_fallthru
      _
    // Predicated region
    $region86: #{tpu_custom_call.1} parent=1 // pred_check
      _
    $region87: #{tpu_custom_call.1} parent=1 // pred_check_branch
      %72 = sbr.rel (0) target = $region89
    $region88: #{tpu_custom_call.1} parent=1 // pred_region
      _
    $region89: #{tpu_custom_call.1} parent=1 // pred_fallthru
      _
    // Predicated region
    $region90: #{tpu_custom_call.1} parent=1 // pred_check
      _
    $region91: #{tpu_custom_call.1} parent=1 // pred_check_branch
      %74 = sbr.rel (0) target = $region93
    $region92: #{tpu_custom_call.1} parent=1 // pred_region
      _
    $region93: #{tpu_custom_call.1} parent=1 // pred_fallthru
      _
    %v75 = vld [vmem:[%s0] sm:$0xff]
    %v76 = vld [vmem:[%s0 + $0x8] sm:$0xff]
    %v77 = vld [vmem:[%s1] sm:$0xff]
    %v78 = vld [vmem:[%s1 + $0x8] sm:$0xff]
    %v79 = vld [vmem:[%s3] sm:$0x1]
    %v80 = vld [vmem:[%s4] sm:$0x1]
    %vm81 = vcmask 261120
    %v82 = vsel %vm81, %v75, 0.0
    %83 = vadd.xlane.f32.xlu0 %v82
    %v84 = vpop.xlane.xlu0 %83
    %v85 = vsel %vm81, %v76, 0.0
    %86 = vadd.xlane.f32.xlu0 %v85
    %v87 = vpop.xlane.xlu0 %86
    %v88 = vrcp.pop 32.0
    %v89 = vmul.f32 %v84, %v88
    %v90 = vmul.f32 %v87, %v88
    %v91 = vsub.f32 %v75, %v89
    %v92 = vsub.f32 %v76, %v90
    %v93 = vmul.f32 %v91, %v91
    %v94 = vmul.f32 %v92, %v92
    %v95 = vsel %vm81, %v93, 0.0
    %96 = vadd.xlane.f32.xlu0 %v95
    %v97 = vpop.xlane.xlu0 %96
    %v98 = vsel %vm81, %v94, 0.0
    %99 = vadd.xlane.f32.xlu0 %v98
    %v100 = vpop.xlane.xlu0 %99
    %v101 = vmul.f32 %v97, %v88
    %v102 = vmul.f32 %v100, %v88
    %v103 = vadd.f32 %v101, 1e-12
    %v104 = vadd.f32 %v102, 1e-12
    %v105 = vrsqrt.pop %v103
    %v106 = vrsqrt.pop %v104
    %v107 = vmul.f32 %v91, %v105
    %v108 = vmul.f32 %v92, %v106
    %v110 = vlaneseq
    %v111 = vshrl.u32 %v110, 7
    %v112 = vsub.s32 0, %v111
    %v113 = vrot.slane %v79, %v112
    %v115 = vmul.f32 %v107, %v113
    %v116 = vmul.f32 %v108, %v113
    %v118 = vlaneseq
    %v119 = vshrl.u32 %v118, 7
    %v120 = vsub.s32 0, %v119
    %v121 = vrot.slane %v80, %v120
    %v123 = vadd.f32 %v115, %v121
    %v124 = vadd.f32 %v116, %v121
    %v125 = vld [vmem:[%s5] sm:$0xff]
    %v126 = vld [vmem:[%s5 + $0x8] sm:$0xff]
    %v127 = vld [vmem:[%s5 + $0x10] sm:$0xff]
    %v128 = vld [vmem:[%s5 + $0x18] sm:$0xff]
    %v129 = vld [vmem:[%s6] sm:$0x1]
    %v131 = vlaneseq
    %v132 = vshrl.u32 %v131, 7
    %v133 = vsub.s32 0, %v132
    %v134 = vrot.slane %v129, %v133
    %v137 = vsel %vm81, %v123, 0
    %v140 = vsel %vm81, %v124, 0
    %142 = vmatprep.subr.mxu0 0.0
    %143 = vmatpush1.msra.mxu0 0.0
    %144 = vmatprep.subr.mxu0 0.0
    %145 = vmatpush1.msra.mxu0 0.0
    %146 = vmatprep.subr.mxu0 0.0
    %147 = vmatpush1.msra.mxu0 0.0
    %148 = vmatprep.subr.mxu0 0.0
    %149 = vmatpush1.msra.mxu0 0.0
    %150 = vmatprep.subr.mxu0 0.0
    %151 = vmatpush1.msra.mxu0 0.0
    %152 = vmatprep.subr.mxu0 0.0
    %153 = vmatpush1.msra.mxu0 0.0
    %154 = vmatprep.subr.mxu0 0.0
    %155 = vmatpush1.msra.mxu0 0.0
    %156 = vmatprep.subr.mxu0 0.0
    %157 = vmatpush1.msra.mxu0 0.0
    %158 = vmatprep.subr.mxu0 0.0
    %159 = vmatpush1.msra.mxu0 0.0
    %160 = vmatprep.subr.mxu0 0.0
    %161 = vmatpush1.msra.mxu0 0.0
    %162 = vmatprep.subr.mxu0 0.0
    %163 = vmatpush1.msra.mxu0 0.0
    %164 = vmatprep.subr.mxu0 0.0
    %165 = vmatpush1.msra.mxu0 0.0
    %166 = vmatprep.subr.mxu0 0.0
    %167 = vmatpush1.msra.mxu0 %v128
    %168 = vmatprep.subr.mxu0 0.0
    %169 = vmatpush1.msra.mxu0 %v127
    %170 = vmatprep.subr.mxu0 0.0
    %171 = vmatpush1.msra.mxu0 %v126
    %172 = vmatprep.subr.mxu0 0.0
    %173 = vmatpush1.msra.mxu0 %v125
    %174 = vmatprep.subr.mxu0 0.0
    %175 = vmatpush2.msra.mxu0 0.0
    %176 = vmatprep.subr.mxu0 0.0
    %177 = vmatpush2.msra.mxu0 0.0
    %178 = vmatprep.subr.mxu0 0.0
    %179 = vmatpush2.msra.mxu0 0.0
    %180 = vmatprep.subr.mxu0 0.0
    %181 = vmatpush2.msra.mxu0 0.0
    %182 = vmatprep.subr.mxu0 0.0
    %183 = vmatpush2.msra.mxu0 0.0
    %184 = vmatprep.subr.mxu0 0.0
    %185 = vmatpush2.msra.mxu0 0.0
    %186 = vmatprep.subr.mxu0 0.0
    %187 = vmatpush2.msra.mxu0 0.0
    %188 = vmatprep.subr.mxu0 0.0
    %189 = vmatpush2.msra.mxu0 0.0
    %190 = vmatprep.subr.mxu0 0.0
    %191 = vmatpush2.msra.mxu0 0.0
    %192 = vmatprep.subr.mxu0 0.0
    %193 = vmatpush2.msra.mxu0 0.0
    %194 = vmatprep.subr.mxu0 0.0
    %195 = vmatpush2.msra.mxu0 0.0
    %196 = vmatprep.subr.mxu0 0.0
    %197 = vmatpush2.msra.mxu0 0.0
    %198 = vmatprep.subr.mxu0 0.0
    %199 = vmatpush2.msra.mxu0 0.0
    %200 = vmatprep.subr.mxu0 0.0
    %201 = vmatpush2.msra.mxu0 0.0
    %202 = vmatprep.subr.mxu0 0.0
    %203 = vmatpush2.msra.mxu0 0.0
    %204 = vmatprep.subr.mxu0 0.0
    %205 = vmatpush2.msra.mxu0 0.0
    %206 = vmatprep.mubr.f32.mxu0 0.0
    %207 = vmatmul.mubr.f32.gmra.mxu0 %v137
    %v208 = vpop.f32.mrf.mxu0
    %v209 = vadd.f32 %v134, %v208
    %v210 = vpop.f32.mrf.mxu0
    %211 = vmatprep.mubr.f32.mxu0 0.0
    %212 = vmatmul.mubr.f32.gmra.mxu0 %v140
    %v213 = vpop.f32.mrf.mxu0
    %v214 = vadd.f32 %v134, %v213
    %v215 = vpop.f32.mrf.mxu0
    %216 = vdwg.mxu0
    %v217 = vld [vmem:[%s2] sm:$0x1]
    %v219 = vlaneseq
    %v220 = vshrl.u32 %v219, 7
    %v221 = vsub.s32 0, %v220
    %v222 = vrot.slane %v217, %v221
    %v224 = vmul.f32 %v209, %v222
    %v225 = vmul.f32 %v214, %v222
    %228 = vrot.lane.b32.xlu0 %v209, 96
    %v229 = vpop.permute.xlu0 %228
    %230 = vrot.lane.b32.xlu0 %v214, 96
    %v231 = vpop.permute.xlu0 %230
    %v233 = vsel %vm81, %v224, 0
    %v236 = vsel %vm81, %v225, 0
    %v238 = vsel %vm81, %v229, 0
    %v240 = vsel %vm81, %v231, 0
    %242 = vmatprep.subr.mxu0 0.0
    %243 = vmatpush1.xpose.msra.mxu0 0.0
    %244 = vmatprep.subr.mxu0 0.0
    %245 = vmatpush1.xpose.msra.mxu0 0.0
    %246 = vmatprep.subr.mxu0 0.0
    %247 = vmatpush1.xpose.msra.mxu0 0.0
    %248 = vmatprep.subr.mxu0 0.0
    %249 = vmatpush1.xpose.msra.mxu0 0.0
    %250 = vmatprep.subr.mxu0 0.0
    %251 = vmatpush1.xpose.msra.mxu0 0.0
    %252 = vmatprep.subr.mxu0 0.0
    %253 = vmatpush1.xpose.msra.mxu0 0.0
    %254 = vmatprep.subr.mxu0 0.0
    %255 = vmatpush1.xpose.msra.mxu0 0.0
    %256 = vmatprep.subr.mxu0 0.0
    %257 = vmatpush1.xpose.msra.mxu0 0.0
    %258 = vmatprep.subr.mxu0 0.0
    %259 = vmatpush1.xpose.msra.mxu0 0.0
    %260 = vmatprep.subr.mxu0 0.0
    %261 = vmatpush1.xpose.msra.mxu0 0.0
    %262 = vmatprep.subr.mxu0 0.0
    %263 = vmatpush1.xpose.msra.mxu0 0.0
    %264 = vmatprep.subr.mxu0 0.0
    %265 = vmatpush1.xpose.msra.mxu0 0.0
    %266 = vmatprep.subr.mxu0 0.0
    %267 = vmatpush1.xpose.msra.mxu0 0.0
    %268 = vmatprep.subr.mxu0 0.0
    %269 = vmatpush1.xpose.msra.mxu0 0.0
    %270 = vmatprep.subr.mxu0 0.0
    %271 = vmatpush1.xpose.msra.mxu0 %v240
    %272 = vmatprep.subr.mxu0 0.0
    %273 = vmatpush1.xpose.msra.mxu0 %v238
    %274 = vmatprep.subr.mxu0 0.0
    %275 = vmatpush2.xpose.msra.mxu0 0.0
    %276 = vmatprep.subr.mxu0 0.0
    %277 = vmatpush2.xpose.msra.mxu0 0.0
    %278 = vmatprep.subr.mxu0 0.0
    %279 = vmatpush2.xpose.msra.mxu0 0.0
    %280 = vmatprep.subr.mxu0 0.0
    %281 = vmatpush2.xpose.msra.mxu0 0.0
    %282 = vmatprep.subr.mxu0 0.0
    %283 = vmatpush2.xpose.msra.mxu0 0.0
    %284 = vmatprep.subr.mxu0 0.0
    %285 = vmatpush2.xpose.msra.mxu0 0.0
    %286 = vmatprep.subr.mxu0 0.0
    %287 = vmatpush2.xpose.msra.mxu0 0.0
    %288 = vmatprep.subr.mxu0 0.0
    %289 = vmatpush2.xpose.msra.mxu0 0.0
    %290 = vmatprep.subr.mxu0 0.0
    %291 = vmatpush2.xpose.msra.mxu0 0.0
    %292 = vmatprep.subr.mxu0 0.0
    %293 = vmatpush2.xpose.msra.mxu0 0.0
    %294 = vmatprep.subr.mxu0 0.0
    %295 = vmatpush2.xpose.msra.mxu0 0.0
    %296 = vmatprep.subr.mxu0 0.0
    %297 = vmatpush2.xpose.msra.mxu0 0.0
    %298 = vmatprep.subr.mxu0 0.0
    %299 = vmatpush2.xpose.msra.mxu0 0.0
    %300 = vmatprep.subr.mxu0 0.0
    %301 = vmatpush2.xpose.msra.mxu0 0.0
    %302 = vmatprep.subr.mxu0 0.0
    %303 = vmatpush2.xpose.msra.mxu0 0.0
    %304 = vmatprep.subr.mxu0 0.0
    %305 = vmatpush2.xpose.msra.mxu0 0.0
    %306 = vmatprep.mubr.f32.mxu0 0.0
    %307 = vmatmul.mubr.f32.gmra.mxu0 %v233
    %v308 = vpop.f32.mrf.mxu0
    %v309 = vadd.f32 %v77, %v308
    %v310 = vpop.f32.mrf.mxu0
    %311 = vmatprep.mubr.f32.mxu0 0.0
    %312 = vmatmul.mubr.f32.gmra.mxu0 %v236
    %v313 = vpop.f32.mrf.mxu0
    %v314 = vadd.f32 %v78, %v313
    %v315 = vpop.f32.mrf.mxu0
    %316 = vdwg.mxu0
    %vm317 = vcmask 130048
    %v318 = vsel %vm317, %v309, -inf
    %319 = vmax.xlane.f32.xlu0 %v318
    %v320 = vpop.xlane.xlu0 %319
    %v321 = vsel %vm317, %v314, -inf
    %322 = vmax.xlane.f32.xlu0 %v321
    %v323 = vpop.xlane.xlu0 %322
    %v324 = vsub.f32 %v309, %v320
    %v325 = vsub.f32 %v314, %v323
    %v326 = vmul.f32 %v324, 1.442695
    %v327 = vpow.pop %v326
    %v328 = vmul.f32 %v325, 1.442695
    %v329 = vpow.pop %v328
    %v330 = vsel %vm317, %v327, 0.0
    %331 = vadd.xlane.f32.xlu0 %v330
    %v332 = vpop.xlane.xlu0 %331
    %v333 = vsel %vm317, %v329, 0.0
    %334 = vadd.xlane.f32.xlu0 %v333
    %v335 = vpop.xlane.xlu0 %334
    %v336 = vrcp.pop %v332
    %v337 = vrcp.pop %v335
    %v338 = vmul.f32 %v327, %v336
    %v339 = vmul.f32 %v329, %v337
    %340 = vrot.lane.b32.xlu0 %v222, 64
    %v341 = vpop.permute.xlu0 %340
    %v343 = vmul.f32 %v209, %v341
    %v344 = vmul.f32 %v214, %v341
    %s345 = scalar_lea.vmem %s2, 1
    %v346 = vld [vmem:[%s345] sm:$0x1]
    %v348 = vlaneseq
    %v349 = vshrl.u32 %v348, 7
    %v350 = vsub.s32 0, %v349
    %v351 = vrot.slane %v346, %v350
    %v353 = vmul.f32 %v209, %v351
    %v354 = vmul.f32 %v214, %v351
    %v356 = vsel %vm81, %v353, 0
    %v359 = vsel %vm81, %v354, 0
    %361 = vmatprep.subr.mxu0 0.0
    %362 = vmatpush1.xpose.msra.mxu0 0.0
    %363 = vmatprep.subr.mxu0 0.0
    %364 = vmatpush1.xpose.msra.mxu0 0.0
    %365 = vmatprep.subr.mxu0 0.0
    %366 = vmatpush1.xpose.msra.mxu0 0.0
    %367 = vmatprep.subr.mxu0 0.0
    %368 = vmatpush1.xpose.msra.mxu0 0.0
    %369 = vmatprep.subr.mxu0 0.0
    %370 = vmatpush1.xpose.msra.mxu0 0.0
    %371 = vmatprep.subr.mxu0 0.0
    %372 = vmatpush1.xpose.msra.mxu0 0.0
    %373 = vmatprep.subr.mxu0 0.0
    %374 = vmatpush1.xpose.msra.mxu0 0.0
    %375 = vmatprep.subr.mxu0 0.0
    %376 = vmatpush1.xpose.msra.mxu0 0.0
    %377 = vmatprep.subr.mxu0 0.0
    %378 = vmatpush1.xpose.msra.mxu0 0.0
    %379 = vmatprep.subr.mxu0 0.0
    %380 = vmatpush1.xpose.msra.mxu0 0.0
    %381 = vmatprep.subr.mxu0 0.0
    %382 = vmatpush1.xpose.msra.mxu0 0.0
    %383 = vmatprep.subr.mxu0 0.0
    %384 = vmatpush1.xpose.msra.mxu0 0.0
    %385 = vmatprep.subr.mxu0 0.0
    %386 = vmatpush1.xpose.msra.mxu0 0.0
    %387 = vmatprep.subr.mxu0 0.0
    %388 = vmatpush1.xpose.msra.mxu0 0.0
    %389 = vmatprep.subr.mxu0 0.0
    %390 = vmatpush1.xpose.msra.mxu0 %v240
    %391 = vmatprep.subr.mxu0 0.0
    %392 = vmatpush1.xpose.msra.mxu0 %v238
    %393 = vmatprep.subr.mxu0 0.0
    %394 = vmatpush2.xpose.msra.mxu0 0.0
    %395 = vmatprep.subr.mxu0 0.0
    %396 = vmatpush2.xpose.msra.mxu0 0.0
    %397 = vmatprep.subr.mxu0 0.0
    %398 = vmatpush2.xpose.msra.mxu0 0.0
    %399 = vmatprep.subr.mxu0 0.0
    %400 = vmatpush2.xpose.msra.mxu0 0.0
    %401 = vmatprep.subr.mxu0 0.0
    %402 = vmatpush2.xpose.msra.mxu0 0.0
    %403 = vmatprep.subr.mxu0 0.0
    %404 = vmatpush2.xpose.msra.mxu0 0.0
    %405 = vmatprep.subr.mxu0 0.0
    %406 = vmatpush2.xpose.msra.mxu0 0.0
    %407 = vmatprep.subr.mxu0 0.0
    %408 = vmatpush2.xpose.msra.mxu0 0.0
    %409 = vmatprep.subr.mxu0 0.0
    %410 = vmatpush2.xpose.msra.mxu0 0.0
    %411 = vmatprep.subr.mxu0 0.0
    %412 = vmatpush2.xpose.msra.mxu0 0.0
    %413 = vmatprep.subr.mxu0 0.0
    %414 = vmatpush2.xpose.msra.mxu0 0.0
    %415 = vmatprep.subr.mxu0 0.0
    %416 = vmatpush2.xpose.msra.mxu0 0.0
    %417 = vmatprep.subr.mxu0 0.0
    %418 = vmatpush2.xpose.msra.mxu0 0.0
    %419 = vmatprep.subr.mxu0 0.0
    %420 = vmatpush2.xpose.msra.mxu0 0.0
    %421 = vmatprep.subr.mxu0 0.0
    %422 = vmatpush2.xpose.msra.mxu0 0.0
    %423 = vmatprep.subr.mxu0 0.0
    %424 = vmatpush2.xpose.msra.mxu0 0.0
    %425 = vmatprep.mubr.f32.mxu0 0.0
    %426 = vmatmul.mubr.f32.gmra.mxu0 %v356
    %v427 = vpop.f32.mrf.mxu0
    %v428 = vadd.f32 %v77, %v427
    %v429 = vpop.f32.mrf.mxu0
    %430 = vmatprep.mubr.f32.mxu0 0.0
    %431 = vmatmul.mubr.f32.gmra.mxu0 %v359
    %v432 = vpop.f32.mrf.mxu0
    %v433 = vadd.f32 %v78, %v432
    %v434 = vpop.f32.mrf.mxu0
    %435 = vdwg.mxu0
    %v436 = vsel %vm317, %v428, -inf
    %437 = vmax.xlane.f32.xlu0 %v436
    %v438 = vpop.xlane.xlu0 %437
    %v439 = vsel %vm317, %v433, -inf
    %440 = vmax.xlane.f32.xlu0 %v439
    %v441 = vpop.xlane.xlu0 %440
    %v442 = vsub.f32 %v428, %v438
    %v443 = vsub.f32 %v433, %v441
    %v444 = vmul.f32 %v442, 1.442695
    %v445 = vpow.pop %v444
    %v446 = vmul.f32 %v443, 1.442695
    %v447 = vpow.pop %v446
    %v448 = vsel %vm317, %v445, 0.0
    %449 = vadd.xlane.f32.xlu0 %v448
    %v450 = vpop.xlane.xlu0 %449
    %v451 = vsel %vm317, %v447, 0.0
    %452 = vadd.xlane.f32.xlu0 %v451
    %v453 = vpop.xlane.xlu0 %452
    %v454 = vrcp.pop %v450
    %v455 = vrcp.pop %v453
    %v456 = vmul.f32 %v445, %v454
    %v457 = vmul.f32 %v447, %v455
    %458 = vrot.lane.b32.xlu0 %v351, 64
    %v459 = vpop.permute.xlu0 %458
    %v461 = vmul.f32 %v209, %v459
    %v462 = vmul.f32 %v214, %v459
    %465 = vrot.lane.b32.xlu0 %v461, 64
    %v466 = vpop.permute.xlu0 %465
    %467 = vrot.lane.b32.xlu0 %v462, 64
    %v468 = vpop.permute.xlu0 %467
    %v472 = vsel %vm317, %v456, 0
    %v475 = vsel %vm317, %v457, 0
    %477 = vmatprep.subr.mxu0 0.0
    %478 = vmatpush1.msra.mxu0 0.0
    %479 = vmatprep.subr.mxu0 0.0
    %480 = vmatpush1.msra.mxu0 0.0
    %481 = vmatprep.subr.mxu0 0.0
    %482 = vmatpush1.msra.mxu0 0.0
    %483 = vmatprep.subr.mxu0 0.0
    %484 = vmatpush1.msra.mxu0 0.0
    %485 = vmatprep.subr.mxu0 0.0
    %486 = vmatpush1.msra.mxu0 0.0
    %487 = vmatprep.subr.mxu0 0.0
    %488 = vmatpush1.msra.mxu0 0.0
    %489 = vmatprep.subr.mxu0 0.0
    %490 = vmatpush1.msra.mxu0 0.0
    %491 = vmatprep.subr.mxu0 0.0
    %492 = vmatpush1.msra.mxu0 0.0
    %493 = vmatprep.subr.mxu0 0.0
    %494 = vmatpush1.msra.mxu0 0.0
    %495 = vmatprep.subr.mxu0 0.0
    %496 = vmatpush1.msra.mxu0 0.0
    %497 = vmatprep.subr.mxu0 0.0
    %498 = vmatpush1.msra.mxu0 0.0
    %499 = vmatprep.subr.mxu0 0.0
    %500 = vmatpush1.msra.mxu0 0.0
    %501 = vmatprep.subr.mxu0 0.0
    %502 = vmatpush1.msra.mxu0 0.0
    %503 = vmatprep.subr.mxu0 0.0
    %504 = vmatpush1.msra.mxu0 0.0
    %505 = vmatprep.subr.mxu0 0.0
    %506 = vmatpush1.msra.mxu0 %v468
    %507 = vmatprep.subr.mxu0 0.0
    %508 = vmatpush1.msra.mxu0 %v466
    %509 = vmatprep.subr.mxu0 0.0
    %510 = vmatpush2.msra.mxu0 0.0
    %511 = vmatprep.subr.mxu0 0.0
    %512 = vmatpush2.msra.mxu0 0.0
    %513 = vmatprep.subr.mxu0 0.0
    %514 = vmatpush2.msra.mxu0 0.0
    %515 = vmatprep.subr.mxu0 0.0
    %516 = vmatpush2.msra.mxu0 0.0
    %517 = vmatprep.subr.mxu0 0.0
    %518 = vmatpush2.msra.mxu0 0.0
    %519 = vmatprep.subr.mxu0 0.0
    %520 = vmatpush2.msra.mxu0 0.0
    %521 = vmatprep.subr.mxu0 0.0
    %522 = vmatpush2.msra.mxu0 0.0
    %523 = vmatprep.subr.mxu0 0.0
    %524 = vmatpush2.msra.mxu0 0.0
    %525 = vmatprep.subr.mxu0 0.0
    %526 = vmatpush2.msra.mxu0 0.0
    %527 = vmatprep.subr.mxu0 0.0
    %528 = vmatpush2.msra.mxu0 0.0
    %529 = vmatprep.subr.mxu0 0.0
    %530 = vmatpush2.msra.mxu0 0.0
    %531 = vmatprep.subr.mxu0 0.0
    %532 = vmatpush2.msra.mxu0 0.0
    %533 = vmatprep.subr.mxu0 0.0
    %534 = vmatpush2.msra.mxu0 0.0
    %535 = vmatprep.subr.mxu0 0.0
    %536 = vmatpush2.msra.mxu0 0.0
    %537 = vmatprep.subr.mxu0 0.0
    %538 = vmatpush2.msra.mxu0 0.0
    %539 = vmatprep.subr.mxu0 0.0
    %540 = vmatpush2.msra.mxu0 0.0
    %541 = vmatprep.mubr.f32.mxu0 0.0
    %542 = vmatmul.mubr.f32.gmra.mxu0 %v472
    %v543 = vpop.f32.mrf.mxu0
    %v544 = vadd.f32 0.0, %v543
    %v545 = vpop.f32.mrf.mxu0
    %546 = vmatprep.mubr.f32.mxu0 0.0
    %547 = vmatmul.mubr.f32.gmra.mxu0 %v475
    %v548 = vpop.f32.mrf.mxu0
    %v549 = vadd.f32 0.0, %v548
    %v550 = vpop.f32.mrf.mxu0
    %551 = vdwg.mxu0
    %554 = vrot.lane.b32.xlu0 %v343, 64
    %v555 = vpop.permute.xlu0 %554
    %556 = vrot.lane.b32.xlu0 %v344, 64
    %v557 = vpop.permute.xlu0 %556
    %v561 = vsel %vm317, %v338, 0
    %v564 = vsel %vm317, %v339, 0
    %566 = vmatprep.subr.mxu0 0.0
    %567 = vmatpush1.msra.mxu0 0.0
    %568 = vmatprep.subr.mxu0 0.0
    %569 = vmatpush1.msra.mxu0 0.0
    %570 = vmatprep.subr.mxu0 0.0
    %571 = vmatpush1.msra.mxu0 0.0
    %572 = vmatprep.subr.mxu0 0.0
    %573 = vmatpush1.msra.mxu0 0.0
    %574 = vmatprep.subr.mxu0 0.0
    %575 = vmatpush1.msra.mxu0 0.0
    %576 = vmatprep.subr.mxu0 0.0
    %577 = vmatpush1.msra.mxu0 0.0
    %578 = vmatprep.subr.mxu0 0.0
    %579 = vmatpush1.msra.mxu0 0.0
    %580 = vmatprep.subr.mxu0 0.0
    %581 = vmatpush1.msra.mxu0 0.0
    %582 = vmatprep.subr.mxu0 0.0
    %583 = vmatpush1.msra.mxu0 0.0
    %584 = vmatprep.subr.mxu0 0.0
    %585 = vmatpush1.msra.mxu0 0.0
    %586 = vmatprep.subr.mxu0 0.0
    %587 = vmatpush1.msra.mxu0 0.0
    %588 = vmatprep.subr.mxu0 0.0
    %589 = vmatpush1.msra.mxu0 0.0
    %590 = vmatprep.subr.mxu0 0.0
    %591 = vmatpush1.msra.mxu0 0.0
    %592 = vmatprep.subr.mxu0 0.0
    %593 = vmatpush1.msra.mxu0 0.0
    %594 = vmatprep.subr.mxu0 0.0
    %595 = vmatpush1.msra.mxu0 %v557
    %596 = vmatprep.subr.mxu0 0.0
    %597 = vmatpush1.msra.mxu0 %v555
    %598 = vmatprep.subr.mxu0 0.0
    %599 = vmatpush2.msra.mxu0 0.0
    %600 = vmatprep.subr.mxu0 0.0
    %601 = vmatpush2.msra.mxu0 0.0
    %602 = vmatprep.subr.mxu0 0.0
    %603 = vmatpush2.msra.mxu0 0.0
    %604 = vmatprep.subr.mxu0 0.0
    %605 = vmatpush2.msra.mxu0 0.0
    %606 = vmatprep.subr.mxu0 0.0
    %607 = vmatpush2.msra.mxu0 0.0
    %608 = vmatprep.subr.mxu0 0.0
    %609 = vmatpush2.msra.mxu0 0.0
    %610 = vmatprep.subr.mxu0 0.0
    %611 = vmatpush2.msra.mxu0 0.0
    %612 = vmatprep.subr.mxu0 0.0
    %613 = vmatpush2.msra.mxu0 0.0
    %614 = vmatprep.subr.mxu0 0.0
    %615 = vmatpush2.msra.mxu0 0.0
    %616 = vmatprep.subr.mxu0 0.0
    %617 = vmatpush2.msra.mxu0 0.0
    %618 = vmatprep.subr.mxu0 0.0
    %619 = vmatpush2.msra.mxu0 0.0
    %620 = vmatprep.subr.mxu0 0.0
    %621 = vmatpush2.msra.mxu0 0.0
    %622 = vmatprep.subr.mxu0 0.0
    %623 = vmatpush2.msra.mxu0 0.0
    %624 = vmatprep.subr.mxu0 0.0
    %625 = vmatpush2.msra.mxu0 0.0
    %626 = vmatprep.subr.mxu0 0.0
    %627 = vmatpush2.msra.mxu0 0.0
    %628 = vmatprep.subr.mxu0 0.0
    %629 = vmatpush2.msra.mxu0 0.0
    %630 = vmatprep.mubr.f32.mxu0 0.0
    %631 = vmatmul.mubr.f32.gmra.mxu0 %v561
    %v632 = vpop.f32.mrf.mxu0
    %v633 = vadd.f32 %v544, %v632
    %v634 = vpop.f32.mrf.mxu0
    %635 = vmatprep.mubr.f32.mxu0 0.0
    %636 = vmatmul.mubr.f32.gmra.mxu0 %v564
    %v637 = vpop.f32.mrf.mxu0
    %v638 = vadd.f32 %v549, %v637
    %v639 = vpop.f32.mrf.mxu0
    %640 = vdwg.mxu0
    %v641 = vld [vmem:[%s7] sm:$0xff]
    %v642 = vld [vmem:[%s7 + $0x8] sm:$0xff]
    %v643 = vld [vmem:[%s7 + $0x10] sm:$0xff]
    %v644 = vld [vmem:[%s7 + $0x18] sm:$0xff]
    %v645 = vld [vmem:[%s8] sm:$0x1]
    %v647 = vlaneseq
    %v648 = vshrl.u32 %v647, 7
    %v649 = vsub.s32 0, %v648
    %v650 = vrot.slane %v645, %v649
    %v653 = vsel %vm81, %v633, 0
    %v656 = vsel %vm81, %v638, 0
    %658 = vmatprep.subr.mxu0 0.0
    %659 = vmatpush1.msra.mxu0 0.0
    %660 = vmatprep.subr.mxu0 0.0
    %661 = vmatpush1.msra.mxu0 0.0
    %662 = vmatprep.subr.mxu0 0.0
    %663 = vmatpush1.msra.mxu0 0.0
    %664 = vmatprep.subr.mxu0 0.0
    %665 = vmatpush1.msra.mxu0 0.0
    %666 = vmatprep.subr.mxu0 0.0
    %667 = vmatpush1.msra.mxu0 0.0
    %668 = vmatprep.subr.mxu0 0.0
    %669 = vmatpush1.msra.mxu0 0.0
    %670 = vmatprep.subr.mxu0 0.0
    %671 = vmatpush1.msra.mxu0 0.0
    %672 = vmatprep.subr.mxu0 0.0
    %673 = vmatpush1.msra.mxu0 0.0
    %674 = vmatprep.subr.mxu0 0.0
    %675 = vmatpush1.msra.mxu0 0.0
    %676 = vmatprep.subr.mxu0 0.0
    %677 = vmatpush1.msra.mxu0 0.0
    %678 = vmatprep.subr.mxu0 0.0
    %679 = vmatpush1.msra.mxu0 0.0
    %680 = vmatprep.subr.mxu0 0.0
    %681 = vmatpush1.msra.mxu0 0.0
    %682 = vmatprep.subr.mxu0 0.0
    %683 = vmatpush1.msra.mxu0 %v644
    %684 = vmatprep.subr.mxu0 0.0
    %685 = vmatpush1.msra.mxu0 %v643
    %686 = vmatprep.subr.mxu0 0.0
    %687 = vmatpush1.msra.mxu0 %v642
    %688 = vmatprep.subr.mxu0 0.0
    %689 = vmatpush1.msra.mxu0 %v641
    %690 = vmatprep.subr.mxu0 0.0
    %691 = vmatpush2.msra.mxu0 0.0
    %692 = vmatprep.subr.mxu0 0.0
    %693 = vmatpush2.msra.mxu0 0.0
    %694 = vmatprep.subr.mxu0 0.0
    %695 = vmatpush2.msra.mxu0 0.0
    %696 = vmatprep.subr.mxu0 0.0
    %697 = vmatpush2.msra.mxu0 0.0
    %698 = vmatprep.subr.mxu0 0.0
    %699 = vmatpush2.msra.mxu0 0.0
    %700 = vmatprep.subr.mxu0 0.0
    %701 = vmatpush2.msra.mxu0 0.0
    %702 = vmatprep.subr.mxu0 0.0
    %703 = vmatpush2.msra.mxu0 0.0
    %704 = vmatprep.subr.mxu0 0.0
    %705 = vmatpush2.msra.mxu0 0.0
    %706 = vmatprep.subr.mxu0 0.0
    %707 = vmatpush2.msra.mxu0 0.0
    %708 = vmatprep.subr.mxu0 0.0
    %709 = vmatpush2.msra.mxu0 0.0
    %710 = vmatprep.subr.mxu0 0.0
    %711 = vmatpush2.msra.mxu0 0.0
    %712 = vmatprep.subr.mxu0 0.0
    %713 = vmatpush2.msra.mxu0 0.0
    %714 = vmatprep.subr.mxu0 0.0
    %715 = vmatpush2.msra.mxu0 0.0
    %716 = vmatprep.subr.mxu0 0.0
    %717 = vmatpush2.msra.mxu0 0.0
    %718 = vmatprep.subr.mxu0 0.0
    %719 = vmatpush2.msra.mxu0 0.0
    %720 = vmatprep.subr.mxu0 0.0
    %721 = vmatpush2.msra.mxu0 0.0
    %722 = vmatprep.mubr.f32.mxu0 0.0
    %723 = vmatmul.mubr.f32.gmra.mxu0 %v653
    %v724 = vpop.f32.mrf.mxu0
    %v725 = vadd.f32 %v650, %v724
    %v726 = vpop.f32.mrf.mxu0
    %727 = vmatprep.mubr.f32.mxu0 0.0
    %728 = vmatmul.mubr.f32.gmra.mxu0 %v656
    %v729 = vpop.f32.mrf.mxu0
    %v730 = vadd.f32 %v650, %v729
    %v731 = vpop.f32.mrf.mxu0
    %732 = vdwg.mxu0
    %v733 = vld [vmem:[%s9] sm:$0xff]
    %v734 = vld [vmem:[%s9 + $0x8] sm:$0xff]
    %v735 = vld [vmem:[%s9 + $0x10] sm:$0xff]
    %v736 = vld [vmem:[%s9 + $0x18] sm:$0xff]
    %v737 = vld [vmem:[%s10] sm:$0x1]
    %v739 = vlaneseq
    %v740 = vshrl.u32 %v739, 7
    %v741 = vsub.s32 0, %v740
    %v742 = vrot.slane %v737, %v741
    %v745 = vsel %vm81, %v725, 0
    %v748 = vsel %vm81, %v730, 0
    %750 = vmatprep.subr.mxu0 0.0
    %751 = vmatpush1.msra.mxu0 0.0
    %752 = vmatprep.subr.mxu0 0.0
    %753 = vmatpush1.msra.mxu0 0.0
    %754 = vmatprep.subr.mxu0 0.0
    %755 = vmatpush1.msra.mxu0 0.0
    %756 = vmatprep.subr.mxu0 0.0
    %757 = vmatpush1.msra.mxu0 0.0
    %758 = vmatprep.subr.mxu0 0.0
    %759 = vmatpush1.msra.mxu0 0.0
    %760 = vmatprep.subr.mxu0 0.0
    %761 = vmatpush1.msra.mxu0 0.0
    %762 = vmatprep.subr.mxu0 0.0
    %763 = vmatpush1.msra.mxu0 0.0
    %764 = vmatprep.subr.mxu0 0.0
    %765 = vmatpush1.msra.mxu0 0.0
    %766 = vmatprep.subr.mxu0 0.0
    %767 = vmatpush1.msra.mxu0 0.0
    %768 = vmatprep.subr.mxu0 0.0
    %769 = vmatpush1.msra.mxu0 0.0
    %770 = vmatprep.subr.mxu0 0.0
    %771 = vmatpush1.msra.mxu0 0.0
    %772 = vmatprep.subr.mxu0 0.0
    %773 = vmatpush1.msra.mxu0 0.0
    %774 = vmatprep.subr.mxu0 0.0
    %775 = vmatpush1.msra.mxu0 %v736
    %776 = vmatprep.subr.mxu0 0.0
    %777 = vmatpush1.msra.mxu0 %v735
    %778 = vmatprep.subr.mxu0 0.0
    %779 = vmatpush1.msra.mxu0 %v734
    %780 = vmatprep.subr.mxu0 0.0
    %781 = vmatpush1.msra.mxu0 %v733
    %782 = vmatprep.subr.mxu0 0.0
    %783 = vmatpush2.msra.mxu0 0.0
    %784 = vmatprep.subr.mxu0 0.0
    %785 = vmatpush2.msra.mxu0 0.0
    %786 = vmatprep.subr.mxu0 0.0
    %787 = vmatpush2.msra.mxu0 0.0
    %788 = vmatprep.subr.mxu0 0.0
    %789 = vmatpush2.msra.mxu0 0.0
    %790 = vmatprep.subr.mxu0 0.0
    %791 = vmatpush2.msra.mxu0 0.0
    %792 = vmatprep.subr.mxu0 0.0
    %793 = vmatpush2.msra.mxu0 0.0
    %794 = vmatprep.subr.mxu0 0.0
    %795 = vmatpush2.msra.mxu0 0.0
    %796 = vmatprep.subr.mxu0 0.0
    %797 = vmatpush2.msra.mxu0 0.0
    %798 = vmatprep.subr.mxu0 0.0
    %799 = vmatpush2.msra.mxu0 0.0
    %800 = vmatprep.subr.mxu0 0.0
    %801 = vmatpush2.msra.mxu0 0.0
    %802 = vmatprep.subr.mxu0 0.0
    %803 = vmatpush2.msra.mxu0 0.0
    %804 = vmatprep.subr.mxu0 0.0
    %805 = vmatpush2.msra.mxu0 0.0
    %806 = vmatprep.subr.mxu0 0.0
    %807 = vmatpush2.msra.mxu0 0.0
    %808 = vmatprep.subr.mxu0 0.0
    %809 = vmatpush2.msra.mxu0 0.0
    %810 = vmatprep.subr.mxu0 0.0
    %811 = vmatpush2.msra.mxu0 0.0
    %812 = vmatprep.subr.mxu0 0.0
    %813 = vmatpush2.msra.mxu0 0.0
    %814 = vmatprep.mubr.f32.mxu0 0.0
    %815 = vmatmul.mubr.f32.gmra.mxu0 %v745
    %v816 = vpop.f32.mrf.mxu0
    %v817 = vadd.f32 %v742, %v816
    %v818 = vpop.f32.mrf.mxu0
    %819 = vmatprep.mubr.f32.mxu0 0.0
    %820 = vmatmul.mubr.f32.gmra.mxu0 %v748
    %v821 = vpop.f32.mrf.mxu0
    %v822 = vadd.f32 %v742, %v821
    %v823 = vpop.f32.mrf.mxu0
    %824 = vdwg.mxu0
    %v825 = vmul.f32 %v817, %v817
    %v826 = vmul.f32 %v822, %v822
    %v827 = vmul.f32 %v817, %v825
    %v828 = vmul.f32 %v822, %v826
    %v829 = vmul.f32 %v827, 0.044715
    %v830 = vmul.f32 %v828, 0.044715
    %v831 = vadd.f32 %v817, %v829
    %v832 = vadd.f32 %v822, %v830
    %v833 = vmul.f32 %v831, 0.7978846
    %v834 = vmul.f32 %v832, 0.7978846
    %v835 = vtanh.pop %v833
    %v836 = vtanh.pop %v834
    %v837 = vadd.f32 %v835, 1.0
    %v838 = vadd.f32 %v836, 1.0
    %v839 = vmul.f32 %v837, 0.5
    %v840 = vmul.f32 %v838, 0.5
    %v841 = vmul.f32 %v817, %v839
    %v842 = vmul.f32 %v822, %v840
    %v843 = vld [vmem:[%s11] sm:$0xff]
    %v844 = vld [vmem:[%s12] sm:$0x1]
    %v846 = vlaneseq
    %v847 = vshrl.u32 %v846, 7
    %v848 = vsub.s32 0, %v847
    %v849 = vrot.slane %v844, %v848
    %vm851 = vcmask 64512
    %v853 = vsel %vm851, %v841, 0
    %v856 = vsel %vm851, %v842, 0
    %858 = vmatprep.subr.mxu0 0.0
    %859 = vmatpush1.msra.mxu0 0.0
    %860 = vmatprep.subr.mxu0 0.0
    %861 = vmatpush1.msra.mxu0 0.0
    %862 = vmatprep.subr.mxu0 0.0
    %863 = vmatpush1.msra.mxu0 0.0
    %864 = vmatprep.subr.mxu0 0.0
    %865 = vmatpush1.msra.mxu0 0.0
    %866 = vmatprep.subr.mxu0 0.0
    %867 = vmatpush1.msra.mxu0 0.0
    %868 = vmatprep.subr.mxu0 0.0
    %869 = vmatpush1.msra.mxu0 0.0
    %870 = vmatprep.subr.mxu0 0.0
    %871 = vmatpush1.msra.mxu0 0.0
    %872 = vmatprep.subr.mxu0 0.0
    %873 = vmatpush1.msra.mxu0 0.0
    %874 = vmatprep.subr.mxu0 0.0
    %875 = vmatpush1.msra.mxu0 0.0
    %876 = vmatprep.subr.mxu0 0.0
    %877 = vmatpush1.msra.mxu0 0.0
    %878 = vmatprep.subr.mxu0 0.0
    %879 = vmatpush1.msra.mxu0 0.0
    %880 = vmatprep.subr.mxu0 0.0
    %881 = vmatpush1.msra.mxu0 0.0
    %882 = vmatprep.subr.mxu0 0.0
    %883 = vmatpush1.msra.mxu0 0.0
    %884 = vmatprep.subr.mxu0 0.0
    %885 = vmatpush1.msra.mxu0 0.0
    %886 = vmatprep.subr.mxu0 0.0
    %887 = vmatpush1.msra.mxu0 0.0
    %888 = vmatprep.subr.mxu0 0.0
    %889 = vmatpush1.msra.mxu0 %v843
    %890 = vmatprep.subr.mxu0 0.0
    %891 = vmatpush2.msra.mxu0 0.0
    %892 = vmatprep.subr.mxu0 0.0
    %893 = vmatpush2.msra.mxu0 0.0
    %894 = vmatprep.subr.mxu0 0.0
    %895 = vmatpush2.msra.mxu0 0.0
    %896 = vmatprep.subr.mxu0 0.0
    %897 = vmatpush2.msra.mxu0 0.0
    %898 = vmatprep.subr.mxu0 0.0
    %899 = vmatpush2.msra.mxu0 0.0
    %900 = vmatprep.subr.mxu0 0.0
    %901 = vmatpush2.msra.mxu0 0.0
    %902 = vmatprep.subr.mxu0 0.0
    %903 = vmatpush2.msra.mxu0 0.0
    %904 = vmatprep.subr.mxu0 0.0
    %905 = vmatpush2.msra.mxu0 0.0
    %906 = vmatprep.subr.mxu0 0.0
    %907 = vmatpush2.msra.mxu0 0.0
    %908 = vmatprep.subr.mxu0 0.0
    %909 = vmatpush2.msra.mxu0 0.0
    %910 = vmatprep.subr.mxu0 0.0
    %911 = vmatpush2.msra.mxu0 0.0
    %912 = vmatprep.subr.mxu0 0.0
    %913 = vmatpush2.msra.mxu0 0.0
    %914 = vmatprep.subr.mxu0 0.0
    %915 = vmatpush2.msra.mxu0 0.0
    %916 = vmatprep.subr.mxu0 0.0
    %917 = vmatpush2.msra.mxu0 0.0
    %918 = vmatprep.subr.mxu0 0.0
    %919 = vmatpush2.msra.mxu0 0.0
    %920 = vmatprep.subr.mxu0 0.0
    %921 = vmatpush2.msra.mxu0 0.0
    %922 = vmatprep.mubr.f32.mxu0 0.0
    %923 = vmatmul.mubr.f32.gmra.mxu0 %v853
    %v924 = vpop.f32.mrf.mxu0
    %v925 = vadd.f32 %v849, %v924
    %v926 = vpop.f32.mrf.mxu0
    %927 = vmatprep.mubr.f32.mxu0 0.0
    %928 = vmatmul.mubr.f32.gmra.mxu0 %v856
    %v929 = vpop.f32.mrf.mxu0
    %v930 = vadd.f32 %v849, %v929
    %v931 = vpop.f32.mrf.mxu0
    %932 = vdwg.mxu0
    %v933 = vadd.f32 %v925, %v725
    %v934 = vadd.f32 %v930, %v730
    %v935 = vadd.f32 %v933, %v75
    %v936 = vadd.f32 %v934, %v76
    %v937 = vld [vmem:[%s13] sm:$0x1]
    %v938 = vld [vmem:[%s14] sm:$0x1]
    %v939 = vsel %vm81, %v935, 0.0
    %940 = vadd.xlane.f32.xlu0 %v939
    %v941 = vpop.xlane.xlu0 %940
    %v942 = vsel %vm81, %v936, 0.0
    %943 = vadd.xlane.f32.xlu0 %v942
    %v944 = vpop.xlane.xlu0 %943
    %v945 = vmul.f32 %v941, %v88
    %v946 = vmul.f32 %v944, %v88
    %v947 = vsub.f32 %v935, %v945
    %v948 = vsub.f32 %v936, %v946
    %v949 = vmul.f32 %v947, %v947
    %v950 = vmul.f32 %v948, %v948
    %v951 = vsel %vm81, %v949, 0.0
    %952 = vadd.xlane.f32.xlu0 %v951
    %v953 = vpop.xlane.xlu0 %952
    %v954 = vsel %vm81, %v950, 0.0
    %955 = vadd.xlane.f32.xlu0 %v954
    %v956 = vpop.xlane.xlu0 %955
    %v957 = vmul.f32 %v953, %v88
    %v958 = vmul.f32 %v956, %v88
    %v959 = vadd.f32 %v957, 1e-12
    %v960 = vadd.f32 %v958, 1e-12
    %v961 = vrsqrt.pop %v959
    %v962 = vrsqrt.pop %v960
    %v963 = vmul.f32 %v947, %v961
    %v964 = vmul.f32 %v948, %v962
    %v966 = vlaneseq
    %v967 = vshrl.u32 %v966, 7
    %v968 = vsub.s32 0, %v967
    %v969 = vrot.slane %v937, %v968
    %v971 = vmul.f32 %v963, %v969
    %v972 = vmul.f32 %v964, %v969
    %v974 = vlaneseq
    %v975 = vshrl.u32 %v974, 7
    %v976 = vsub.s32 0, %v975
    %v977 = vrot.slane %v938, %v976
    %v979 = vadd.f32 %v971, %v977
    %v980 = vadd.f32 %v972, %v977
    %v981 = vld [vmem:[%s15] sm:$0xff]
    %v982 = vld [vmem:[%s15 + $0x8] sm:$0xff]
    %v983 = vld [vmem:[%s15 + $0x10] sm:$0xff]
    %v984 = vld [vmem:[%s15 + $0x18] sm:$0xff]
    %v985 = vld [vmem:[%s16] sm:$0x1]
    %v987 = vlaneseq
    %v988 = vshrl.u32 %v987, 7
    %v989 = vsub.s32 0, %v988
    %v990 = vrot.slane %v985, %v989
    %v993 = vsel %vm81, %v979, 0
    %v996 = vsel %vm81, %v980, 0
    %998 = vmatprep.subr.mxu0 0.0
    %999 = vmatpush1.msra.mxu0 0.0
    %1000 = vmatprep.subr.mxu0 0.0
    %1001 = vmatpush1.msra.mxu0 0.0
    %1002 = vmatprep.subr.mxu0 0.0
    %1003 = vmatpush1.msra.mxu0 0.0
    %1004 = vmatprep.subr.mxu0 0.0
    %1005 = vmatpush1.msra.mxu0 0.0
    %1006 = vmatprep.subr.mxu0 0.0
    %1007 = vmatpush1.msra.mxu0 0.0
    %1008 = vmatprep.subr.mxu0 0.0
    %1009 = vmatpush1.msra.mxu0 0.0
    %1010 = vmatprep.subr.mxu0 0.0
    %1011 = vmatpush1.msra.mxu0 0.0
    %1012 = vmatprep.subr.mxu0 0.0
    %1013 = vmatpush1.msra.mxu0 0.0
    %1014 = vmatprep.subr.mxu0 0.0
    %1015 = vmatpush1.msra.mxu0 0.0
    %1016 = vmatprep.subr.mxu0 0.0
    %1017 = vmatpush1.msra.mxu0 0.0
    %1018 = vmatprep.subr.mxu0 0.0
    %1019 = vmatpush1.msra.mxu0 0.0
    %1020 = vmatprep.subr.mxu0 0.0
    %1021 = vmatpush1.msra.mxu0 0.0
    %1022 = vmatprep.subr.mxu0 0.0
    %1023 = vmatpush1.msra.mxu0 %v984
    %1024 = vmatprep.subr.mxu0 0.0
    %1025 = vmatpush1.msra.mxu0 %v983
    %1026 = vmatprep.subr.mxu0 0.0
    %1027 = vmatpush1.msra.mxu0 %v982
    %1028 = vmatprep.subr.mxu0 0.0
    %1029 = vmatpush1.msra.mxu0 %v981
    %1030 = vmatprep.subr.mxu0 0.0
    %1031 = vmatpush2.msra.mxu0 0.0
    %1032 = vmatprep.subr.mxu0 0.0
    %1033 = vmatpush2.msra.mxu0 0.0
    %1034 = vmatprep.subr.mxu0 0.0
    %1035 = vmatpush2.msra.mxu0 0.0
    %1036 = vmatprep.subr.mxu0 0.0
    %1037 = vmatpush2.msra.mxu0 0.0
    %1038 = vmatprep.subr.mxu0 0.0
    %1039 = vmatpush2.msra.mxu0 0.0
    %1040 = vmatprep.subr.mxu0 0.0
    %1041 = vmatpush2.msra.mxu0 0.0
    %1042 = vmatprep.subr.mxu0 0.0
    %1043 = vmatpush2.msra.mxu0 0.0
    %1044 = vmatprep.subr.mxu0 0.0
    %1045 = vmatpush2.msra.mxu0 0.0
    %1046 = vmatprep.subr.mxu0 0.0
    %1047 = vmatpush2.msra.mxu0 0.0
    %1048 = vmatprep.subr.mxu0 0.0
    %1049 = vmatpush2.msra.mxu0 0.0
    %1050 = vmatprep.subr.mxu0 0.0
    %1051 = vmatpush2.msra.mxu0 0.0
    %1052 = vmatprep.subr.mxu0 0.0
    %1053 = vmatpush2.msra.mxu0 0.0
    %1054 = vmatprep.subr.mxu0 0.0
    %1055 = vmatpush2.msra.mxu0 0.0
    %1056 = vmatprep.subr.mxu0 0.0
    %1057 = vmatpush2.msra.mxu0 0.0
    %1058 = vmatprep.subr.mxu0 0.0
    %1059 = vmatpush2.msra.mxu0 0.0
    %1060 = vmatprep.subr.mxu0 0.0
    %1061 = vmatpush2.msra.mxu0 0.0
    %1062 = vmatprep.mubr.f32.mxu0 0.0
    %1063 = vmatmul.mubr.f32.gmra.mxu0 %v993
    %v1064 = vpop.f32.mrf.mxu0
    %v1065 = vadd.f32 %v990, %v1064
    %v1066 = vpop.f32.mrf.mxu0
    %1067 = vmatprep.mubr.f32.mxu0 0.0
    %1068 = vmatmul.mubr.f32.gmra.mxu0 %v996
    %v1069 = vpop.f32.mrf.mxu0
    %v1070 = vadd.f32 %v990, %v1069
    %v1071 = vpop.f32.mrf.mxu0
    %1072 = vdwg.mxu0
    %v1073 = vmul.f32 %v1065, %v1065
    %v1074 = vmul.f32 %v1070, %v1070
    %v1075 = vmul.f32 %v1065, %v1073
    %v1076 = vmul.f32 %v1070, %v1074
    %v1077 = vmul.f32 %v1075, 0.044715
    %v1078 = vmul.f32 %v1076, 0.044715
    %v1079 = vadd.f32 %v1065, %v1077
    %v1080 = vadd.f32 %v1070, %v1078
    %v1081 = vmul.f32 %v1079, 0.7978846
    %v1082 = vmul.f32 %v1080, 0.7978846
    %v1083 = vtanh.pop %v1081
    %v1084 = vtanh.pop %v1082
    %v1085 = vadd.f32 %v1083, 1.0
    %v1086 = vadd.f32 %v1084, 1.0
    %v1087 = vmul.f32 %v1085, 0.5
    %v1088 = vmul.f32 %v1086, 0.5
    %v1089 = vmul.f32 %v1065, %v1087
    %v1090 = vmul.f32 %v1070, %v1088
    %v1091 = vld [vmem:[%s17] sm:$0xff]
    %v1092 = vld [vmem:[%s17 + $0x8] sm:$0xff]
    %v1093 = vld [vmem:[%s17 + $0x10] sm:$0xff]
    %v1094 = vld [vmem:[%s17 + $0x18] sm:$0xff]
    %v1095 = vld [vmem:[%s17 + $0x20] sm:$0xff]
    %v1096 = vld [vmem:[%s17 + $0x28] sm:$0xff]
    %v1097 = vld [vmem:[%s17 + $0x30] sm:$0xff]
    %v1098 = vld [vmem:[%s17 + $0x38] sm:$0xff]
    %v1099 = vld [vmem:[%s18] sm:$0x1]
    %v1101 = vlaneseq
    %v1102 = vshrl.u32 %v1101, 7
    %v1103 = vsub.s32 0, %v1102
    %v1104 = vrot.slane %v1099, %v1103
    %vm1106 = vcmask 523264
    %v1108 = vsel %vm1106, %v1089, 0
    %v1111 = vsel %vm1106, %v1090, 0
    %1113 = vmatprep.subr.mxu0 0.0
    %1114 = vmatpush1.msra.mxu0 0.0
    %1115 = vmatprep.subr.mxu0 0.0
    %1116 = vmatpush1.msra.mxu0 0.0
    %1117 = vmatprep.subr.mxu0 0.0
    %1118 = vmatpush1.msra.mxu0 0.0
    %1119 = vmatprep.subr.mxu0 0.0
    %1120 = vmatpush1.msra.mxu0 0.0
    %1121 = vmatprep.subr.mxu0 0.0
    %1122 = vmatpush1.msra.mxu0 0.0
    %1123 = vmatprep.subr.mxu0 0.0
    %1124 = vmatpush1.msra.mxu0 0.0
    %1125 = vmatprep.subr.mxu0 0.0
    %1126 = vmatpush1.msra.mxu0 0.0
    %1127 = vmatprep.subr.mxu0 0.0
    %1128 = vmatpush1.msra.mxu0 0.0
    %1129 = vmatprep.subr.mxu0 0.0
    %1130 = vmatpush1.msra.mxu0 %v1098
    %1131 = vmatprep.subr.mxu0 0.0
    %1132 = vmatpush1.msra.mxu0 %v1097
    %1133 = vmatprep.subr.mxu0 0.0
    %1134 = vmatpush1.msra.mxu0 %v1096
    %1135 = vmatprep.subr.mxu0 0.0
    %1136 = vmatpush1.msra.mxu0 %v1095
    %1137 = vmatprep.subr.mxu0 0.0
    %1138 = vmatpush1.msra.mxu0 %v1094
    %1139 = vmatprep.subr.mxu0 0.0
    %1140 = vmatpush1.msra.mxu0 %v1093
    %1141 = vmatprep.subr.mxu0 0.0
    %1142 = vmatpush1.msra.mxu0 %v1092
    %1143 = vmatprep.subr.mxu0 0.0
    %1144 = vmatpush1.msra.mxu0 %v1091
    %1145 = vmatprep.subr.mxu0 0.0
    %1146 = vmatpush2.msra.mxu0 0.0
    %1147 = vmatprep.subr.mxu0 0.0
    %1148 = vmatpush2.msra.mxu0 0.0
    %1149 = vmatprep.subr.mxu0 0.0
    %1150 = vmatpush2.msra.mxu0 0.0
    %1151 = vmatprep.subr.mxu0 0.0
    %1152 = vmatpush2.msra.mxu0 0.0
    %1153 = vmatprep.subr.mxu0 0.0
    %1154 = vmatpush2.msra.mxu0 0.0
    %1155 = vmatprep.subr.mxu0 0.0
    %1156 = vmatpush2.msra.mxu0 0.0
    %1157 = vmatprep.subr.mxu0 0.0
    %1158 = vmatpush2.msra.mxu0 0.0
    %1159 = vmatprep.subr.mxu0 0.0
    %1160 = vmatpush2.msra.mxu0 0.0
    %1161 = vmatprep.subr.mxu0 0.0
    %1162 = vmatpush2.msra.mxu0 0.0
    %1163 = vmatprep.subr.mxu0 0.0
    %1164 = vmatpush2.msra.mxu0 0.0
    %1165 = vmatprep.subr.mxu0 0.0
    %1166 = vmatpush2.msra.mxu0 0.0
    %1167 = vmatprep.subr.mxu0 0.0
    %1168 = vmatpush2.msra.mxu0 0.0
    %1169 = vmatprep.subr.mxu0 0.0
    %1170 = vmatpush2.msra.mxu0 0.0
    %1171 = vmatprep.subr.mxu0 0.0
    %1172 = vmatpush2.msra.mxu0 0.0
    %1173 = vmatprep.subr.mxu0 0.0
    %1174 = vmatpush2.msra.mxu0 0.0
    %1175 = vmatprep.subr.mxu0 0.0
    %1176 = vmatpush2.msra.mxu0 0.0
    %1177 = vmatprep.mubr.f32.mxu0 0.0
    %1178 = vmatmul.mubr.f32.gmra.mxu0 %v1108
    %v1179 = vpop.f32.mrf.mxu0
    %v1180 = vadd.f32 %v1104, %v1179
    %v1181 = vpop.f32.mrf.mxu0
    %1182 = vmatprep.mubr.f32.mxu0 0.0
    %1183 = vmatmul.mubr.f32.gmra.mxu0 %v1111
    %v1184 = vpop.f32.mrf.mxu0
    %v1185 = vadd.f32 %v1104, %v1184
    %v1186 = vpop.f32.mrf.mxu0
    %1187 = vdwg.mxu0
    %v1188 = vld [vmem:[%s19] sm:$0xff]
    %v1189 = vld [vmem:[%s19 + $0x8] sm:$0xff]
    %v1190 = vld [vmem:[%s19 + $0x10] sm:$0xff]
    %v1191 = vld [vmem:[%s19 + $0x18] sm:$0xff]
    %v1192 = vld [vmem:[%s20] sm:$0x1]
    %v1194 = vlaneseq
    %v1195 = vshrl.u32 %v1194, 7
    %v1196 = vsub.s32 0, %v1195
    %v1197 = vrot.slane %v1192, %v1196
    %v1200 = vsel %vm81, %v1180, 0
    %v1203 = vsel %vm81, %v1185, 0
    %1205 = vmatprep.subr.mxu0 0.0
    %1206 = vmatpush1.msra.mxu0 0.0
    %1207 = vmatprep.subr.mxu0 0.0
    %1208 = vmatpush1.msra.mxu0 0.0
    %1209 = vmatprep.subr.mxu0 0.0
    %1210 = vmatpush1.msra.mxu0 0.0
    %1211 = vmatprep.subr.mxu0 0.0
    %1212 = vmatpush1.msra.mxu0 0.0
    %1213 = vmatprep.subr.mxu0 0.0
    %1214 = vmatpush1.msra.mxu0 0.0
    %1215 = vmatprep.subr.mxu0 0.0
    %1216 = vmatpush1.msra.mxu0 0.0
    %1217 = vmatprep.subr.mxu0 0.0
    %1218 = vmatpush1.msra.mxu0 0.0
    %1219 = vmatprep.subr.mxu0 0.0
    %1220 = vmatpush1.msra.mxu0 0.0
    %1221 = vmatprep.subr.mxu0 0.0
    %1222 = vmatpush1.msra.mxu0 0.0
    %1223 = vmatprep.subr.mxu0 0.0
    %1224 = vmatpush1.msra.mxu0 0.0
    %1225 = vmatprep.subr.mxu0 0.0
    %1226 = vmatpush1.msra.mxu0 0.0
    %1227 = vmatprep.subr.mxu0 0.0
    %1228 = vmatpush1.msra.mxu0 0.0
    %1229 = vmatprep.subr.mxu0 0.0
    %1230 = vmatpush1.msra.mxu0 %v1191
    %1231 = vmatprep.subr.mxu0 0.0
    %1232 = vmatpush1.msra.mxu0 %v1190
    %1233 = vmatprep.subr.mxu0 0.0
    %1234 = vmatpush1.msra.mxu0 %v1189
    %1235 = vmatprep.subr.mxu0 0.0
    %1236 = vmatpush1.msra.mxu0 %v1188
    %1237 = vmatprep.subr.mxu0 0.0
    %1238 = vmatpush2.msra.mxu0 0.0
    %1239 = vmatprep.subr.mxu0 0.0
    %1240 = vmatpush2.msra.mxu0 0.0
    %1241 = vmatprep.subr.mxu0 0.0
    %1242 = vmatpush2.msra.mxu0 0.0
    %1243 = vmatprep.subr.mxu0 0.0
    %1244 = vmatpush2.msra.mxu0 0.0
    %1245 = vmatprep.subr.mxu0 0.0
    %1246 = vmatpush2.msra.mxu0 0.0
    %1247 = vmatprep.subr.mxu0 0.0
    %1248 = vmatpush2.msra.mxu0 0.0
    %1249 = vmatprep.subr.mxu0 0.0
    %1250 = vmatpush2.msra.mxu0 0.0
    %1251 = vmatprep.subr.mxu0 0.0
    %1252 = vmatpush2.msra.mxu0 0.0
    %1253 = vmatprep.subr.mxu0 0.0
    %1254 = vmatpush2.msra.mxu0 0.0
    %1255 = vmatprep.subr.mxu0 0.0
    %1256 = vmatpush2.msra.mxu0 0.0
    %1257 = vmatprep.subr.mxu0 0.0
    %1258 = vmatpush2.msra.mxu0 0.0
    %1259 = vmatprep.subr.mxu0 0.0
    %1260 = vmatpush2.msra.mxu0 0.0
    %1261 = vmatprep.subr.mxu0 0.0
    %1262 = vmatpush2.msra.mxu0 0.0
    %1263 = vmatprep.subr.mxu0 0.0
    %1264 = vmatpush2.msra.mxu0 0.0
    %1265 = vmatprep.subr.mxu0 0.0
    %1266 = vmatpush2.msra.mxu0 0.0
    %1267 = vmatprep.subr.mxu0 0.0
    %1268 = vmatpush2.msra.mxu0 0.0
    %1269 = vmatprep.mubr.f32.mxu0 0.0
    %1270 = vmatmul.mubr.f32.gmra.mxu0 %v1200
    %v1271 = vpop.f32.mrf.mxu0
    %v1272 = vadd.f32 %v1197, %v1271
    %v1273 = vpop.f32.mrf.mxu0
    %1274 = vmatprep.mubr.f32.mxu0 0.0
    %1275 = vmatmul.mubr.f32.gmra.mxu0 %v1203
    %v1276 = vpop.f32.mrf.mxu0
    %v1277 = vadd.f32 %v1197, %v1276
    %v1278 = vpop.f32.mrf.mxu0
    %1279 = vdwg.mxu0
    %v1280 = vmul.f32 %v1272, %v1272
    %v1281 = vmul.f32 %v1277, %v1277
    %v1282 = vmul.f32 %v1272, %v1280
    %v1283 = vmul.f32 %v1277, %v1281
    %v1284 = vmul.f32 %v1282, 0.044715
    %v1285 = vmul.f32 %v1283, 0.044715
    %v1286 = vadd.f32 %v1272, %v1284
    %v1287 = vadd.f32 %v1277, %v1285
    %v1288 = vmul.f32 %v1286, 0.7978846
    %v1289 = vmul.f32 %v1287, 0.7978846
    %v1290 = vtanh.pop %v1288
    %v1291 = vtanh.pop %v1289
    %v1292 = vadd.f32 %v1290, 1.0
    %v1293 = vadd.f32 %v1291, 1.0
    %v1294 = vmul.f32 %v1292, 0.5
    %v1295 = vmul.f32 %v1293, 0.5
    %v1296 = vmul.f32 %v1272, %v1294
    %v1297 = vmul.f32 %v1277, %v1295
    %v1298 = vld [vmem:[%s21] sm:$0xff]
    %v1299 = vld [vmem:[%s22] sm:$0x1]
    %v1301 = vlaneseq
    %v1302 = vshrl.u32 %v1301, 7
    %v1303 = vsub.s32 0, %v1302
    %v1304 = vrot.slane %v1299, %v1303
    %v1307 = vsel %vm851, %v1296, 0
    %v1310 = vsel %vm851, %v1297, 0
    %1312 = vmatprep.subr.mxu0 0.0
    %1313 = vmatpush1.msra.mxu0 0.0
    %1314 = vmatprep.subr.mxu0 0.0
    %1315 = vmatpush1.msra.mxu0 0.0
    %1316 = vmatprep.subr.mxu0 0.0
    %1317 = vmatpush1.msra.mxu0 0.0
    %1318 = vmatprep.subr.mxu0 0.0
    %1319 = vmatpush1.msra.mxu0 0.0
    %1320 = vmatprep.subr.mxu0 0.0
    %1321 = vmatpush1.msra.mxu0 0.0
    %1322 = vmatprep.subr.mxu0 0.0
    %1323 = vmatpush1.msra.mxu0 0.0
    %1324 = vmatprep.subr.mxu0 0.0
    %1325 = vmatpush1.msra.mxu0 0.0
    %1326 = vmatprep.subr.mxu0 0.0
    %1327 = vmatpush1.msra.mxu0 0.0
    %1328 = vmatprep.subr.mxu0 0.0
    %1329 = vmatpush1.msra.mxu0 0.0
    %1330 = vmatprep.subr.mxu0 0.0
    %1331 = vmatpush1.msra.mxu0 0.0
    %1332 = vmatprep.subr.mxu0 0.0
    %1333 = vmatpush1.msra.mxu0 0.0
    %1334 = vmatprep.subr.mxu0 0.0
    %1335 = vmatpush1.msra.mxu0 0.0
    %1336 = vmatprep.subr.mxu0 0.0
    %1337 = vmatpush1.msra.mxu0 0.0
    %1338 = vmatprep.subr.mxu0 0.0
    %1339 = vmatpush1.msra.mxu0 0.0
    %1340 = vmatprep.subr.mxu0 0.0
    %1341 = vmatpush1.msra.mxu0 0.0
    %1342 = vmatprep.subr.mxu0 0.0
    %1343 = vmatpush1.msra.mxu0 %v1298
    %1344 = vmatprep.subr.mxu0 0.0
    %1345 = vmatpush2.msra.mxu0 0.0
    %1346 = vmatprep.subr.mxu0 0.0
    %1347 = vmatpush2.msra.mxu0 0.0
    %1348 = vmatprep.subr.mxu0 0.0
    %1349 = vmatpush2.msra.mxu0 0.0
    %1350 = vmatprep.subr.mxu0 0.0
    %1351 = vmatpush2.msra.mxu0 0.0
    %1352 = vmatprep.subr.mxu0 0.0
    %1353 = vmatpush2.msra.mxu0 0.0
    %1354 = vmatprep.subr.mxu0 0.0
    %1355 = vmatpush2.msra.mxu0 0.0
    %1356 = vmatprep.subr.mxu0 0.0
    %1357 = vmatpush2.msra.mxu0 0.0
    %1358 = vmatprep.subr.mxu0 0.0
    %1359 = vmatpush2.msra.mxu0 0.0
    %1360 = vmatprep.subr.mxu0 0.0
    %1361 = vmatpush2.msra.mxu0 0.0
    %1362 = vmatprep.subr.mxu0 0.0
    %1363 = vmatpush2.msra.mxu0 0.0
    %1364 = vmatprep.subr.mxu0 0.0
    %1365 = vmatpush2.msra.mxu0 0.0
    %1366 = vmatprep.subr.mxu0 0.0
    %1367 = vmatpush2.msra.mxu0 0.0
    %1368 = vmatprep.subr.mxu0 0.0
    %1369 = vmatpush2.msra.mxu0 0.0
    %1370 = vmatprep.subr.mxu0 0.0
    %1371 = vmatpush2.msra.mxu0 0.0
    %1372 = vmatprep.subr.mxu0 0.0
    %1373 = vmatpush2.msra.mxu0 0.0
    %1374 = vmatprep.subr.mxu0 0.0
    %1375 = vmatpush2.msra.mxu0 0.0
    %1376 = vmatprep.mubr.f32.mxu0 0.0
    %1377 = vmatmul.mubr.f32.gmra.mxu0 %v1307
    %v1378 = vpop.f32.mrf.mxu0
    %v1379 = vadd.f32 %v1304, %v1378
    %v1380 = vpop.f32.mrf.mxu0
    %1381 = vmatprep.mubr.f32.mxu0 0.0
    %1382 = vmatmul.mubr.f32.gmra.mxu0 %v1310
    %v1383 = vpop.f32.mrf.mxu0
    %v1384 = vadd.f32 %v1304, %v1383
    %v1385 = vpop.f32.mrf.mxu0
    %1386 = vdwg.mxu0
    %v1387 = vadd.f32 %v1379, %v1180
    %v1388 = vadd.f32 %v1384, %v1185
    %v1389 = vadd.f32 %v1387, %v935
    %v1390 = vadd.f32 %v1388, %v936
    %s1391 = scalar_lea.vmem %s3, 1
    %v1392 = vld [vmem:[%s1391] sm:$0x1]
    %s1393 = scalar_lea.vmem %s4, 1
    %v1394 = vld [vmem:[%s1393] sm:$0x1]
    %v1395 = vsel %vm81, %v1389, 0.0
    %1396 = vadd.xlane.f32.xlu0 %v1395
    %v1397 = vpop.xlane.xlu0 %1396
    %v1398 = vsel %vm81, %v1390, 0.0
    %1399 = vadd.xlane.f32.xlu0 %v1398
    %v1400 = vpop.xlane.xlu0 %1399
    %v1401 = vmul.f32 %v1397, %v88
    %v1402 = vmul.f32 %v1400, %v88
    %v1403 = vsub.f32 %v1389, %v1401
    %v1404 = vsub.f32 %v1390, %v1402
    %v1405 = vmul.f32 %v1403, %v1403
    %v1406 = vmul.f32 %v1404, %v1404
    %v1407 = vsel %vm81, %v1405, 0.0
    %1408 = vadd.xlane.f32.xlu0 %v1407
    %v1409 = vpop.xlane.xlu0 %1408
    %v1410 = vsel %vm81, %v1406, 0.0
    %1411 = vadd.xlane.f32.xlu0 %v1410
    %v1412 = vpop.xlane.xlu0 %1411
    %v1413 = vmul.f32 %v1409, %v88
    %v1414 = vmul.f32 %v1412, %v88
    %v1415 = vadd.f32 %v1413, 1e-12
    %v1416 = vadd.f32 %v1414, 1e-12
    %v1417 = vrsqrt.pop %v1415
    %v1418 = vrsqrt.pop %v1416
    %v1419 = vmul.f32 %v1403, %v1417
    %v1420 = vmul.f32 %v1404, %v1418
    %v1422 = vlaneseq
    %v1423 = vshrl.u32 %v1422, 7
    %v1424 = vsub.s32 0, %v1423
    %v1425 = vrot.slane %v1392, %v1424
    %v1427 = vmul.f32 %v1419, %v1425
    %v1428 = vmul.f32 %v1420, %v1425
    %v1430 = vlaneseq
    %v1431 = vshrl.u32 %v1430, 7
    %v1432 = vsub.s32 0, %v1431
    %v1433 = vrot.slane %v1394, %v1432
    %v1435 = vadd.f32 %v1427, %v1433
    %v1436 = vadd.f32 %v1428, %v1433
    %s1437 = scalar_lea.vmem %s5, 32
    %v1438 = vld [vmem:[%s1437] sm:$0xff]
    %v1439 = vld [vmem:[%s1437 + $0x8] sm:$0xff]
    %v1440 = vld [vmem:[%s1437 + $0x10] sm:$0xff]
    %v1441 = vld [vmem:[%s1437 + $0x18] sm:$0xff]
    %s1442 = scalar_lea.vmem %s6, 1
    %v1443 = vld [vmem:[%s1442] sm:$0x1]
    %v1445 = vlaneseq
    %v1446 = vshrl.u32 %v1445, 7
    %v1447 = vsub.s32 0, %v1446
    %v1448 = vrot.slane %v1443, %v1447
    %v1451 = vsel %vm81, %v1435, 0
    %v1454 = vsel %vm81, %v1436, 0
    %1456 = vmatprep.subr.mxu0 0.0
    %1457 = vmatpush1.msra.mxu0 0.0
    %1458 = vmatprep.subr.mxu0 0.0
    %1459 = vmatpush1.msra.mxu0 0.0
    %1460 = vmatprep.subr.mxu0 0.0
    %1461 = vmatpush1.msra.mxu0 0.0
    %1462 = vmatprep.subr.mxu0 0.0
    %1463 = vmatpush1.msra.mxu0 0.0
    %1464 = vmatprep.subr.mxu0 0.0
    %1465 = vmatpush1.msra.mxu0 0.0
    %1466 = vmatprep.subr.mxu0 0.0
    %1467 = vmatpush1.msra.mxu0 0.0
    %1468 = vmatprep.subr.mxu0 0.0
    %1469 = vmatpush1.msra.mxu0 0.0
    %1470 = vmatprep.subr.mxu0 0.0
    %1471 = vmatpush1.msra.mxu0 0.0
    %1472 = vmatprep.subr.mxu0 0.0
    %1473 = vmatpush1.msra.mxu0 0.0
    %1474 = vmatprep.subr.mxu0 0.0
    %1475 = vmatpush1.msra.mxu0 0.0
    %1476 = vmatprep.subr.mxu0 0.0
    %1477 = vmatpush1.msra.mxu0 0.0
    %1478 = vmatprep.subr.mxu0 0.0
    %1479 = vmatpush1.msra.mxu0 0.0
    %1480 = vmatprep.subr.mxu0 0.0
    %1481 = vmatpush1.msra.mxu0 %v1441
    %1482 = vmatprep.subr.mxu0 0.0
    %1483 = vmatpush1.msra.mxu0 %v1440
    %1484 = vmatprep.subr.mxu0 0.0
    %1485 = vmatpush1.msra.mxu0 %v1439
    %1486 = vmatprep.subr.mxu0 0.0
    %1487 = vmatpush1.msra.mxu0 %v1438
    %1488 = vmatprep.subr.mxu0 0.0
    %1489 = vmatpush2.msra.mxu0 0.0
    %1490 = vmatprep.subr.mxu0 0.0
    %1491 = vmatpush2.msra.mxu0 0.0
    %1492 = vmatprep.subr.mxu0 0.0
    %1493 = vmatpush2.msra.mxu0 0.0
    %1494 = vmatprep.subr.mxu0 0.0
    %1495 = vmatpush2.msra.mxu0 0.0
    %1496 = vmatprep.subr.mxu0 0.0
    %1497 = vmatpush2.msra.mxu0 0.0
    %1498 = vmatprep.subr.mxu0 0.0
    %1499 = vmatpush2.msra.mxu0 0.0
    %1500 = vmatprep.subr.mxu0 0.0
    %1501 = vmatpush2.msra.mxu0 0.0
    %1502 = vmatprep.subr.mxu0 0.0
    %1503 = vmatpush2.msra.mxu0 0.0
    %1504 = vmatprep.subr.mxu0 0.0
    %1505 = vmatpush2.msra.mxu0 0.0
    %1506 = vmatprep.subr.mxu0 0.0
    %1507 = vmatpush2.msra.mxu0 0.0
    %1508 = vmatprep.subr.mxu0 0.0
    %1509 = vmatpush2.msra.mxu0 0.0
    %1510 = vmatprep.subr.mxu0 0.0
    %1511 = vmatpush2.msra.mxu0 0.0
    %1512 = vmatprep.subr.mxu0 0.0
    %1513 = vmatpush2.msra.mxu0 0.0
    %1514 = vmatprep.subr.mxu0 0.0
    %1515 = vmatpush2.msra.mxu0 0.0
    %1516 = vmatprep.subr.mxu0 0.0
    %1517 = vmatpush2.msra.mxu0 0.0
    %1518 = vmatprep.subr.mxu0 0.0
    %1519 = vmatpush2.msra.mxu0 0.0
    %1520 = vmatprep.mubr.f32.mxu0 0.0
    %1521 = vmatmul.mubr.f32.gmra.mxu0 %v1451
    %v1522 = vpop.f32.mrf.mxu0
    %v1523 = vadd.f32 %v1448, %v1522
    %v1524 = vpop.f32.mrf.mxu0
    %1525 = vmatprep.mubr.f32.mxu0 0.0
    %1526 = vmatmul.mubr.f32.gmra.mxu0 %v1454
    %v1527 = vpop.f32.mrf.mxu0
    %v1528 = vadd.f32 %v1448, %v1527
    %v1529 = vpop.f32.mrf.mxu0
    %1530 = vdwg.mxu0
    %v1531 = vmul.f32 %v1523, %v222
    %v1532 = vmul.f32 %v1528, %v222
    %1535 = vrot.lane.b32.xlu0 %v1523, 96
    %v1536 = vpop.permute.xlu0 %1535
    %1537 = vrot.lane.b32.xlu0 %v1528, 96
    %v1538 = vpop.permute.xlu0 %1537
    %v1540 = vsel %vm81, %v1531, 0
    %v1543 = vsel %vm81, %v1532, 0
    %v1545 = vsel %vm81, %v1536, 0
    %v1547 = vsel %vm81, %v1538, 0
    %1549 = vmatprep.subr.mxu0 0.0
    %1550 = vmatpush1.xpose.msra.mxu0 0.0
    %1551 = vmatprep.subr.mxu0 0.0
    %1552 = vmatpush1.xpose.msra.mxu0 0.0
    %1553 = vmatprep.subr.mxu0 0.0
    %1554 = vmatpush1.xpose.msra.mxu0 0.0
    %1555 = vmatprep.subr.mxu0 0.0
    %1556 = vmatpush1.xpose.msra.mxu0 0.0
    %1557 = vmatprep.subr.mxu0 0.0
    %1558 = vmatpush1.xpose.msra.mxu0 0.0
    %1559 = vmatprep.subr.mxu0 0.0
    %1560 = vmatpush1.xpose.msra.mxu0 0.0
    %1561 = vmatprep.subr.mxu0 0.0
    %1562 = vmatpush1.xpose.msra.mxu0 0.0
    %1563 = vmatprep.subr.mxu0 0.0
    %1564 = vmatpush1.xpose.msra.mxu0 0.0
    %1565 = vmatprep.subr.mxu0 0.0
    %1566 = vmatpush1.xpose.msra.mxu0 0.0
    %1567 = vmatprep.subr.mxu0 0.0
    %1568 = vmatpush1.xpose.msra.mxu0 0.0
    %1569 = vmatprep.subr.mxu0 0.0
    %1570 = vmatpush1.xpose.msra.mxu0 0.0
    %1571 = vmatprep.subr.mxu0 0.0
    %1572 = vmatpush1.xpose.msra.mxu0 0.0
    %1573 = vmatprep.subr.mxu0 0.0
    %1574 = vmatpush1.xpose.msra.mxu0 0.0
    %1575 = vmatprep.subr.mxu0 0.0
    %1576 = vmatpush1.xpose.msra.mxu0 0.0
    %1577 = vmatprep.subr.mxu0 0.0
    %1578 = vmatpush1.xpose.msra.mxu0 %v1547
    %1579 = vmatprep.subr.mxu0 0.0
    %1580 = vmatpush1.xpose.msra.mxu0 %v1545
    %1581 = vmatprep.subr.mxu0 0.0
    %1582 = vmatpush2.xpose.msra.mxu0 0.0
    %1583 = vmatprep.subr.mxu0 0.0
    %1584 = vmatpush2.xpose.msra.mxu0 0.0
    %1585 = vmatprep.subr.mxu0 0.0
    %1586 = vmatpush2.xpose.msra.mxu0 0.0
    %1587 = vmatprep.subr.mxu0 0.0
    %1588 = vmatpush2.xpose.msra.mxu0 0.0
    %1589 = vmatprep.subr.mxu0 0.0
    %1590 = vmatpush2.xpose.msra.mxu0 0.0
    %1591 = vmatprep.subr.mxu0 0.0
    %1592 = vmatpush2.xpose.msra.mxu0 0.0
    %1593 = vmatprep.subr.mxu0 0.0
    %1594 = vmatpush2.xpose.msra.mxu0 0.0
    %1595 = vmatprep.subr.mxu0 0.0
    %1596 = vmatpush2.xpose.msra.mxu0 0.0
    %1597 = vmatprep.subr.mxu0 0.0
    %1598 = vmatpush2.xpose.msra.mxu0 0.0
    %1599 = vmatprep.subr.mxu0 0.0
    %1600 = vmatpush2.xpose.msra.mxu0 0.0
    %1601 = vmatprep.subr.mxu0 0.0
    %1602 = vmatpush2.xpose.msra.mxu0 0.0
    %1603 = vmatprep.subr.mxu0 0.0
    %1604 = vmatpush2.xpose.msra.mxu0 0.0
    %1605 = vmatprep.subr.mxu0 0.0
    %1606 = vmatpush2.xpose.msra.mxu0 0.0
    %1607 = vmatprep.subr.mxu0 0.0
    %1608 = vmatpush2.xpose.msra.mxu0 0.0
    %1609 = vmatprep.subr.mxu0 0.0
    %1610 = vmatpush2.xpose.msra.mxu0 0.0
    %1611 = vmatprep.subr.mxu0 0.0
    %1612 = vmatpush2.xpose.msra.mxu0 0.0
    %1613 = vmatprep.mubr.f32.mxu0 0.0
    %1614 = vmatmul.mubr.f32.gmra.mxu0 %v1540
    %v1615 = vpop.f32.mrf.mxu0
    %v1616 = vadd.f32 %v77, %v1615
    %v1617 = vpop.f32.mrf.mxu0
    %1618 = vmatprep.mubr.f32.mxu0 0.0
    %1619 = vmatmul.mubr.f32.gmra.mxu0 %v1543
    %v1620 = vpop.f32.mrf.mxu0
    %v1621 = vadd.f32 %v78, %v1620
    %v1622 = vpop.f32.mrf.mxu0
    %1623 = vdwg.mxu0
    %v1624 = vsel %vm317, %v1616, -inf
    %1625 = vmax.xlane.f32.xlu0 %v1624
    %v1626 = vpop.xlane.xlu0 %1625
    %v1627 = vsel %vm317, %v1621, -inf
    %1628 = vmax.xlane.f32.xlu0 %v1627
    %v1629 = vpop.xlane.xlu0 %1628
    %v1630 = vsub.f32 %v1616, %v1626
    %v1631 = vsub.f32 %v1621, %v1629
    %v1632 = vmul.f32 %v1630, 1.442695
    %v1633 = vpow.pop %v1632
    %v1634 = vmul.f32 %v1631, 1.442695
    %v1635 = vpow.pop %v1634
    %v1636 = vsel %vm317, %v1633, 0.0
    %1637 = vadd.xlane.f32.xlu0 %v1636
    %v1638 = vpop.xlane.xlu0 %1637
    %v1639 = vsel %vm317, %v1635, 0.0
    %1640 = vadd.xlane.f32.xlu0 %v1639
    %v1641 = vpop.xlane.xlu0 %1640
    %v1642 = vrcp.pop %v1638
    %v1643 = vrcp.pop %v1641
    %v1644 = vmul.f32 %v1633, %v1642
    %v1645 = vmul.f32 %v1635, %v1643
    %v1646 = vmul.f32 %v1523, %v341
    %v1647 = vmul.f32 %v1528, %v341
    %v1648 = vmul.f32 %v1523, %v351
    %v1649 = vmul.f32 %v1528, %v351
    %v1651 = vsel %vm81, %v1648, 0
    %v1654 = vsel %vm81, %v1649, 0
    %1656 = vmatprep.subr.mxu0 0.0
    %1657 = vmatpush1.xpose.msra.mxu0 0.0
    %1658 = vmatprep.subr.mxu0 0.0
    %1659 = vmatpush1.xpose.msra.mxu0 0.0
    %1660 = vmatprep.subr.mxu0 0.0
    %1661 = vmatpush1.xpose.msra.mxu0 0.0
    %1662 = vmatprep.subr.mxu0 0.0
    %1663 = vmatpush1.xpose.msra.mxu0 0.0
    %1664 = vmatprep.subr.mxu0 0.0
    %1665 = vmatpush1.xpose.msra.mxu0 0.0
    %1666 = vmatprep.subr.mxu0 0.0
    %1667 = vmatpush1.xpose.msra.mxu0 0.0
    %1668 = vmatprep.subr.mxu0 0.0
    %1669 = vmatpush1.xpose.msra.mxu0 0.0
    %1670 = vmatprep.subr.mxu0 0.0
    %1671 = vmatpush1.xpose.msra.mxu0 0.0
    %1672 = vmatprep.subr.mxu0 0.0
    %1673 = vmatpush1.xpose.msra.mxu0 0.0
    %1674 = vmatprep.subr.mxu0 0.0
    %1675 = vmatpush1.xpose.msra.mxu0 0.0
    %1676 = vmatprep.subr.mxu0 0.0
    %1677 = vmatpush1.xpose.msra.mxu0 0.0
    %1678 = vmatprep.subr.mxu0 0.0
    %1679 = vmatpush1.xpose.msra.mxu0 0.0
    %1680 = vmatprep.subr.mxu0 0.0
    %1681 = vmatpush1.xpose.msra.mxu0 0.0
    %1682 = vmatprep.subr.mxu0 0.0
    %1683 = vmatpush1.xpose.msra.mxu0 0.0
    %1684 = vmatprep.subr.mxu0 0.0
    %1685 = vmatpush1.xpose.msra.mxu0 %v1547
    %1686 = vmatprep.subr.mxu0 0.0
    %1687 = vmatpush1.xpose.msra.mxu0 %v1545
    %1688 = vmatprep.subr.mxu0 0.0
    %1689 = vmatpush2.xpose.msra.mxu0 0.0
    %1690 = vmatprep.subr.mxu0 0.0
    %1691 = vmatpush2.xpose.msra.mxu0 0.0
    %1692 = vmatprep.subr.mxu0 0.0
    %1693 = vmatpush2.xpose.msra.mxu0 0.0
    %1694 = vmatprep.subr.mxu0 0.0
    %1695 = vmatpush2.xpose.msra.mxu0 0.0
    %1696 = vmatprep.subr.mxu0 0.0
    %1697 = vmatpush2.xpose.msra.mxu0 0.0
    %1698 = vmatprep.subr.mxu0 0.0
    %1699 = vmatpush2.xpose.msra.mxu0 0.0
    %1700 = vmatprep.subr.mxu0 0.0
    %1701 = vmatpush2.xpose.msra.mxu0 0.0
    %1702 = vmatprep.subr.mxu0 0.0
    %1703 = vmatpush2.xpose.msra.mxu0 0.0
    %1704 = vmatprep.subr.mxu0 0.0
    %1705 = vmatpush2.xpose.msra.mxu0 0.0
    %1706 = vmatprep.subr.mxu0 0.0
    %1707 = vmatpush2.xpose.msra.mxu0 0.0
    %1708 = vmatprep.subr.mxu0 0.0
    %1709 = vmatpush2.xpose.msra.mxu0 0.0
    %1710 = vmatprep.subr.mxu0 0.0
    %1711 = vmatpush2.xpose.msra.mxu0 0.0
    %1712 = vmatprep.subr.mxu0 0.0
    %1713 = vmatpush2.xpose.msra.mxu0 0.0
    %1714 = vmatprep.subr.mxu0 0.0
    %1715 = vmatpush2.xpose.msra.mxu0 0.0
    %1716 = vmatprep.subr.mxu0 0.0
    %1717 = vmatpush2.xpose.msra.mxu0 0.0
    %1718 = vmatprep.subr.mxu0 0.0
    %1719 = vmatpush2.xpose.msra.mxu0 0.0
    %1720 = vmatprep.mubr.f32.mxu0 0.0
    %1721 = vmatmul.mubr.f32.gmra.mxu0 %v1651
    %v1722 = vpop.f32.mrf.mxu0
    %v1723 = vadd.f32 %v77, %v1722
    %v1724 = vpop.f32.mrf.mxu0
    %1725 = vmatprep.mubr.f32.mxu0 0.0
    %1726 = vmatmul.mubr.f32.gmra.mxu0 %v1654
    %v1727 = vpop.f32.mrf.mxu0
    %v1728 = vadd.f32 %v78, %v1727
    %v1729 = vpop.f32.mrf.mxu0
    %1730 = vdwg.mxu0
    %v1731 = vsel %vm317, %v1723, -inf
    %1732 = vmax.xlane.f32.xlu0 %v1731
    %v1733 = vpop.xlane.xlu0 %1732
    %v1734 = vsel %vm317, %v1728, -inf
    %1735 = vmax.xlane.f32.xlu0 %v1734
    %v1736 = vpop.xlane.xlu0 %1735
    %v1737 = vsub.f32 %v1723, %v1733
    %v1738 = vsub.f32 %v1728, %v1736
    %v1739 = vmul.f32 %v1737, 1.442695
    %v1740 = vpow.pop %v1739
    %v1741 = vmul.f32 %v1738, 1.442695
    %v1742 = vpow.pop %v1741
    %v1743 = vsel %vm317, %v1740, 0.0
    %1744 = vadd.xlane.f32.xlu0 %v1743
    %v1745 = vpop.xlane.xlu0 %1744
    %v1746 = vsel %vm317, %v1742, 0.0
    %1747 = vadd.xlane.f32.xlu0 %v1746
    %v1748 = vpop.xlane.xlu0 %1747
    %v1749 = vrcp.pop %v1745
    %v1750 = vrcp.pop %v1748
    %v1751 = vmul.f32 %v1740, %v1749
    %v1752 = vmul.f32 %v1742, %v1750
    %v1753 = vmul.f32 %v1523, %v459
    %v1754 = vmul.f32 %v1528, %v459
    %1757 = vrot.lane.b32.xlu0 %v1753, 64
    %v1758 = vpop.permute.xlu0 %1757
    %1759 = vrot.lane.b32.xlu0 %v1754, 64
    %v1760 = vpop.permute.xlu0 %1759
    %v1764 = vsel %vm317, %v1751, 0
    %v1767 = vsel %vm317, %v1752, 0
    %1769 = vmatprep.subr.mxu0 0.0
    %1770 = vmatpush1.msra.mxu0 0.0
    %1771 = vmatprep.subr.mxu0 0.0
    %1772 = vmatpush1.msra.mxu0 0.0
    %1773 = vmatprep.subr.mxu0 0.0
    %1774 = vmatpush1.msra.mxu0 0.0
    %1775 = vmatprep.subr.mxu0 0.0
    %1776 = vmatpush1.msra.mxu0 0.0
    %1777 = vmatprep.subr.mxu0 0.0
    %1778 = vmatpush1.msra.mxu0 0.0
    %1779 = vmatprep.subr.mxu0 0.0
    %1780 = vmatpush1.msra.mxu0 0.0
    %1781 = vmatprep.subr.mxu0 0.0
    %1782 = vmatpush1.msra.mxu0 0.0
    %1783 = vmatprep.subr.mxu0 0.0
    %1784 = vmatpush1.msra.mxu0 0.0
    %1785 = vmatprep.subr.mxu0 0.0
    %1786 = vmatpush1.msra.mxu0 0.0
    %1787 = vmatprep.subr.mxu0 0.0
    %1788 = vmatpush1.msra.mxu0 0.0
    %1789 = vmatprep.subr.mxu0 0.0
    %1790 = vmatpush1.msra.mxu0 0.0
    %1791 = vmatprep.subr.mxu0 0.0
    %1792 = vmatpush1.msra.mxu0 0.0
    %1793 = vmatprep.subr.mxu0 0.0
    %1794 = vmatpush1.msra.mxu0 0.0
    %1795 = vmatprep.subr.mxu0 0.0
    %1796 = vmatpush1.msra.mxu0 0.0
    %1797 = vmatprep.subr.mxu0 0.0
    %1798 = vmatpush1.msra.mxu0 %v1760
    %1799 = vmatprep.subr.mxu0 0.0
    %1800 = vmatpush1.msra.mxu0 %v1758
    %1801 = vmatprep.subr.mxu0 0.0
    %1802 = vmatpush2.msra.mxu0 0.0
    %1803 = vmatprep.subr.mxu0 0.0
    %1804 = vmatpush2.msra.mxu0 0.0
    %1805 = vmatprep.subr.mxu0 0.0
    %1806 = vmatpush2.msra.mxu0 0.0
    %1807 = vmatprep.subr.mxu0 0.0
    %1808 = vmatpush2.msra.mxu0 0.0
    %1809 = vmatprep.subr.mxu0 0.0
    %1810 = vmatpush2.msra.mxu0 0.0
    %1811 = vmatprep.subr.mxu0 0.0
    %1812 = vmatpush2.msra.mxu0 0.0
    %1813 = vmatprep.subr.mxu0 0.0
    %1814 = vmatpush2.msra.mxu0 0.0
    %1815 = vmatprep.subr.mxu0 0.0
    %1816 = vmatpush2.msra.mxu0 0.0
    %1817 = vmatprep.subr.mxu0 0.0
    %1818 = vmatpush2.msra.mxu0 0.0
    %1819 = vmatprep.subr.mxu0 0.0
    %1820 = vmatpush2.msra.mxu0 0.0
    %1821 = vmatprep.subr.mxu0 0.0
    %1822 = vmatpush2.msra.mxu0 0.0
    %1823 = vmatprep.subr.mxu0 0.0
    %1824 = vmatpush2.msra.mxu0 0.0
    %1825 = vmatprep.subr.mxu0 0.0
    %1826 = vmatpush2.msra.mxu0 0.0
    %1827 = vmatprep.subr.mxu0 0.0
    %1828 = vmatpush2.msra.mxu0 0.0
    %1829 = vmatprep.subr.mxu0 0.0
    %1830 = vmatpush2.msra.mxu0 0.0
    %1831 = vmatprep.subr.mxu0 0.0
    %1832 = vmatpush2.msra.mxu0 0.0
    %1833 = vmatprep.mubr.f32.mxu0 0.0
    %1834 = vmatmul.mubr.f32.gmra.mxu0 %v1764
    %v1835 = vpop.f32.mrf.mxu0
    %v1836 = vadd.f32 0.0, %v1835
    %v1837 = vpop.f32.mrf.mxu0
    %1838 = vmatprep.mubr.f32.mxu0 0.0
    %1839 = vmatmul.mubr.f32.gmra.mxu0 %v1767
    %v1840 = vpop.f32.mrf.mxu0
    %v1841 = vadd.f32 0.0, %v1840
    %v1842 = vpop.f32.mrf.mxu0
    %1843 = vdwg.mxu0
    %1846 = vrot.lane.b32.xlu0 %v1646, 64
    %v1847 = vpop.permute.xlu0 %1846
    %1848 = vrot.lane.b32.xlu0 %v1647, 64
    %v1849 = vpop.permute.xlu0 %1848
    %v1853 = vsel %vm317, %v1644, 0
    %v1856 = vsel %vm317, %v1645, 0
    %1858 = vmatprep.subr.mxu0 0.0
    %1859 = vmatpush1.msra.mxu0 0.0
    %1860 = vmatprep.subr.mxu0 0.0
    %1861 = vmatpush1.msra.mxu0 0.0
    %1862 = vmatprep.subr.mxu0 0.0
    %1863 = vmatpush1.msra.mxu0 0.0
    %1864 = vmatprep.subr.mxu0 0.0
    %1865 = vmatpush1.msra.mxu0 0.0
    %1866 = vmatprep.subr.mxu0 0.0
    %1867 = vmatpush1.msra.mxu0 0.0
    %1868 = vmatprep.subr.mxu0 0.0
    %1869 = vmatpush1.msra.mxu0 0.0
    %1870 = vmatprep.subr.mxu0 0.0
    %1871 = vmatpush1.msra.mxu0 0.0
    %1872 = vmatprep.subr.mxu0 0.0
    %1873 = vmatpush1.msra.mxu0 0.0
    %1874 = vmatprep.subr.mxu0 0.0
    %1875 = vmatpush1.msra.mxu0 0.0
    %1876 = vmatprep.subr.mxu0 0.0
    %1877 = vmatpush1.msra.mxu0 0.0
    %1878 = vmatprep.subr.mxu0 0.0
    %1879 = vmatpush1.msra.mxu0 0.0
    %1880 = vmatprep.subr.mxu0 0.0
    %1881 = vmatpush1.msra.mxu0 0.0
    %1882 = vmatprep.subr.mxu0 0.0
    %1883 = vmatpush1.msra.mxu0 0.0
    %1884 = vmatprep.subr.mxu0 0.0
    %1885 = vmatpush1.msra.mxu0 0.0
    %1886 = vmatprep.subr.mxu0 0.0
    %1887 = vmatpush1.msra.mxu0 %v1849
    %1888 = vmatprep.subr.mxu0 0.0
    %1889 = vmatpush1.msra.mxu0 %v1847
    %1890 = vmatprep.subr.mxu0 0.0
    %1891 = vmatpush2.msra.mxu0 0.0
    %1892 = vmatprep.subr.mxu0 0.0
    %1893 = vmatpush2.msra.mxu0 0.0
    %1894 = vmatprep.subr.mxu0 0.0
    %1895 = vmatpush2.msra.mxu0 0.0
    %1896 = vmatprep.subr.mxu0 0.0
    %1897 = vmatpush2.msra.mxu0 0.0
    %1898 = vmatprep.subr.mxu0 0.0
    %1899 = vmatpush2.msra.mxu0 0.0
    %1900 = vmatprep.subr.mxu0 0.0
    %1901 = vmatpush2.msra.mxu0 0.0
    %1902 = vmatprep.subr.mxu0 0.0
    %1903 = vmatpush2.msra.mxu0 0.0
    %1904 = vmatprep.subr.mxu0 0.0
    %1905 = vmatpush2.msra.mxu0 0.0
    %1906 = vmatprep.subr.mxu0 0.0
    %1907 = vmatpush2.msra.mxu0 0.0
    %1908 = vmatprep.subr.mxu0 0.0
    %1909 = vmatpush2.msra.mxu0 0.0
    %1910 = vmatprep.subr.mxu0 0.0
    %1911 = vmatpush2.msra.mxu0 0.0
    %1912 = vmatprep.subr.mxu0 0.0
    %1913 = vmatpush2.msra.mxu0 0.0
    %1914 = vmatprep.subr.mxu0 0.0
    %1915 = vmatpush2.msra.mxu0 0.0
    %1916 = vmatprep.subr.mxu0 0.0
    %1917 = vmatpush2.msra.mxu0 0.0
    %1918 = vmatprep.subr.mxu0 0.0
    %1919 = vmatpush2.msra.mxu0 0.0
    %1920 = vmatprep.subr.mxu0 0.0
    %1921 = vmatpush2.msra.mxu0 0.0
    %1922 = vmatprep.mubr.f32.mxu0 0.0
    %1923 = vmatmul.mubr.f32.gmra.mxu0 %v1853
    %v1924 = vpop.f32.mrf.mxu0
    %v1925 = vadd.f32 %v1836, %v1924
    %v1926 = vpop.f32.mrf.mxu0
    %1927 = vmatprep.mubr.f32.mxu0 0.0
    %1928 = vmatmul.mubr.f32.gmra.mxu0 %v1856
    %v1929 = vpop.f32.mrf.mxu0
    %v1930 = vadd.f32 %v1841, %v1929
    %v1931 = vpop.f32.mrf.mxu0
    %1932 = vdwg.mxu0
    %s1933 = scalar_lea.vmem %s7, 32
    %v1934 = vld [vmem:[%s1933] sm:$0xff]
    %v1935 = vld [vmem:[%s1933 + $0x8] sm:$0xff]
    %v1936 = vld [vmem:[%s1933 + $0x10] sm:$0xff]
    %v1937 = vld [vmem:[%s1933 + $0x18] sm:$0xff]
    %s1938 = scalar_lea.vmem %s8, 1
    %v1939 = vld [vmem:[%s1938] sm:$0x1]
    %v1941 = vlaneseq
    %v1942 = vshrl.u32 %v1941, 7
    %v1943 = vsub.s32 0, %v1942
    %v1944 = vrot.slane %v1939, %v1943
    %v1947 = vsel %vm81, %v1925, 0
    %v1950 = vsel %vm81, %v1930, 0
    %1952 = vmatprep.subr.mxu0 0.0
    %1953 = vmatpush1.msra.mxu0 0.0
    %1954 = vmatprep.subr.mxu0 0.0
    %1955 = vmatpush1.msra.mxu0 0.0
    %1956 = vmatprep.subr.mxu0 0.0
    %1957 = vmatpush1.msra.mxu0 0.0
    %1958 = vmatprep.subr.mxu0 0.0
    %1959 = vmatpush1.msra.mxu0 0.0
    %1960 = vmatprep.subr.mxu0 0.0
    %1961 = vmatpush1.msra.mxu0 0.0
    %1962 = vmatprep.subr.mxu0 0.0
    %1963 = vmatpush1.msra.mxu0 0.0
    %1964 = vmatprep.subr.mxu0 0.0
    %1965 = vmatpush1.msra.mxu0 0.0
    %1966 = vmatprep.subr.mxu0 0.0
    %1967 = vmatpush1.msra.mxu0 0.0
    %1968 = vmatprep.subr.mxu0 0.0
    %1969 = vmatpush1.msra.mxu0 0.0
    %1970 = vmatprep.subr.mxu0 0.0
    %1971 = vmatpush1.msra.mxu0 0.0
    %1972 = vmatprep.subr.mxu0 0.0
    %1973 = vmatpush1.msra.mxu0 0.0
    %1974 = vmatprep.subr.mxu0 0.0
    %1975 = vmatpush1.msra.mxu0 0.0
    %1976 = vmatprep.subr.mxu0 0.0
    %1977 = vmatpush1.msra.mxu0 %v1937
    %1978 = vmatprep.subr.mxu0 0.0
    %1979 = vmatpush1.msra.mxu0 %v1936
    %1980 = vmatprep.subr.mxu0 0.0
    %1981 = vmatpush1.msra.mxu0 %v1935
    %1982 = vmatprep.subr.mxu0 0.0
    %1983 = vmatpush1.msra.mxu0 %v1934
    %1984 = vmatprep.subr.mxu0 0.0
    %1985 = vmatpush2.msra.mxu0 0.0
    %1986 = vmatprep.subr.mxu0 0.0
    %1987 = vmatpush2.msra.mxu0 0.0
    %1988 = vmatprep.subr.mxu0 0.0
    %1989 = vmatpush2.msra.mxu0 0.0
    %1990 = vmatprep.subr.mxu0 0.0
    %1991 = vmatpush2.msra.mxu0 0.0
    %1992 = vmatprep.subr.mxu0 0.0
    %1993 = vmatpush2.msra.mxu0 0.0
    %1994 = vmatprep.subr.mxu0 0.0
    %1995 = vmatpush2.msra.mxu0 0.0
    %1996 = vmatprep.subr.mxu0 0.0
    %1997 = vmatpush2.msra.mxu0 0.0
    %1998 = vmatprep.subr.mxu0 0.0
    %1999 = vmatpush2.msra.mxu0 0.0
    %2000 = vmatprep.subr.mxu0 0.0
    %2001 = vmatpush2.msra.mxu0 0.0
    %2002 = vmatprep.subr.mxu0 0.0
    %2003 = vmatpush2.msra.mxu0 0.0
    %2004 = vmatprep.subr.mxu0 0.0
    %2005 = vmatpush2.msra.mxu0 0.0
    %2006 = vmatprep.subr.mxu0 0.0
    %2007 = vmatpush2.msra.mxu0 0.0
    %2008 = vmatprep.subr.mxu0 0.0
    %2009 = vmatpush2.msra.mxu0 0.0
    %2010 = vmatprep.subr.mxu0 0.0
    %2011 = vmatpush2.msra.mxu0 0.0
    %2012 = vmatprep.subr.mxu0 0.0
    %2013 = vmatpush2.msra.mxu0 0.0
    %2014 = vmatprep.subr.mxu0 0.0
    %2015 = vmatpush2.msra.mxu0 0.0
    %2016 = vmatprep.mubr.f32.mxu0 0.0
    %2017 = vmatmul.mubr.f32.gmra.mxu0 %v1947
    %v2018 = vpop.f32.mrf.mxu0
    %v2019 = vadd.f32 %v1944, %v2018
    %v2020 = vpop.f32.mrf.mxu0
    %2021 = vmatprep.mubr.f32.mxu0 0.0
    %2022 = vmatmul.mubr.f32.gmra.mxu0 %v1950
    %v2023 = vpop.f32.mrf.mxu0
    %v2024 = vadd.f32 %v1944, %v2023
    %v2025 = vpop.f32.mrf.mxu0
    %2026 = vdwg.mxu0
    %s2027 = scalar_lea.vmem %s9, 32
    %v2028 = vld [vmem:[%s2027] sm:$0xff]
    %v2029 = vld [vmem:[%s2027 + $0x8] sm:$0xff]
    %v2030 = vld [vmem:[%s2027 + $0x10] sm:$0xff]
    %v2031 = vld [vmem:[%s2027 + $0x18] sm:$0xff]
    %s2032 = scalar_lea.vmem %s10, 1
    %v2033 = vld [vmem:[%s2032] sm:$0x1]
    %v2035 = vlaneseq
    %v2036 = vshrl.u32 %v2035, 7
    %v2037 = vsub.s32 0, %v2036
    %v2038 = vrot.slane %v2033, %v2037
    %v2041 = vsel %vm81, %v2019, 0
    %v2044 = vsel %vm81, %v2024, 0
    %2046 = vmatprep.subr.mxu0 0.0
    %2047 = vmatpush1.msra.mxu0 0.0
    %2048 = vmatprep.subr.mxu0 0.0
    %2049 = vmatpush1.msra.mxu0 0.0
    %2050 = vmatprep.subr.mxu0 0.0
    %2051 = vmatpush1.msra.mxu0 0.0
    %2052 = vmatprep.subr.mxu0 0.0
    %2053 = vmatpush1.msra.mxu0 0.0
    %2054 = vmatprep.subr.mxu0 0.0
    %2055 = vmatpush1.msra.mxu0 0.0
    %2056 = vmatprep.subr.mxu0 0.0
    %2057 = vmatpush1.msra.mxu0 0.0
    %2058 = vmatprep.subr.mxu0 0.0
    %2059 = vmatpush1.msra.mxu0 0.0
    %2060 = vmatprep.subr.mxu0 0.0
    %2061 = vmatpush1.msra.mxu0 0.0
    %2062 = vmatprep.subr.mxu0 0.0
    %2063 = vmatpush1.msra.mxu0 0.0
    %2064 = vmatprep.subr.mxu0 0.0
    %2065 = vmatpush1.msra.mxu0 0.0
    %2066 = vmatprep.subr.mxu0 0.0
    %2067 = vmatpush1.msra.mxu0 0.0
    %2068 = vmatprep.subr.mxu0 0.0
    %2069 = vmatpush1.msra.mxu0 0.0
    %2070 = vmatprep.subr.mxu0 0.0
    %2071 = vmatpush1.msra.mxu0 %v2031
    %2072 = vmatprep.subr.mxu0 0.0
    %2073 = vmatpush1.msra.mxu0 %v2030
    %2074 = vmatprep.subr.mxu0 0.0
    %2075 = vmatpush1.msra.mxu0 %v2029
    %2076 = vmatprep.subr.mxu0 0.0
    %2077 = vmatpush1.msra.mxu0 %v2028
    %2078 = vmatprep.subr.mxu0 0.0
    %2079 = vmatpush2.msra.mxu0 0.0
    %2080 = vmatprep.subr.mxu0 0.0
    %2081 = vmatpush2.msra.mxu0 0.0
    %2082 = vmatprep.subr.mxu0 0.0
    %2083 = vmatpush2.msra.mxu0 0.0
    %2084 = vmatprep.subr.mxu0 0.0
    %2085 = vmatpush2.msra.mxu0 0.0
    %2086 = vmatprep.subr.mxu0 0.0
    %2087 = vmatpush2.msra.mxu0 0.0
    %2088 = vmatprep.subr.mxu0 0.0
    %2089 = vmatpush2.msra.mxu0 0.0
    %2090 = vmatprep.subr.mxu0 0.0
    %2091 = vmatpush2.msra.mxu0 0.0
    %2092 = vmatprep.subr.mxu0 0.0
    %2093 = vmatpush2.msra.mxu0 0.0
    %2094 = vmatprep.subr.mxu0 0.0
    %2095 = vmatpush2.msra.mxu0 0.0
    %2096 = vmatprep.subr.mxu0 0.0
    %2097 = vmatpush2.msra.mxu0 0.0
    %2098 = vmatprep.subr.mxu0 0.0
    %2099 = vmatpush2.msra.mxu0 0.0
    %2100 = vmatprep.subr.mxu0 0.0
    %2101 = vmatpush2.msra.mxu0 0.0
    %2102 = vmatprep.subr.mxu0 0.0
    %2103 = vmatpush2.msra.mxu0 0.0
    %2104 = vmatprep.subr.mxu0 0.0
    %2105 = vmatpush2.msra.mxu0 0.0
    %2106 = vmatprep.subr.mxu0 0.0
    %2107 = vmatpush2.msra.mxu0 0.0
    %2108 = vmatprep.subr.mxu0 0.0
    %2109 = vmatpush2.msra.mxu0 0.0
    %2110 = vmatprep.mubr.f32.mxu0 0.0
    %2111 = vmatmul.mubr.f32.gmra.mxu0 %v2041
    %v2112 = vpop.f32.mrf.mxu0
    %v2113 = vadd.f32 %v2038, %v2112
    %v2114 = vpop.f32.mrf.mxu0
    %2115 = vmatprep.mubr.f32.mxu0 0.0
    %2116 = vmatmul.mubr.f32.gmra.mxu0 %v2044
    %v2117 = vpop.f32.mrf.mxu0
    %v2118 = vadd.f32 %v2038, %v2117
    %v2119 = vpop.f32.mrf.mxu0
    %2120 = vdwg.mxu0
    %v2121 = vmul.f32 %v2113, %v2113
    %v2122 = vmul.f32 %v2118, %v2118
    %v2123 = vmul.f32 %v2113, %v2121
    %v2124 = vmul.f32 %v2118, %v2122
    %v2125 = vmul.f32 %v2123, 0.044715
    %v2126 = vmul.f32 %v2124, 0.044715
    %v2127 = vadd.f32 %v2113, %v2125
    %v2128 = vadd.f32 %v2118, %v2126
    %v2129 = vmul.f32 %v2127, 0.7978846
    %v2130 = vmul.f32 %v2128, 0.7978846
    %v2131 = vtanh.pop %v2129
    %v2132 = vtanh.pop %v2130
    %v2133 = vadd.f32 %v2131, 1.0
    %v2134 = vadd.f32 %v2132, 1.0
    %v2135 = vmul.f32 %v2133, 0.5
    %v2136 = vmul.f32 %v2134, 0.5
    %v2137 = vmul.f32 %v2113, %v2135
    %v2138 = vmul.f32 %v2118, %v2136
    %s2139 = scalar_lea.vmem %s11, 8
    %v2140 = vld [vmem:[%s2139] sm:$0xff]
    %s2141 = scalar_lea.vmem %s12, 1
    %v2142 = vld [vmem:[%s2141] sm:$0x1]
    %v2144 = vlaneseq
    %v2145 = vshrl.u32 %v2144, 7
    %v2146 = vsub.s32 0, %v2145
    %v2147 = vrot.slane %v2142, %v2146
    %v2150 = vsel %vm851, %v2137, 0
    %v2153 = vsel %vm851, %v2138, 0
    %2155 = vmatprep.subr.mxu0 0.0
    %2156 = vmatpush1.msra.mxu0 0.0
    %2157 = vmatprep.subr.mxu0 0.0
    %2158 = vmatpush1.msra.mxu0 0.0
    %2159 = vmatprep.subr.mxu0 0.0
    %2160 = vmatpush1.msra.mxu0 0.0
    %2161 = vmatprep.subr.mxu0 0.0
    %2162 = vmatpush1.msra.mxu0 0.0
    %2163 = vmatprep.subr.mxu0 0.0
    %2164 = vmatpush1.msra.mxu0 0.0
    %2165 = vmatprep.subr.mxu0 0.0
    %2166 = vmatpush1.msra.mxu0 0.0
    %2167 = vmatprep.subr.mxu0 0.0
    %2168 = vmatpush1.msra.mxu0 0.0
    %2169 = vmatprep.subr.mxu0 0.0
    %2170 = vmatpush1.msra.mxu0 0.0
    %2171 = vmatprep.subr.mxu0 0.0
    %2172 = vmatpush1.msra.mxu0 0.0
    %2173 = vmatprep.subr.mxu0 0.0
    %2174 = vmatpush1.msra.mxu0 0.0
    %2175 = vmatprep.subr.mxu0 0.0
    %2176 = vmatpush1.msra.mxu0 0.0
    %2177 = vmatprep.subr.mxu0 0.0
    %2178 = vmatpush1.msra.mxu0 0.0
    %2179 = vmatprep.subr.mxu0 0.0
    %2180 = vmatpush1.msra.mxu0 0.0
    %2181 = vmatprep.subr.mxu0 0.0
    %2182 = vmatpush1.msra.mxu0 0.0
    %2183 = vmatprep.subr.mxu0 0.0
    %2184 = vmatpush1.msra.mxu0 0.0
    %2185 = vmatprep.subr.mxu0 0.0
    %2186 = vmatpush1.msra.mxu0 %v2140
    %2187 = vmatprep.subr.mxu0 0.0
    %2188 = vmatpush2.msra.mxu0 0.0
    %2189 = vmatprep.subr.mxu0 0.0
    %2190 = vmatpush2.msra.mxu0 0.0
    %2191 = vmatprep.subr.mxu0 0.0
    %2192 = vmatpush2.msra.mxu0 0.0
    %2193 = vmatprep.subr.mxu0 0.0
    %2194 = vmatpush2.msra.mxu0 0.0
    %2195 = vmatprep.subr.mxu0 0.0
    %2196 = vmatpush2.msra.mxu0 0.0
    %2197 = vmatprep.subr.mxu0 0.0
    %2198 = vmatpush2.msra.mxu0 0.0
    %2199 = vmatprep.subr.mxu0 0.0
    %2200 = vmatpush2.msra.mxu0 0.0
    %2201 = vmatprep.subr.mxu0 0.0
    %2202 = vmatpush2.msra.mxu0 0.0
    %2203 = vmatprep.subr.mxu0 0.0
    %2204 = vmatpush2.msra.mxu0 0.0
    %2205 = vmatprep.subr.mxu0 0.0
    %2206 = vmatpush2.msra.mxu0 0.0
    %2207 = vmatprep.subr.mxu0 0.0
    %2208 = vmatpush2.msra.mxu0 0.0
    %2209 = vmatprep.subr.mxu0 0.0
    %2210 = vmatpush2.msra.mxu0 0.0
    %2211 = vmatprep.subr.mxu0 0.0
    %2212 = vmatpush2.msra.mxu0 0.0
    %2213 = vmatprep.subr.mxu0 0.0
    %2214 = vmatpush2.msra.mxu0 0.0
    %2215 = vmatprep.subr.mxu0 0.0
    %2216 = vmatpush2.msra.mxu0 0.0
    %2217 = vmatprep.subr.mxu0 0.0
    %2218 = vmatpush2.msra.mxu0 0.0
    %2219 = vmatprep.mubr.f32.mxu0 0.0
    %2220 = vmatmul.mubr.f32.gmra.mxu0 %v2150
    %v2221 = vpop.f32.mrf.mxu0
    %v2222 = vadd.f32 %v2147, %v2221
    %v2223 = vpop.f32.mrf.mxu0
    %2224 = vmatprep.mubr.f32.mxu0 0.0
    %2225 = vmatmul.mubr.f32.gmra.mxu0 %v2153
    %v2226 = vpop.f32.mrf.mxu0
    %v2227 = vadd.f32 %v2147, %v2226
    %v2228 = vpop.f32.mrf.mxu0
    %2229 = vdwg.mxu0
    %v2230 = vadd.f32 %v2222, %v2019
    %v2231 = vadd.f32 %v2227, %v2024
    %v2232 = vadd.f32 %v2230, %v1389
    %v2233 = vadd.f32 %v2231, %v1390
    %s2234 = scalar_lea.vmem %s13, 1
    %v2235 = vld [vmem:[%s2234] sm:$0x1]
    %s2236 = scalar_lea.vmem %s14, 1
    %v2237 = vld [vmem:[%s2236] sm:$0x1]
    %v2238 = vsel %vm81, %v2232, 0.0
    %2239 = vadd.xlane.f32.xlu0 %v2238
    %v2240 = vpop.xlane.xlu0 %2239
    %v2241 = vsel %vm81, %v2233, 0.0
    %2242 = vadd.xlane.f32.xlu0 %v2241
    %v2243 = vpop.xlane.xlu0 %2242
    %v2244 = vmul.f32 %v2240, %v88
    %v2245 = vmul.f32 %v2243, %v88
    %v2246 = vsub.f32 %v2232, %v2244
    %v2247 = vsub.f32 %v2233, %v2245
    %v2248 = vmul.f32 %v2246, %v2246
    %v2249 = vmul.f32 %v2247, %v2247
    %v2250 = vsel %vm81, %v2248, 0.0
    %2251 = vadd.xlane.f32.xlu0 %v2250
    %v2252 = vpop.xlane.xlu0 %2251
    %v2253 = vsel %vm81, %v2249, 0.0
    %2254 = vadd.xlane.f32.xlu0 %v2253
    %v2255 = vpop.xlane.xlu0 %2254
    %v2256 = vmul.f32 %v2252, %v88
    %v2257 = vmul.f32 %v2255, %v88
    %v2258 = vadd.f32 %v2256, 1e-12
    %v2259 = vadd.f32 %v2257, 1e-12
    %v2260 = vrsqrt.pop %v2258
    %v2261 = vrsqrt.pop %v2259
    %v2262 = vmul.f32 %v2246, %v2260
    %v2263 = vmul.f32 %v2247, %v2261
    %v2265 = vlaneseq
    %v2266 = vshrl.u32 %v2265, 7
    %v2267 = vsub.s32 0, %v2266
    %v2268 = vrot.slane %v2235, %v2267
    %v2270 = vmul.f32 %v2262, %v2268
    %v2271 = vmul.f32 %v2263, %v2268
    %v2273 = vlaneseq
    %v2274 = vshrl.u32 %v2273, 7
    %v2275 = vsub.s32 0, %v2274
    %v2276 = vrot.slane %v2237, %v2275
    %v2278 = vadd.f32 %v2270, %v2276
    %v2279 = vadd.f32 %v2271, %v2276
    %s2280 = scalar_lea.vmem %s15, 32
    %v2281 = vld [vmem:[%s2280] sm:$0xff]
    %v2282 = vld [vmem:[%s2280 + $0x8] sm:$0xff]
    %v2283 = vld [vmem:[%s2280 + $0x10] sm:$0xff]
    %v2284 = vld [vmem:[%s2280 + $0x18] sm:$0xff]
    %s2285 = scalar_lea.vmem %s16, 1
    %v2286 = vld [vmem:[%s2285] sm:$0x1]
    %v2288 = vlaneseq
    %v2289 = vshrl.u32 %v2288, 7
    %v2290 = vsub.s32 0, %v2289
    %v2291 = vrot.slane %v2286, %v2290
    %v2294 = vsel %vm81, %v2278, 0
    %v2297 = vsel %vm81, %v2279, 0
    %2299 = vmatprep.subr.mxu0 0.0
    %2300 = vmatpush1.msra.mxu0 0.0
    %2301 = vmatprep.subr.mxu0 0.0
    %2302 = vmatpush1.msra.mxu0 0.0
    %2303 = vmatprep.subr.mxu0 0.0
    %2304 = vmatpush1.msra.mxu0 0.0
    %2305 = vmatprep.subr.mxu0 0.0
    %2306 = vmatpush1.msra.mxu0 0.0
    %2307 = vmatprep.subr.mxu0 0.0
    %2308 = vmatpush1.msra.mxu0 0.0
    %2309 = vmatprep.subr.mxu0 0.0
    %2310 = vmatpush1.msra.mxu0 0.0
    %2311 = vmatprep.subr.mxu0 0.0
    %2312 = vmatpush1.msra.mxu0 0.0
    %2313 = vmatprep.subr.mxu0 0.0
    %2314 = vmatpush1.msra.mxu0 0.0
    %2315 = vmatprep.subr.mxu0 0.0
    %2316 = vmatpush1.msra.mxu0 0.0
    %2317 = vmatprep.subr.mxu0 0.0
    %2318 = vmatpush1.msra.mxu0 0.0
    %2319 = vmatprep.subr.mxu0 0.0
    %2320 = vmatpush1.msra.mxu0 0.0
    %2321 = vmatprep.subr.mxu0 0.0
    %2322 = vmatpush1.msra.mxu0 0.0
    %2323 = vmatprep.subr.mxu0 0.0
    %2324 = vmatpush1.msra.mxu0 %v2284
    %2325 = vmatprep.subr.mxu0 0.0
    %2326 = vmatpush1.msra.mxu0 %v2283
    %2327 = vmatprep.subr.mxu0 0.0
    %2328 = vmatpush1.msra.mxu0 %v2282
    %2329 = vmatprep.subr.mxu0 0.0
    %2330 = vmatpush1.msra.mxu0 %v2281
    %2331 = vmatprep.subr.mxu0 0.0
    %2332 = vmatpush2.msra.mxu0 0.0
    %2333 = vmatprep.subr.mxu0 0.0
    %2334 = vmatpush2.msra.mxu0 0.0
    %2335 = vmatprep.subr.mxu0 0.0
    %2336 = vmatpush2.msra.mxu0 0.0
    %2337 = vmatprep.subr.mxu0 0.0
    %2338 = vmatpush2.msra.mxu0 0.0
    %2339 = vmatprep.subr.mxu0 0.0
    %2340 = vmatpush2.msra.mxu0 0.0
    %2341 = vmatprep.subr.mxu0 0.0
    %2342 = vmatpush2.msra.mxu0 0.0
    %2343 = vmatprep.subr.mxu0 0.0
    %2344 = vmatpush2.msra.mxu0 0.0
    %2345 = vmatprep.subr.mxu0 0.0
    %2346 = vmatpush2.msra.mxu0 0.0
    %2347 = vmatprep.subr.mxu0 0.0
    %2348 = vmatpush2.msra.mxu0 0.0
    %2349 = vmatprep.subr.mxu0 0.0
    %2350 = vmatpush2.msra.mxu0 0.0
    %2351 = vmatprep.subr.mxu0 0.0
    %2352 = vmatpush2.msra.mxu0 0.0
    %2353 = vmatprep.subr.mxu0 0.0
    %2354 = vmatpush2.msra.mxu0 0.0
    %2355 = vmatprep.subr.mxu0 0.0
    %2356 = vmatpush2.msra.mxu0 0.0
    %2357 = vmatprep.subr.mxu0 0.0
    %2358 = vmatpush2.msra.mxu0 0.0
    %2359 = vmatprep.subr.mxu0 0.0
    %2360 = vmatpush2.msra.mxu0 0.0
    %2361 = vmatprep.subr.mxu0 0.0
    %2362 = vmatpush2.msra.mxu0 0.0
    %2363 = vmatprep.mubr.f32.mxu0 0.0
    %2364 = vmatmul.mubr.f32.gmra.mxu0 %v2294
    %v2365 = vpop.f32.mrf.mxu0
    %v2366 = vadd.f32 %v2291, %v2365
    %v2367 = vpop.f32.mrf.mxu0
    %2368 = vmatprep.mubr.f32.mxu0 0.0
    %2369 = vmatmul.mubr.f32.gmra.mxu0 %v2297
    %v2370 = vpop.f32.mrf.mxu0
    %v2371 = vadd.f32 %v2291, %v2370
    %v2372 = vpop.f32.mrf.mxu0
    %2373 = vdwg.mxu0
    %v2374 = vmul.f32 %v2366, %v2366
    %v2375 = vmul.f32 %v2371, %v2371
    %v2376 = vmul.f32 %v2366, %v2374
    %v2377 = vmul.f32 %v2371, %v2375
    %v2378 = vmul.f32 %v2376, 0.044715
    %v2379 = vmul.f32 %v2377, 0.044715
    %v2380 = vadd.f32 %v2366, %v2378
    %v2381 = vadd.f32 %v2371, %v2379
    %v2382 = vmul.f32 %v2380, 0.7978846
    %v2383 = vmul.f32 %v2381, 0.7978846
    %v2384 = vtanh.pop %v2382
    %v2385 = vtanh.pop %v2383
    %v2386 = vadd.f32 %v2384, 1.0
    %v2387 = vadd.f32 %v2385, 1.0
    %v2388 = vmul.f32 %v2386, 0.5
    %v2389 = vmul.f32 %v2387, 0.5
    %v2390 = vmul.f32 %v2366, %v2388
    %v2391 = vmul.f32 %v2371, %v2389
    %s2392 = scalar_lea.vmem %s17, 64
    %v2393 = vld [vmem:[%s2392] sm:$0xff]
    %v2394 = vld [vmem:[%s2392 + $0x8] sm:$0xff]
    %v2395 = vld [vmem:[%s2392 + $0x10] sm:$0xff]
    %v2396 = vld [vmem:[%s2392 + $0x18] sm:$0xff]
    %v2397 = vld [vmem:[%s2392 + $0x20] sm:$0xff]
    %v2398 = vld [vmem:[%s2392 + $0x28] sm:$0xff]
    %v2399 = vld [vmem:[%s2392 + $0x30] sm:$0xff]
    %v2400 = vld [vmem:[%s2392 + $0x38] sm:$0xff]
    %s2401 = scalar_lea.vmem %s18, 1
    %v2402 = vld [vmem:[%s2401] sm:$0x1]
    %v2404 = vlaneseq
    %v2405 = vshrl.u32 %v2404, 7
    %v2406 = vsub.s32 0, %v2405
    %v2407 = vrot.slane %v2402, %v2406
    %v2410 = vsel %vm1106, %v2390, 0
    %v2413 = vsel %vm1106, %v2391, 0
    %2415 = vmatprep.subr.mxu0 0.0
    %2416 = vmatpush1.msra.mxu0 0.0
    %2417 = vmatprep.subr.mxu0 0.0
    %2418 = vmatpush1.msra.mxu0 0.0
    %2419 = vmatprep.subr.mxu0 0.0
    %2420 = vmatpush1.msra.mxu0 0.0
    %2421 = vmatprep.subr.mxu0 0.0
    %2422 = vmatpush1.msra.mxu0 0.0
    %2423 = vmatprep.subr.mxu0 0.0
    %2424 = vmatpush1.msra.mxu0 0.0
    %2425 = vmatprep.subr.mxu0 0.0
    %2426 = vmatpush1.msra.mxu0 0.0
    %2427 = vmatprep.subr.mxu0 0.0
    %2428 = vmatpush1.msra.mxu0 0.0
    %2429 = vmatprep.subr.mxu0 0.0
    %2430 = vmatpush1.msra.mxu0 0.0
    %2431 = vmatprep.subr.mxu0 0.0
    %2432 = vmatpush1.msra.mxu0 %v2400
    %2433 = vmatprep.subr.mxu0 0.0
    %2434 = vmatpush1.msra.mxu0 %v2399
    %2435 = vmatprep.subr.mxu0 0.0
    %2436 = vmatpush1.msra.mxu0 %v2398
    %2437 = vmatprep.subr.mxu0 0.0
    %2438 = vmatpush1.msra.mxu0 %v2397
    %2439 = vmatprep.subr.mxu0 0.0
    %2440 = vmatpush1.msra.mxu0 %v2396
    %2441 = vmatprep.subr.mxu0 0.0
    %2442 = vmatpush1.msra.mxu0 %v2395
    %2443 = vmatprep.subr.mxu0 0.0
    %2444 = vmatpush1.msra.mxu0 %v2394
    %2445 = vmatprep.subr.mxu0 0.0
    %2446 = vmatpush1.msra.mxu0 %v2393
    %2447 = vmatprep.subr.mxu0 0.0
    %2448 = vmatpush2.msra.mxu0 0.0
    %2449 = vmatprep.subr.mxu0 0.0
    %2450 = vmatpush2.msra.mxu0 0.0
    %2451 = vmatprep.subr.mxu0 0.0
    %2452 = vmatpush2.msra.mxu0 0.0
    %2453 = vmatprep.subr.mxu0 0.0
    %2454 = vmatpush2.msra.mxu0 0.0
    %2455 = vmatprep.subr.mxu0 0.0
    %2456 = vmatpush2.msra.mxu0 0.0
    %2457 = vmatprep.subr.mxu0 0.0
    %2458 = vmatpush2.msra.mxu0 0.0
    %2459 = vmatprep.subr.mxu0 0.0
    %2460 = vmatpush2.msra.mxu0 0.0
    %2461 = vmatprep.subr.mxu0 0.0
    %2462 = vmatpush2.msra.mxu0 0.0
    %2463 = vmatprep.subr.mxu0 0.0
    %2464 = vmatpush2.msra.mxu0 0.0
    %2465 = vmatprep.subr.mxu0 0.0
    %2466 = vmatpush2.msra.mxu0 0.0
    %2467 = vmatprep.subr.mxu0 0.0
    %2468 = vmatpush2.msra.mxu0 0.0
    %2469 = vmatprep.subr.mxu0 0.0
    %2470 = vmatpush2.msra.mxu0 0.0
    %2471 = vmatprep.subr.mxu0 0.0
    %2472 = vmatpush2.msra.mxu0 0.0
    %2473 = vmatprep.subr.mxu0 0.0
    %2474 = vmatpush2.msra.mxu0 0.0
    %2475 = vmatprep.subr.mxu0 0.0
    %2476 = vmatpush2.msra.mxu0 0.0
    %2477 = vmatprep.subr.mxu0 0.0
    %2478 = vmatpush2.msra.mxu0 0.0
    %2479 = vmatprep.mubr.f32.mxu0 0.0
    %2480 = vmatmul.mubr.f32.gmra.mxu0 %v2410
    %v2481 = vpop.f32.mrf.mxu0
    %v2482 = vadd.f32 %v2407, %v2481
    %v2483 = vpop.f32.mrf.mxu0
    %2484 = vmatprep.mubr.f32.mxu0 0.0
    %2485 = vmatmul.mubr.f32.gmra.mxu0 %v2413
    %v2486 = vpop.f32.mrf.mxu0
    %v2487 = vadd.f32 %v2407, %v2486
    %v2488 = vpop.f32.mrf.mxu0
    %2489 = vdwg.mxu0
    %s2490 = scalar_lea.vmem %s19, 32
    %v2491 = vld [vmem:[%s2490] sm:$0xff]
    %v2492 = vld [vmem:[%s2490 + $0x8] sm:$0xff]
    %v2493 = vld [vmem:[%s2490 + $0x10] sm:$0xff]
    %v2494 = vld [vmem:[%s2490 + $0x18] sm:$0xff]
    %s2495 = scalar_lea.vmem %s20, 1
    %v2496 = vld [vmem:[%s2495] sm:$0x1]
    %v2498 = vlaneseq
    %v2499 = vshrl.u32 %v2498, 7
    %v2500 = vsub.s32 0, %v2499
    %v2501 = vrot.slane %v2496, %v2500
    %v2504 = vsel %vm81, %v2482, 0
    %v2507 = vsel %vm81, %v2487, 0
    %2509 = vmatprep.subr.mxu0 0.0
    %2510 = vmatpush1.msra.mxu0 0.0
    %2511 = vmatprep.subr.mxu0 0.0
    %2512 = vmatpush1.msra.mxu0 0.0
    %2513 = vmatprep.subr.mxu0 0.0
    %2514 = vmatpush1.msra.mxu0 0.0
    %2515 = vmatprep.subr.mxu0 0.0
    %2516 = vmatpush1.msra.mxu0 0.0
    %2517 = vmatprep.subr.mxu0 0.0
    %2518 = vmatpush1.msra.mxu0 0.0
    %2519 = vmatprep.subr.mxu0 0.0
    %2520 = vmatpush1.msra.mxu0 0.0
    %2521 = vmatprep.subr.mxu0 0.0
    %2522 = vmatpush1.msra.mxu0 0.0
    %2523 = vmatprep.subr.mxu0 0.0
    %2524 = vmatpush1.msra.mxu0 0.0
    %2525 = vmatprep.subr.mxu0 0.0
    %2526 = vmatpush1.msra.mxu0 0.0
    %2527 = vmatprep.subr.mxu0 0.0
    %2528 = vmatpush1.msra.mxu0 0.0
    %2529 = vmatprep.subr.mxu0 0.0
    %2530 = vmatpush1.msra.mxu0 0.0
    %2531 = vmatprep.subr.mxu0 0.0
    %2532 = vmatpush1.msra.mxu0 0.0
    %2533 = vmatprep.subr.mxu0 0.0
    %2534 = vmatpush1.msra.mxu0 %v2494
    %2535 = vmatprep.subr.mxu0 0.0
    %2536 = vmatpush1.msra.mxu0 %v2493
    %2537 = vmatprep.subr.mxu0 0.0
    %2538 = vmatpush1.msra.mxu0 %v2492
    %2539 = vmatprep.subr.mxu0 0.0
    %2540 = vmatpush1.msra.mxu0 %v2491
    %2541 = vmatprep.subr.mxu0 0.0
    %2542 = vmatpush2.msra.mxu0 0.0
    %2543 = vmatprep.subr.mxu0 0.0
    %2544 = vmatpush2.msra.mxu0 0.0
    %2545 = vmatprep.subr.mxu0 0.0
    %2546 = vmatpush2.msra.mxu0 0.0
    %2547 = vmatprep.subr.mxu0 0.0
    %2548 = vmatpush2.msra.mxu0 0.0
    %2549 = vmatprep.subr.mxu0 0.0
    %2550 = vmatpush2.msra.mxu0 0.0
    %2551 = vmatprep.subr.mxu0 0.0
    %2552 = vmatpush2.msra.mxu0 0.0
    %2553 = vmatprep.subr.mxu0 0.0
    %2554 = vmatpush2.msra.mxu0 0.0
    %2555 = vmatprep.subr.mxu0 0.0
    %2556 = vmatpush2.msra.mxu0 0.0
    %2557 = vmatprep.subr.mxu0 0.0
    %2558 = vmatpush2.msra.mxu0 0.0
    %2559 = vmatprep.subr.mxu0 0.0
    %2560 = vmatpush2.msra.mxu0 0.0
    %2561 = vmatprep.subr.mxu0 0.0
    %2562 = vmatpush2.msra.mxu0 0.0
    %2563 = vmatprep.subr.mxu0 0.0
    %2564 = vmatpush2.msra.mxu0 0.0
    %2565 = vmatprep.subr.mxu0 0.0
    %2566 = vmatpush2.msra.mxu0 0.0
    %2567 = vmatprep.subr.mxu0 0.0
    %2568 = vmatpush2.msra.mxu0 0.0
    %2569 = vmatprep.subr.mxu0 0.0
    %2570 = vmatpush2.msra.mxu0 0.0
    %2571 = vmatprep.subr.mxu0 0.0
    %2572 = vmatpush2.msra.mxu0 0.0
    %2573 = vmatprep.mubr.f32.mxu0 0.0
    %2574 = vmatmul.mubr.f32.gmra.mxu0 %v2504
    %v2575 = vpop.f32.mrf.mxu0
    %v2576 = vadd.f32 %v2501, %v2575
    %v2577 = vpop.f32.mrf.mxu0
    %2578 = vmatprep.mubr.f32.mxu0 0.0
    %2579 = vmatmul.mubr.f32.gmra.mxu0 %v2507
    %v2580 = vpop.f32.mrf.mxu0
    %v2581 = vadd.f32 %v2501, %v2580
    %v2582 = vpop.f32.mrf.mxu0
    %2583 = vdwg.mxu0
    %v2584 = vmul.f32 %v2576, %v2576
    %v2585 = vmul.f32 %v2581, %v2581
    %v2586 = vmul.f32 %v2576, %v2584
    %v2587 = vmul.f32 %v2581, %v2585
    %v2588 = vmul.f32 %v2586, 0.044715
    %v2589 = vmul.f32 %v2587, 0.044715
    %v2590 = vadd.f32 %v2576, %v2588
    %v2591 = vadd.f32 %v2581, %v2589
    %v2592 = vmul.f32 %v2590, 0.7978846
    %v2593 = vmul.f32 %v2591, 0.7978846
    %v2594 = vtanh.pop %v2592
    %v2595 = vtanh.pop %v2593
    %v2596 = vadd.f32 %v2594, 1.0
    %v2597 = vadd.f32 %v2595, 1.0
    %v2598 = vmul.f32 %v2596, 0.5
    %v2599 = vmul.f32 %v2597, 0.5
    %v2600 = vmul.f32 %v2576, %v2598
    %v2601 = vmul.f32 %v2581, %v2599
    %s2602 = scalar_lea.vmem %s21, 8
    %v2603 = vld [vmem:[%s2602] sm:$0xff]
    %s2604 = scalar_lea.vmem %s22, 1
    %v2605 = vld [vmem:[%s2604] sm:$0x1]
    %v2607 = vlaneseq
    %v2608 = vshrl.u32 %v2607, 7
    %v2609 = vsub.s32 0, %v2608
    %v2610 = vrot.slane %v2605, %v2609
    %v2613 = vsel %vm851, %v2600, 0
    %v2616 = vsel %vm851, %v2601, 0
    %2618 = vmatprep.subr.mxu0 0.0
    %2619 = vmatpush1.msra.mxu0 0.0
    %2620 = vmatprep.subr.mxu0 0.0
    %2621 = vmatpush1.msra.mxu0 0.0
    %2622 = vmatprep.subr.mxu0 0.0
    %2623 = vmatpush1.msra.mxu0 0.0
    %2624 = vmatprep.subr.mxu0 0.0
    %2625 = vmatpush1.msra.mxu0 0.0
    %2626 = vmatprep.subr.mxu0 0.0
    %2627 = vmatpush1.msra.mxu0 0.0
    %2628 = vmatprep.subr.mxu0 0.0
    %2629 = vmatpush1.msra.mxu0 0.0
    %2630 = vmatprep.subr.mxu0 0.0
    %2631 = vmatpush1.msra.mxu0 0.0
    %2632 = vmatprep.subr.mxu0 0.0
    %2633 = vmatpush1.msra.mxu0 0.0
    %2634 = vmatprep.subr.mxu0 0.0
    %2635 = vmatpush1.msra.mxu0 0.0
    %2636 = vmatprep.subr.mxu0 0.0
    %2637 = vmatpush1.msra.mxu0 0.0
    %2638 = vmatprep.subr.mxu0 0.0
    %2639 = vmatpush1.msra.mxu0 0.0
    %2640 = vmatprep.subr.mxu0 0.0
    %2641 = vmatpush1.msra.mxu0 0.0
    %2642 = vmatprep.subr.mxu0 0.0
    %2643 = vmatpush1.msra.mxu0 0.0
    %2644 = vmatprep.subr.mxu0 0.0
    %2645 = vmatpush1.msra.mxu0 0.0
    %2646 = vmatprep.subr.mxu0 0.0
    %2647 = vmatpush1.msra.mxu0 0.0
    %2648 = vmatprep.subr.mxu0 0.0
    %2649 = vmatpush1.msra.mxu0 %v2603
    %2650 = vmatprep.subr.mxu0 0.0
    %2651 = vmatpush2.msra.mxu0 0.0
    %2652 = vmatprep.subr.mxu0 0.0
    %2653 = vmatpush2.msra.mxu0 0.0
    %2654 = vmatprep.subr.mxu0 0.0
    %2655 = vmatpush2.msra.mxu0 0.0
    %2656 = vmatprep.subr.mxu0 0.0
    %2657 = vmatpush2.msra.mxu0 0.0
    %2658 = vmatprep.subr.mxu0 0.0
    %2659 = vmatpush2.msra.mxu0 0.0
    %2660 = vmatprep.subr.mxu0 0.0
    %2661 = vmatpush2.msra.mxu0 0.0
    %2662 = vmatprep.subr.mxu0 0.0
    %2663 = vmatpush2.msra.mxu0 0.0
    %2664 = vmatprep.subr.mxu0 0.0
    %2665 = vmatpush2.msra.mxu0 0.0
    %2666 = vmatprep.subr.mxu0 0.0
    %2667 = vmatpush2.msra.mxu0 0.0
    %2668 = vmatprep.subr.mxu0 0.0
    %2669 = vmatpush2.msra.mxu0 0.0
    %2670 = vmatprep.subr.mxu0 0.0
    %2671 = vmatpush2.msra.mxu0 0.0
    %2672 = vmatprep.subr.mxu0 0.0
    %2673 = vmatpush2.msra.mxu0 0.0
    %2674 = vmatprep.subr.mxu0 0.0
    %2675 = vmatpush2.msra.mxu0 0.0
    %2676 = vmatprep.subr.mxu0 0.0
    %2677 = vmatpush2.msra.mxu0 0.0
    %2678 = vmatprep.subr.mxu0 0.0
    %2679 = vmatpush2.msra.mxu0 0.0
    %2680 = vmatprep.subr.mxu0 0.0
    %2681 = vmatpush2.msra.mxu0 0.0
    %2682 = vmatprep.mubr.f32.mxu0 0.0
    %2683 = vmatmul.mubr.f32.gmra.mxu0 %v2613
    %v2684 = vpop.f32.mrf.mxu0
    %v2685 = vadd.f32 %v2610, %v2684
    %v2686 = vpop.f32.mrf.mxu0
    %2687 = vmatprep.mubr.f32.mxu0 0.0
    %2688 = vmatmul.mubr.f32.gmra.mxu0 %v2616
    %v2689 = vpop.f32.mrf.mxu0
    %v2690 = vadd.f32 %v2610, %v2689
    %v2691 = vpop.f32.mrf.mxu0
    %2692 = vdwg.mxu0
    %v2693 = vadd.f32 %v2685, %v2482
    %v2694 = vadd.f32 %v2690, %v2487
    %v2695 = vadd.f32 %v2693, %v2232
    %v2696 = vadd.f32 %v2694, %v2233
    %2697 = vst.msk [vmem:[#allocation2] sm:$0xff] %vm81, %v2695
    %2698 = vst.msk [vmem:[#allocation2 + $0x8] sm:$0xff] %vm81, %v2696
    // Predicated region
    $region94: #{tpu_custom_call.1} parent=1 // pred_check
      _
    $region95: #{tpu_custom_call.1} parent=1 // pred_check_branch
      %2700 = sbr.rel (0) target = $region97
    $region96: #{tpu_custom_call.1} parent=1 // pred_region
      %s2702 = ssub.s32 256, 256
      %2703 = vsyncadd [#allocation3], %s2702
      %s2704 = sshll.u32 [#allocation2], 4
      %s2705 = int_to_ptr.vmem [resolvable:$true] %s2704
      %2710 = dma.vmem_to_hbm [thread:$0]  %s2705, 256, %s23, [#allocation3], 128, 128, 8
    $region97: #{tpu_custom_call.1} parent=1 // pred_fallthru
      _
    // Predicated region
    $region98: #{tpu_custom_call.1} parent=1 // pred_check
      _
    $region99: #{tpu_custom_call.1} parent=1 // pred_check_branch
      %2712 = sbr.rel (0) target = $region101
    $region100: #{tpu_custom_call.1} parent=1 // pred_region
      %2713 = dma.done [#allocation3], 256
    $region101: #{tpu_custom_call.1} parent=1 // pred_fallthru
      _
    %2714 = vsyncpa [#allocation3], 1

</llo_original>
